<compile_context>
chip_gen: v6e
topology: v6e:2x2x1
jax: 0.10.0
libtpu: 0.0.40
codegen_flags: <defaults>
</compile_context>

<pallas_src>
from functools import lru_cache

import numpy as np
import jax
import jax.numpy as jnp
from jax.experimental import pallas as pl
from jax.experimental.pallas import tpu as pltpu

SIZES = (1, 2, 3, 6)
N_STAGES = len(SIZES)
BN_EPS = 1e-5


def _round_up(x, m):
    return (x + m - 1) // m * m


# Per-stage pooled bins live at 8-aligned sublane offsets so stage-head matmuls
# and stores use only aligned static slices; total padded to a multiple of 16
# (bf16 sublane pack) -> S_PAD = 80.
GROUP_LEN = tuple(_round_up(s * s, 8) for s in SIZES)                  # (8, 8, 16, 40)
GROUP_OFF = tuple(int(v) for v in np.cumsum((0,) + GROUP_LEN[:-1]))    # (0, 8, 16, 32)
S_PAD = _round_up(sum(GROUP_LEN), 16)                                  # 80


# ---------------------------------------------------------------------------
# Constant operators (pool bins / bilinear-interp matrices), cached per (H, W).
# ---------------------------------------------------------------------------
def _pool_bins(n, s):
    """PyTorch AdaptiveAvgPool2d bin [start, end) ranges along one axis."""
    return [((i * n) // s, -((-(i + 1) * n) // s)) for i in range(s)]


def _adaptive_pool_matrix_np(h_in, s):
    """Averaging matrix P[i, h] = 1/len(bin_i) if h in bin_i (reference path)."""
    P = np.zeros((s, h_in), dtype=np.float32)
    for i, (a, b) in enumerate(_pool_bins(h_in, s)):
        P[i, a:b] = 1.0 / (b - a)
    return P


def _bilinear_matrix_np(h_out, s):
    """W[h, i]: bilinear (align_corners=True) upsample weights from s -> h_out."""
    W = np.zeros((h_out, s), dtype=np.float32)
    if s == 1:
        W[:, 0] = 1.0
    else:
        for h in range(h_out):
            src = h * (s - 1) / (h_out - 1) if h_out > 1 else 0.0
            i0 = min(int(np.floor(src)), s - 2)
            frac = src - i0
            W[h, i0] = 1.0 - frac
            W[h, i0 + 1] = frac
    return W


@lru_cache(maxsize=32)
def _ppm_constants(h, w, hw_pad):
    """0/1 pooling indicator, bilinear upsample operator and f32 1/bin-count,
    grouped per stage at 8-aligned offsets and zero-padded to (S_PAD, hw_pad)."""
    hw = h * w
    P = np.zeros((S_PAD, hw_pad), np.float32)      # exact 0/1 indicator
    U = np.zeros((hw_pad, S_PAD), np.float32)
    inv = np.ones((S_PAD, 1), np.float32)
    for k, s in enumerate(SIZES):
        off = GROUP_OFF[k]
        bins_h, bins_w = _pool_bins(h, s), _pool_bins(w, s)
        ind_h = np.zeros((s, h), np.float32)
        for i, (a, b) in enumerate(bins_h):
            ind_h[i, a:b] = 1.0
        ind_w = np.zeros((s, w), np.float32)
        for j, (a, b) in enumerate(bins_w):
            ind_w[j, a:b] = 1.0
        P[off:off + s * s, :hw] = np.einsum('ih,jw->ijhw', ind_h, ind_w).reshape(s * s, hw)
        cnt = np.array([(bh[1] - bh[0]) * (bw[1] - bw[0])
                        for bh in bins_h for bw in bins_w], np.float32)
        inv[off:off + s * s, 0] = 1.0 / cnt
        Bh, Bw = _bilinear_matrix_np(h, s), _bilinear_matrix_np(w, s)
        U[:hw, off:off + s * s] = np.einsum('hi,wj->hwij', Bh, Bw).reshape(hw, s * s)
    return P, U, inv


# ---------------------------------------------------------------------------
# Parameter init (matches the PyTorch module's tensors, BN in eval mode).
# ---------------------------------------------------------------------------
def init_params(key, c_in, c_out):
    keys = iter(jax.random.split(key, 4 * 5 + 5))
    stage_w, stage_bn = [], []
    for _ in SIZES:
        w = jax.random.normal(next(keys), (c_out, c_in), jnp.float32) * 0.1
        gamma = jax.random.uniform(next(keys), (c_out,), jnp.float32, 0.5, 1.5)
        beta = jax.random.normal(next(keys), (c_out,), jnp.float32) * 0.1
        mean = jax.random.normal(next(keys), (c_out,), jnp.float32) * 0.1
        var = jax.random.uniform(next(keys), (c_out,), jnp.float32, 0.5, 1.5)
        stage_w.append(w)
        stage_bn.append((gamma, beta, mean, var))
    c_cat = N_STAGES * c_out + c_in
    proj_w = jax.random.normal(next(keys), (c_out, c_cat), jnp.float32) * 0.1
    pgamma = jax.random.uniform(next(keys), (c_out,), jnp.float32, 0.5, 1.5)
    pbeta = jax.random.normal(next(keys), (c_out,), jnp.float32) * 0.1
    pmean = jax.random.normal(next(keys), (c_out,), jnp.float32) * 0.1
    pvar = jax.random.uniform(next(keys), (c_out,), jnp.float32, 0.5, 1.5)
    return dict(stage_w=stage_w, stage_bn=stage_bn, proj_w=proj_w,
                proj_bn=(pgamma, pbeta, pmean, pvar))


# ---------------------------------------------------------------------------
# Pallas kernel.  grid = (N, phase, HW-tiles).
#   phase 0: stream x once -> pooled sums (S_PAD, C_in) + identity partial
#            (HW_pad, C_out) scratch; at the last tile compute the folded
#            per-stage heads h = mean @ A_s + b_s (f32).
#   phase 1: stream U tiles, out = relu(ident + U @ h + pbias).
# Invariant: the output block index is frozen at (n, 0) during phase 0 and each
# phase-1 tile is fully written before its index changes, so no un-written
# output block is ever flushed.
# ---------------------------------------------------------------------------
def _make_kernel(t_hw):
    def ppm_kernel(x_ref, p_ref, u_ref, wx_ref, a_ref, b_ref, pb_ref, ic_ref,
                   o_ref, pooled_acc, h_scr, ident_scr):
        phase = pl.program_id(1)
        t = pl.program_id(2)
        last_t = pl.num_programs(2) - 1

        @pl.when(jnp.logical_and(phase == 0, t == 0))
        def _init():
            pooled_acc[...] = jnp.zeros_like(pooled_acc)

        @pl.when(phase == 0)
        def _pool_and_identity():
            x = x_ref[...]                                       # (t_hw, C_in) bf16
            # adaptive-avg-pool partial sums (0/1 indicator -> exact in bf16)
            pooled_acc[...] += jnp.dot(p_ref[...], x,
                                       preferred_element_type=jnp.float32)
            # identity branch of the projection conv, fused into the same pass
            # over x so phase 1 never re-streams x from HBM.
            row0 = pl.multiple_of(t * t_hw, t_hw)
            ident_scr[pl.ds(row0, t_hw), :] = jnp.dot(
                x, wx_ref[...], preferred_element_type=jnp.float32)

        @pl.when(jnp.logical_and(phase == 0, t == last_t))
        def _stage_heads():
            # per-bin mean in f32, then per-stage folded 1x1conv+BN+projection:
            # h_s = mean_s @ A_s + b_s, written at 8-aligned group offsets.
            pooled = pooled_acc[...] * ic_ref[...]               # (S_PAD, C_in) f32
            h_scr[...] = jnp.zeros_like(h_scr)
            for k in range(N_STAGES):
                off, ln = GROUP_OFF[k], GROUP_LEN[k]
                hk = jnp.dot(pooled[off:off + ln, :],
                             a_ref[k].astype(jnp.float32),
                             preferred_element_type=jnp.float32) + b_ref[k]
                h_scr[off:off + ln, :] = hk

        @pl.when(phase == 1)
        def _project():
            row0 = pl.multiple_of(t * t_hw, t_hw)
            acc = ident_scr[pl.ds(row0, t_hw), :]                # (t_hw, C_out) f32
            acc = acc + jnp.dot(u_ref[...].astype(jnp.float32), h_scr[...],
                                preferred_element_type=jnp.float32)
            o_ref[...] = jnp.maximum(acc + pb_ref[...], 0.0).astype(o_ref.dtype)

    return ppm_kernel


# ---------------------------------------------------------------------------
# VMEM-budget-aware pixel-tile choice (never a whole-image fallback).
# ---------------------------------------------------------------------------
def _vmem_budget_bytes():
    try:
        return int(pltpu.get_tpu_info().vmem_capacity_bytes)
    except Exception:
        return 64 * 1024 * 1024   # v7x per-core physical VMEM (most restrictive)


def _pick_tile_hw(hw, c_in, c_out, out_itemsize, vmem_budget, max_tile=2048):
    """Largest multiple-of-128 pixel tile whose estimated VMEM footprint fits
    in ~70% of the per-core budget; HW is zero-padded by the caller."""
    hw_ceil = _round_up(hw, 128)
    best, t = 128, 128
    while t <= min(max_tile, hw_ceil):
        hw_pad = _round_up(hw, t)
        est = (2 * t * c_in * 2                       # x tile (bf16, double-buffered)
               + 2 * S_PAD * t * 2                    # P_cat tile
               + 2 * t * S_PAD * 2                    # U_cat tile
               + 2 * t * c_out * out_itemsize         # out tile
               + hw_pad * c_out * 4                   # identity scratch (f32)
               + S_PAD * (c_in + c_out) * 4           # pooled sums + stage heads
               + (N_STAGES + 1) * c_in * c_out * 2)   # resident weights (1 buffer)
        if est <= 0.7 * vmem_budget:
            best = t
        t += 128
    return best


# ---------------------------------------------------------------------------
# Wrappers: weight folding + pallas_call.
# ---------------------------------------------------------------------------
def ppm_pallas_nhwc(x_nhwc, params, *, tile_hw=None, out_dtype=None):
    N, H, W, C_in = x_nhwc.shape
    c_out = params['proj_w'].shape[0]
    HW = H * W
    out_dtype = x_nhwc.dtype if out_dtype is None else out_dtype

    budget = _vmem_budget_bytes()
    if tile_hw is None:
        t_hw = _pick_tile_hw(HW, C_in, c_out, np.dtype(out_dtype).itemsize, budget)
    else:
        assert tile_hw % 128 == 0, "tile_hw must be a multiple of 128"
        t_hw = tile_hw
    hw_pad = _round_up(HW, t_hw)
    n_t = hw_pad // t_hw
    last = n_t - 1
    vmem_limit = max(48 * 2**20, min(int(0.85 * budget), 112 * 2**20))

    # constant operators (cached per (H, W, hw_pad))
    P_np, U_np, inv_np = _ppm_constants(H, W, hw_pad)
    P_cat = jnp.asarray(P_np, jnp.bfloat16)        # exact 0/1 in bf16
    U_cat = jnp.asarray(U_np, jnp.bfloat16)
    inv_cnt = jnp.asarray(inv_np, jnp.float32)

    # fold every BatchNorm (inference) + split projection conv into weights
    wp_t = params['proj_w'].T.astype(jnp.float32)              # (C_cat, C_out)
    pgamma, pbeta, pmean, pvar = params['proj_bn']
    pscale = pgamma * jax.lax.rsqrt(pvar + BN_EPS)
    pbias = (pbeta - pmean * pscale).reshape(1, c_out).astype(jnp.float32)
    wp_x = (wp_t[N_STAGES * c_out:] * pscale[None, :]).astype(jnp.bfloat16)

    A_list, b_list = [], []
    for k in range(N_STAGES):
        wc = params['stage_w'][k].T                            # (C_in, C_out)
        gamma, beta, mean, var = params['stage_bn'][k]
        ss = gamma * jax.lax.rsqrt(var + BN_EPS)
        sb = beta - mean * ss
        wp_k = wp_t[k * c_out:(k + 1) * c_out] * pscale[None, :]
        A_list.append((wc * ss[None, :]) @ wp_k)               # (C_in, C_out)
        b_list.append((sb @ wp_k).reshape(1, c_out))           # (1, C_out)
    A_all = jnp.stack(A_list, 0).astype(jnp.bfloat16)
    b_all = jnp.stack(b_list, 0).astype(jnp.float32)

    # activations: flatten pixels, zero-pad to hw_pad, bf16 matmul operand
    x_flat = x_nhwc.reshape(N, HW, C_in)
    if hw_pad != HW:
        x_flat = jnp.pad(x_flat, ((0, 0), (0, hw_pad - HW), (0, 0)))
    x_bf16 = x_flat.astype(jnp.bfloat16)

    kernel = _make_kernel(t_hw)

    def _call(single_buffer_weights):
        def wspec(shape, imap):
            if single_buffer_weights:
                return pl.BlockSpec(shape, imap, pipeline_mode=pl.Buffered(1))
            return pl.BlockSpec(shape, imap)

        return pl.pallas_call(
            kernel,
            out_shape=jax.ShapeDtypeStruct((N, hw_pad, c_out), out_dtype),
            grid_spec=pltpu.PrefetchScalarGridSpec(
                num_scalar_prefetch=0,
                grid=(N, 2, n_t),
                in_specs=[
                    # x / P_cat: streamed in phase 0 only; frozen at the last
                    # tile during phase 1 so they are never re-DMA'd.
                    pl.BlockSpec((None, t_hw, C_in),
                                 lambda n, p, t: (n, t * (1 - p) + last * p, 0)),
                    pl.BlockSpec((S_PAD, t_hw),
                                 lambda n, p, t: (0, t * (1 - p) + last * p)),
                    # U_cat: streamed in phase 1 only (frozen during phase 0).
                    pl.BlockSpec((t_hw, S_PAD),
                                 lambda n, p, t: (t * p + last * (1 - p), 0)),
                    # resident packed weights: constant index -> fetched once;
                    # single-buffered (when supported) to halve their VMEM.
                    wspec((C_in, c_out), lambda n, p, t: (0, 0)),
                    wspec((N_STAGES, C_in, c_out), lambda n, p, t: (0, 0, 0)),
                    wspec((N_STAGES, 1, c_out), lambda n, p, t: (0, 0, 0)),
                    wspec((1, c_out), lambda n, p, t: (0, 0)),
                    wspec((S_PAD, 1), lambda n, p, t: (0, 0)),
                ],
                # output block index frozen at (n, 0) during phase 0 -> nothing
                # is flushed; phase 1 writes each pixel tile exactly once.
                out_specs=pl.BlockSpec((None, t_hw, c_out),
                                       lambda n, p, t: (n, t * p, 0)),
                scratch_shapes=[
                    pltpu.VMEM((S_PAD, C_in), jnp.float32),    # pooled sums
                    pltpu.VMEM((S_PAD, c_out), jnp.float32),   # folded stage heads
                    pltpu.VMEM((hw_pad, c_out), jnp.float32),  # identity partial
                ],
            ),
            compiler_params=pltpu.CompilerParams(
                dimension_semantics=("parallel", "arbitrary", "arbitrary"),
                vmem_limit_bytes=vmem_limit,
            ),
        )(x_bf16, P_cat, U_cat, wp_x, A_all, b_all, pbias, inv_cnt)

    try:
        out = _call(True)
    except Exception:
        # pl.Buffered(1) not supported by this jax version/backend: fall back
        # to default double-buffered resident weights (identical results).
        out = _call(False)

    return out[:, :HW, :].reshape(N, H, W, c_out)


def ppm_pallas(x_nchw, params, **kw):
    # TODO(synk): callers already running NHWC should use ppm_pallas_nhwc
    # directly and skip these two full HBM transposes.
    x_nhwc = jnp.transpose(x_nchw, (0, 2, 3, 1))
    y = ppm_pallas_nhwc(x_nhwc, params, **kw)
    return jnp.transpose(y, (0, 3, 1, 2))


# ---------------------------------------------------------------------------
# Pure-JAX f32 reference (mirrors the PyTorch forward, BN in eval mode).
# ---------------------------------------------------------------------------
def ppm_reference(x_nchw, params):
    feats = []
    H, W = x_nchw.shape[2:]
    for k, s in enumerate(SIZES):
        Ph = jnp.asarray(_adaptive_pool_matrix_np(H, s))
        Pw = jnp.asarray(_adaptive_pool_matrix_np(W, s))
        pooled = jnp.einsum('nchw,ih,jw->ncij', x_nchw, Ph, Pw)
        conv = jnp.einsum('ncij,oc->noij', pooled, params['stage_w'][k])
        gamma, beta, mean, var = params['stage_bn'][k]
        inv = jax.lax.rsqrt(var + BN_EPS)
        g = (conv - mean[None, :, None, None]) * (gamma * inv)[None, :, None, None] \
            + beta[None, :, None, None]
        Bh = jnp.asarray(_bilinear_matrix_np(H, s))
        Bw = jnp.asarray(_bilinear_matrix_np(W, s))
        up = jnp.einsum('noij,hi,wj->nohw', g, Bh, Bw)
        feats.append(up)
    feats.append(x_nchw)
    feats = jnp.concatenate(feats, axis=1)
    proj = jnp.einsum('nchw,oc->nohw', feats, params['proj_w'])
    pgamma, pbeta, pmean, pvar = params['proj_bn']
    pinv = jax.lax.rsqrt(pvar + BN_EPS)
    y = (proj - pmean[None, :, None, None]) * (pgamma * pinv)[None, :, None, None] \
        + pbeta[None, :, None, None]
    return jnp.maximum(y, 0.0)


if __name__ == "__main__":
    key = jax.random.PRNGKey(0)
    kx, kp, kx2 = jax.random.split(key, 3)

    # --- case 1: 128-divisible HW, multi-tile two-phase path -----------------
    N, C_in, H, W, C_out = 2, 8, 16, 16, 4
    x = jax.random.normal(kx, (N, C_in, H, W), jnp.float32)
    params = init_params(kp, C_in, C_out)
    out = jax.block_until_ready(ppm_pallas(x, params, tile_hw=128))
    assert out.shape == (N, C_out, H, W)
    ref = ppm_reference(x, params)
    max_err = float(jnp.max(jnp.abs(out - ref)))
    mean_err = float(jnp.mean(jnp.abs(out - ref)))
    assert max_err < 5e-2 and mean_err < 1e-2, \
        f"case1 mismatch: max={max_err}, mean={mean_err}"

    # --- case 2: HW not a multiple of 128 -> zero-padded pixel tiles ---------
    x2 = jax.random.normal(kx2, (1, C_in, 10, 10), jnp.float32)
    out2 = jax.block_until_ready(ppm_pallas(x2, params))
    assert out2.shape == (1, C_out, 10, 10)
    ref2 = ppm_reference(x2, params)
    max_err2 = float(jnp.max(jnp.abs(out2 - ref2)))
    assert max_err2 < 5e-2, f"case2 mismatch: max={max_err2}"

    print("KERNEL_OK")
</pallas_src>

<mosaic_0001>
module attributes {stable_mosaic.version = 11 : i64} {
  func.func @ppm_kernel(%arg0: i32, %arg1: i32, %arg2: i32, %arg3: memref<1x128x8xbf16, #tpu.memory_space<vmem>>, %arg4: memref<80x128xbf16, #tpu.memory_space<vmem>>, %arg5: memref<128x80xbf16, #tpu.memory_space<vmem>>, %arg6: memref<8x4xbf16, #tpu.memory_space<vmem>>, %arg7: memref<4x8x4xbf16, #tpu.memory_space<vmem>>, %arg8: memref<4x1x4xf32, #tpu.memory_space<vmem>>, %arg9: memref<1x4xf32, #tpu.memory_space<vmem>>, %arg10: memref<80x1xf32, #tpu.memory_space<vmem>>, %arg11: memref<1x128x4xf32, #tpu.memory_space<vmem>>, %arg12: memref<80x8xf32, #tpu.memory_space<vmem>>, %arg13: memref<80x4xf32, #tpu.memory_space<vmem>>, %arg14: memref<256x4xf32, #tpu.memory_space<vmem>>) attributes {dimension_semantics = [#tpu.dimension_semantics<parallel>, #tpu.dimension_semantics<arbitrary>, #tpu.dimension_semantics<arbitrary>], iteration_bounds = array<i64: 2, 2, 2>, scalar_prefetch = 0 : i64, scratch_operands = 3 : i64, tpu.core_type = #tpu.core_type<tc>, window_params = [{transform_indices = @transform_0, window_bounds = array<i64: 1, 128, 8>}, {transform_indices = @transform_1, window_bounds = array<i64: 80, 128>}, {transform_indices = @transform_2, window_bounds = array<i64: 128, 80>}, {pipeline_mode = #tpu.pipeline_mode<synchronous>, transform_indices = @transform_3, window_bounds = array<i64: 8, 4>}, {pipeline_mode = #tpu.pipeline_mode<synchronous>, transform_indices = @transform_4, window_bounds = array<i64: 4, 8, 4>}, {pipeline_mode = #tpu.pipeline_mode<synchronous>, transform_indices = @transform_5, window_bounds = array<i64: 4, 1, 4>}, {pipeline_mode = #tpu.pipeline_mode<synchronous>, transform_indices = @transform_6, window_bounds = array<i64: 1, 4>}, {pipeline_mode = #tpu.pipeline_mode<synchronous>, transform_indices = @transform_7, window_bounds = array<i64: 80, 1>}, {transform_indices = @transform_8, window_bounds = array<i64: 1, 128, 4>}]} {
    %c0_i32 = arith.constant 0 : i32
    %0 = arith.cmpi eq, %arg1, %c0_i32 : i32
    %c0_i32_0 = arith.constant 0 : i32
    %1 = arith.cmpi eq, %arg2, %c0_i32_0 : i32
    %2 = arith.andi %0, %1 : i1
    %3 = arith.extui %2 : i1 to i32
    %c0_i32_1 = arith.constant 0 : i32
    %4 = arith.cmpi ne, %3, %c0_i32_1 : i32
    scf.if %4 {
      %cst = arith.constant 0.000000e+00 : f32
      %16 = vector.broadcast %cst : f32 to vector<80x8xf32>
      %c0 = arith.constant 0 : index
      %c0_8 = arith.constant 0 : index
      %17 = vector.load %arg12[%c0, %c0_8] : memref<80x8xf32, #tpu.memory_space<vmem>>, vector<80x8xf32>
      tpu.vector_store %arg12[%c0, %c0_8], %16 {strides = array<i32>} : memref<80x8xf32, #tpu.memory_space<vmem>>, vector<80x8xf32>,
    } else {
    }
    %c0_i32_2 = arith.constant 0 : i32
    %5 = arith.cmpi eq, %arg1, %c0_i32_2 : i32
    %6 = arith.extui %5 : i1 to i32
    %c0_i32_3 = arith.constant 0 : i32
    %7 = arith.cmpi ne, %6, %c0_i32_3 : i32
    scf.if %7 {
      %c0 = arith.constant 0 : index
      %c0_8 = arith.constant 0 : index
      %c0_9 = arith.constant 0 : index
      %16 = vector.load %arg3[%c0, %c0_8, %c0_9] : memref<1x128x8xbf16, #tpu.memory_space<vmem>>, vector<1x128x8xbf16>
      %17 = vector.shape_cast %16 : vector<1x128x8xbf16> to vector<128x8xbf16>
      %c0_10 = arith.constant 0 : index
      %c0_11 = arith.constant 0 : index
      %18 = vector.load %arg12[%c0_10, %c0_11] : memref<80x8xf32, #tpu.memory_space<vmem>>, vector<80x8xf32>
      %c0_12 = arith.constant 0 : index
      %c0_13 = arith.constant 0 : index
      %19 = vector.load %arg4[%c0_12, %c0_13] : memref<80x128xbf16, #tpu.memory_space<vmem>>, vector<80x128xbf16>
      %cst = arith.constant dense<0.000000e+00> : vector<80x8xf32>
      %20 = tpu.matmul %19, %17, %cst {dimension_numbers = #tpu.dot_dimension_numbers<[1], [0], [0], [1], [0, 0, 1, 1], [], []>} : vector<80x128xbf16>, vector<128x8xbf16>, vector<80x8xf32> -> vector<80x8xf32>
      %21 = arith.addf %18, %20 : vector<80x8xf32>
      %c0_14 = arith.constant 0 : index
      %c0_15 = arith.constant 0 : index
      %22 = vector.load %arg12[%c0_14, %c0_15] : memref<80x8xf32, #tpu.memory_space<vmem>>, vector<80x8xf32>
      tpu.vector_store %arg12[%c0_14, %c0_15], %21 {strides = array<i32>} : memref<80x8xf32, #tpu.memory_space<vmem>>, vector<80x8xf32>,
      %c128_i32 = arith.constant 128 : i32
      %23 = arith.muli %arg2, %c128_i32 : i32
      %24 = tpu.assume_multiple %23, 128 : i32
      %c0_16 = arith.constant 0 : index
      %c0_17 = arith.constant 0 : index
      %25 = vector.load %arg6[%c0_16, %c0_17] : memref<8x4xbf16, #tpu.memory_space<vmem>>, vector<8x4xbf16>
      %cst_18 = arith.constant dense<0.000000e+00> : vector<128x4xf32>
      %26 = tpu.matmul %17, %25, %cst_18 {dimension_numbers = #tpu.dot_dimension_numbers<[1], [0], [0], [1], [0, 0, 1, 1], [], []>} : vector<128x8xbf16>, vector<8x4xbf16>, vector<128x4xf32> -> vector<128x4xf32>
      %27 = arith.index_cast %24 : i32 to index
      %c0_19 = arith.constant 0 : index
      %28 = vector.load %arg14[%27, %c0_19] : memref<256x4xf32, #tpu.memory_space<vmem>>, vector<128x4xf32>
      tpu.vector_store %arg14[%27, %c0_19], %26 {strides = array<i32>} : memref<256x4xf32, #tpu.memory_space<vmem>>, vector<128x4xf32>,
    } else {
    }
    %c0_i32_4 = arith.constant 0 : i32
    %8 = arith.cmpi eq, %arg1, %c0_i32_4 : i32
    %c1_i32 = arith.constant 1 : i32
    %9 = arith.cmpi eq, %arg2, %c1_i32 : i32
    %10 = arith.andi %8, %9 : i1
    %11 = arith.extui %10 : i1 to i32
    %c0_i32_5 = arith.constant 0 : i32
    %12 = arith.cmpi ne, %11, %c0_i32_5 : i32
    scf.if %12 {
      %c0 = arith.constant 0 : index
      %c0_8 = arith.constant 0 : index
      %16 = vector.load %arg12[%c0, %c0_8] : memref<80x8xf32, #tpu.memory_space<vmem>>, vector<80x8xf32>
      %c0_9 = arith.constant 0 : index
      %c0_10 = arith.constant 0 : index
      %17 = vector.load %arg10[%c0_9, %c0_10] : memref<80x1xf32, #tpu.memory_space<vmem>>, vector<80x1xf32>
      %18 = vector.broadcast %17 : vector<80x1xf32> to vector<80x8xf32>
      %19 = arith.mulf %16, %18 : vector<80x8xf32>
      %cst = arith.constant 0.000000e+00 : f32
      %20 = vector.broadcast %cst : f32 to vector<80x4xf32>
      %c0_11 = arith.constant 0 : index
      %c0_12 = arith.constant 0 : index
      %21 = vector.load %arg13[%c0_11, %c0_12] : memref<80x4xf32, #tpu.memory_space<vmem>>, vector<80x4xf32>
      tpu.vector_store %arg13[%c0_11, %c0_12], %20 {strides = array<i32>} : memref<80x4xf32, #tpu.memory_space<vmem>>, vector<80x4xf32>,
      %22 = vector.extract_strided_slice %19 {offsets = [0, 0], sizes = [8, 8], strides = [1, 1]} : vector<80x8xf32> to vector<8x8xf32>
      %c0_13 = arith.constant 0 : index
      %c0_14 = arith.constant 0 : index
      %c0_15 = arith.constant 0 : index
      %23 = vector.load %arg7[%c0_13, %c0_14, %c0_15] : memref<4x8x4xbf16, #tpu.memory_space<vmem>>, vector<1x8x4xbf16>
      %24 = vector.shape_cast %23 : vector<1x8x4xbf16> to vector<8x4xbf16>
      %25 = arith.extf %24 : vector<8x4xbf16> to vector<8x4xf32>
      %cst_16 = arith.constant dense<0.000000e+00> : vector<8x4xf32>
      %26 = tpu.matmul %22, %25, %cst_16 {dimension_numbers = #tpu.dot_dimension_numbers<[1], [0], [0], [1], [0, 0, 1, 1], [], []>} : vector<8x8xf32>, vector<8x4xf32>, vector<8x4xf32> -> vector<8x4xf32>
      %c0_17 = arith.constant 0 : index
      %c0_18 = arith.constant 0 : index
      %c0_19 = arith.constant 0 : index
      %27 = vector.load %arg8[%c0_17, %c0_18, %c0_19] : memref<4x1x4xf32, #tpu.memory_space<vmem>>, vector<1x1x4xf32>
      %28 = vector.shape_cast %27 : vector<1x1x4xf32> to vector<1x4xf32>
      %29 = vector.broadcast %28 : vector<1x4xf32> to vector<8x4xf32>
      %30 = arith.addf %26, %29 : vector<8x4xf32>
      %c0_20 = arith.constant 0 : index
      %c0_21 = arith.constant 0 : index
      %31 = vector.load %arg13[%c0_20, %c0_21] : memref<80x4xf32, #tpu.memory_space<vmem>>, vector<8x4xf32>
      tpu.vector_store %arg13[%c0_20, %c0_21], %30 {strides = array<i32>} : memref<80x4xf32, #tpu.memory_space<vmem>>, vector<8x4xf32>,
      %32 = vector.extract_strided_slice %19 {offsets = [8, 0], sizes = [8, 8], strides = [1, 1]} : vector<80x8xf32> to vector<8x8xf32>
      %c1 = arith.constant 1 : index
      %c0_22 = arith.constant 0 : index
      %c0_23 = arith.constant 0 : index
      %33 = vector.load %arg7[%c1, %c0_22, %c0_23] : memref<4x8x4xbf16, #tpu.memory_space<vmem>>, vector<1x8x4xbf16>
      %34 = vector.shape_cast %33 : vector<1x8x4xbf16> to vector<8x4xbf16>
      %35 = arith.extf %34 : vector<8x4xbf16> to vector<8x4xf32>
      %cst_24 = arith.constant dense<0.000000e+00> : vector<8x4xf32>
      %36 = tpu.matmul %32, %35, %cst_24 {dimension_numbers = #tpu.dot_dimension_numbers<[1], [0], [0], [1], [0, 0, 1, 1], [], []>} : vector<8x8xf32>, vector<8x4xf32>, vector<8x4xf32> -> vector<8x4xf32>
      %c1_25 = arith.constant 1 : index
      %c0_26 = arith.constant 0 : index
      %c0_27 = arith.constant 0 : index
      %37 = vector.load %arg8[%c1_25, %c0_26, %c0_27] : memref<4x1x4xf32, #tpu.memory_space<vmem>>, vector<1x1x4xf32>
      %38 = vector.shape_cast %37 : vector<1x1x4xf32> to vector<1x4xf32>
      %39 = vector.broadcast %38 : vector<1x4xf32> to vector<8x4xf32>
      %40 = arith.addf %36, %39 : vector<8x4xf32>
      %c8 = arith.constant 8 : index
      %c0_28 = arith.constant 0 : index
      %41 = vector.load %arg13[%c8, %c0_28] : memref<80x4xf32, #tpu.memory_space<vmem>>, vector<8x4xf32>
      tpu.vector_store %arg13[%c8, %c0_28], %40 {strides = array<i32>} : memref<80x4xf32, #tpu.memory_space<vmem>>, vector<8x4xf32>,
      %42 = vector.extract_strided_slice %19 {offsets = [16, 0], sizes = [16, 8], strides = [1, 1]} : vector<80x8xf32> to vector<16x8xf32>
      %c2 = arith.constant 2 : index
      %c0_29 = arith.constant 0 : index
      %c0_30 = arith.constant 0 : index
      %43 = vector.load %arg7[%c2, %c0_29, %c0_30] : memref<4x8x4xbf16, #tpu.memory_space<vmem>>, vector<1x8x4xbf16>
      %44 = vector.shape_cast %43 : vector<1x8x4xbf16> to vector<8x4xbf16>
      %45 = arith.extf %44 : vector<8x4xbf16> to vector<8x4xf32>
      %cst_31 = arith.constant dense<0.000000e+00> : vector<16x4xf32>
      %46 = tpu.matmul %42, %45, %cst_31 {dimension_numbers = #tpu.dot_dimension_numbers<[1], [0], [0], [1], [0, 0, 1, 1], [], []>} : vector<16x8xf32>, vector<8x4xf32>, vector<16x4xf32> -> vector<16x4xf32>
      %c2_32 = arith.constant 2 : index
      %c0_33 = arith.constant 0 : index
      %c0_34 = arith.constant 0 : index
      %47 = vector.load %arg8[%c2_32, %c0_33, %c0_34] : memref<4x1x4xf32, #tpu.memory_space<vmem>>, vector<1x1x4xf32>
      %48 = vector.shape_cast %47 : vector<1x1x4xf32> to vector<1x4xf32>
      %49 = vector.broadcast %48 : vector<1x4xf32> to vector<16x4xf32>
      %50 = arith.addf %46, %49 : vector<16x4xf32>
      %c16 = arith.constant 16 : index
      %c0_35 = arith.constant 0 : index
      %51 = vector.load %arg13[%c16, %c0_35] : memref<80x4xf32, #tpu.memory_space<vmem>>, vector<16x4xf32>
      tpu.vector_store %arg13[%c16, %c0_35], %50 {strides = array<i32>} : memref<80x4xf32, #tpu.memory_space<vmem>>, vector<16x4xf32>,
      %52 = vector.extract_strided_slice %19 {offsets = [32, 0], sizes = [40, 8], strides = [1, 1]} : vector<80x8xf32> to vector<40x8xf32>
      %c3 = arith.constant 3 : index
      %c0_36 = arith.constant 0 : index
      %c0_37 = arith.constant 0 : index
      %53 = vector.load %arg7[%c3, %c0_36, %c0_37] : memref<4x8x4xbf16, #tpu.memory_space<vmem>>, vector<1x8x4xbf16>
      %54 = vector.shape_cast %53 : vector<1x8x4xbf16> to vector<8x4xbf16>
      %55 = arith.extf %54 : vector<8x4xbf16> to vector<8x4xf32>
      %cst_38 = arith.constant dense<0.000000e+00> : vector<40x4xf32>
      %56 = tpu.matmul %52, %55, %cst_38 {dimension_numbers = #tpu.dot_dimension_numbers<[1], [0], [0], [1], [0, 0, 1, 1], [], []>} : vector<40x8xf32>, vector<8x4xf32>, vector<40x4xf32> -> vector<40x4xf32>
      %c3_39 = arith.constant 3 : index
      %c0_40 = arith.constant 0 : index
      %c0_41 = arith.constant 0 : index
      %57 = vector.load %arg8[%c3_39, %c0_40, %c0_41] : memref<4x1x4xf32, #tpu.memory_space<vmem>>, vector<1x1x4xf32>
      %58 = vector.shape_cast %57 : vector<1x1x4xf32> to vector<1x4xf32>
      %59 = vector.broadcast %58 : vector<1x4xf32> to vector<40x4xf32>
      %60 = arith.addf %56, %59 : vector<40x4xf32>
      %c32 = arith.constant 32 : index
      %c0_42 = arith.constant 0 : index
      %61 = vector.load %arg13[%c32, %c0_42] : memref<80x4xf32, #tpu.memory_space<vmem>>, vector<40x4xf32>
      tpu.vector_store %arg13[%c32, %c0_42], %60 {strides = array<i32>} : memref<80x4xf32, #tpu.memory_space<vmem>>, vector<40x4xf32>,
    } else {
    }
    %c1_i32_6 = arith.constant 1 : i32
    %13 = arith.cmpi eq, %arg1, %c1_i32_6 : i32
    %14 = arith.extui %13 : i1 to i32
    %c0_i32_7 = arith.constant 0 : i32
    %15 = arith.cmpi ne, %14, %c0_i32_7 : i32
    scf.if %15 {
      %c128_i32 = arith.constant 128 : i32
      %16 = arith.muli %arg2, %c128_i32 : i32
      %17 = tpu.assume_multiple %16, 128 : i32
      %18 = arith.index_cast %17 : i32 to index
      %c0 = arith.constant 0 : index
      %19 = vector.load %arg14[%18, %c0] : memref<256x4xf32, #tpu.memory_space<vmem>>, vector<128x4xf32>
      %c0_8 = arith.constant 0 : index
      %c0_9 = arith.constant 0 : index
      %20 = vector.load %arg5[%c0_8, %c0_9] : memref<128x80xbf16, #tpu.memory_space<vmem>>, vector<128x80xbf16>
      %21 = arith.extf %20 : vector<128x80xbf16> to vector<128x80xf32>
      %c0_10 = arith.constant 0 : index
      %c0_11 = arith.constant 0 : index
      %22 = vector.load %arg13[%c0_10, %c0_11] : memref<80x4xf32, #tpu.memory_space<vmem>>, vector<80x4xf32>
      %cst = arith.constant dense<0.000000e+00> : vector<128x4xf32>
      %23 = tpu.matmul %21, %22, %cst {dimension_numbers = #tpu.dot_dimension_numbers<[1], [0], [0], [1], [0, 0, 1, 1], [], []>} : vector<128x80xf32>, vector<80x4xf32>, vector<128x4xf32> -> vector<128x4xf32>
      %24 = arith.addf %19, %23 : vector<128x4xf32>
      %c0_12 = arith.constant 0 : index
      %c0_13 = arith.constant 0 : index
      %25 = vector.load %arg9[%c0_12, %c0_13] : memref<1x4xf32, #tpu.memory_space<vmem>>, vector<1x4xf32>
      %26 = vector.broadcast %25 : vector<1x4xf32> to vector<128x4xf32>
      %27 = arith.addf %24, %26 : vector<128x4xf32>
      %cst_14 = arith.constant 0.000000e+00 : f32
      %28 = vector.broadcast %cst_14 : f32 to vector<128x4xf32>
      %29 = arith.maximumf %27, %28 : vector<128x4xf32>
      %c0_15 = arith.constant 0 : index
      %c0_16 = arith.constant 0 : index
      %c0_17 = arith.constant 0 : index
      %30 = vector.load %arg11[%c0_15, %c0_16, %c0_17] : memref<1x128x4xf32, #tpu.memory_space<vmem>>, vector<1x128x4xf32>
      %31 = vector.shape_cast %30 : vector<1x128x4xf32> to vector<128x4xf32>
      %32 = vector.shape_cast %29 : vector<128x4xf32> to vector<1x128x4xf32>
      tpu.vector_store %arg11[%c0_15, %c0_16, %c0_17], %32 {strides = array<i32>} : memref<1x128x4xf32, #tpu.memory_space<vmem>>, vector<1x128x4xf32>,
    } else {
    }
    return
  }
  func.func @transform_0(%arg0: i32, %arg1: i32, %arg2: i32) -> (i32, i32, i32) {
    %c1_i32 = arith.constant 1 : i32
    %0 = arith.subi %c1_i32, %arg1 : i32
    %1 = arith.muli %arg2, %0 : i32
    %c1_i32_0 = arith.constant 1 : i32
    %2 = arith.muli %c1_i32_0, %arg1 : i32
    %3 = arith.addi %1, %2 : i32
    %c0_i32 = arith.constant 0 : i32
    %c0_i32_1 = arith.constant 0 : i32
    return %arg0, %3, %c0_i32 : i32, i32, i32
  }
  func.func @transform_1(%arg0: i32, %arg1: i32, %arg2: i32) -> (i32, i32) {
    %c1_i32 = arith.constant 1 : i32
    %0 = arith.subi %c1_i32, %arg1 : i32
    %1 = arith.muli %arg2, %0 : i32
    %c1_i32_0 = arith.constant 1 : i32
    %2 = arith.muli %c1_i32_0, %arg1 : i32
    %3 = arith.addi %1, %2 : i32
    %c0_i32 = arith.constant 0 : i32
    %c0_i32_1 = arith.constant 0 : i32
    return %c0_i32, %3 : i32, i32
  }
  func.func @transform_2(%arg0: i32, %arg1: i32, %arg2: i32) -> (i32, i32) {
    %0 = arith.muli %arg2, %arg1 : i32
    %c1_i32 = arith.constant 1 : i32
    %1 = arith.subi %c1_i32, %arg1 : i32
    %c1_i32_0 = arith.constant 1 : i32
    %2 = arith.muli %c1_i32_0, %1 : i32
    %3 = arith.addi %0, %2 : i32
    %c0_i32 = arith.constant 0 : i32
    %c0_i32_1 = arith.constant 0 : i32
    return %3, %c0_i32 : i32, i32
  }
  func.func @transform_3(%arg0: i32, %arg1: i32, %arg2: i32) -> (i32, i32) {
    %c0_i32 = arith.constant 0 : i32
    %c0_i32_0 = arith.constant 0 : i32
    %c0_i32_1 = arith.constant 0 : i32
    return %c0_i32, %c0_i32_0 : i32, i32
  }
  func.func @transform_4(%arg0: i32, %arg1: i32, %arg2: i32) -> (i32, i32, i32) {
    %c0_i32 = arith.constant 0 : i32
    %c0_i32_0 = arith.constant 0 : i32
    %c0_i32_1 = arith.constant 0 : i32
    %c0_i32_2 = arith.constant 0 : i32
    return %c0_i32, %c0_i32_0, %c0_i32_1 : i32, i32, i32
  }
  func.func @transform_5(%arg0: i32, %arg1: i32, %arg2: i32) -> (i32, i32, i32) {
    %c0_i32 = arith.constant 0 : i32
    %c0_i32_0 = arith.constant 0 : i32
    %c0_i32_1 = arith.constant 0 : i32
    %c0_i32_2 = arith.constant 0 : i32
    return %c0_i32, %c0_i32_0, %c0_i32_1 : i32, i32, i32
  }
  func.func @transform_6(%arg0: i32, %arg1: i32, %arg2: i32) -> (i32, i32) {
    %c0_i32 = arith.constant 0 : i32
    %c0_i32_0 = arith.constant 0 : i32
    %c0_i32_1 = arith.constant 0 : i32
    return %c0_i32, %c0_i32_0 : i32, i32
  }
  func.func @transform_7(%arg0: i32, %arg1: i32, %arg2: i32) -> (i32, i32) {
    %c0_i32 = arith.constant 0 : i32
    %c0_i32_0 = arith.constant 0 : i32
    %c0_i32_1 = arith.constant 0 : i32
    return %c0_i32, %c0_i32_0 : i32, i32
  }
  func.func @transform_8(%arg0: i32, %arg1: i32, %arg2: i32) -> (i32, i32, i32) {
    %0 = arith.muli %arg2, %arg1 : i32
    %c0_i32 = arith.constant 0 : i32
    %c0_i32_0 = arith.constant 0 : i32
    return %arg0, %0, %c0_i32 : i32, i32, i32
  }
}

module attributes {stable_mosaic.version = 11 : i64} {
  func.func @ppm_kernel(%arg0: i32, %arg1: i32, %arg2: i32, %arg3: memref<1x128x8xbf16, #tpu.memory_space<vmem>>, %arg4: memref<80x128xbf16, #tpu.memory_space<vmem>>, %arg5: memref<128x80xbf16, #tpu.memory_space<vmem>>, %arg6: memref<8x4xbf16, #tpu.memory_space<vmem>>, %arg7: memref<4x8x4xbf16, #tpu.memory_space<vmem>>, %arg8: memref<4x1x4xf32, #tpu.memory_space<vmem>>, %arg9: memref<1x4xf32, #tpu.memory_space<vmem>>, %arg10: memref<80x1xf32, #tpu.memory_space<vmem>>, %arg11: memref<1x128x4xf32, #tpu.memory_space<vmem>>, %arg12: memref<80x8xf32, #tpu.memory_space<vmem>>, %arg13: memref<80x4xf32, #tpu.memory_space<vmem>>, %arg14: memref<256x4xf32, #tpu.memory_space<vmem>>) attributes {dimension_semantics = [#tpu.dimension_semantics<parallel>, #tpu.dimension_semantics<arbitrary>, #tpu.dimension_semantics<arbitrary>], iteration_bounds = array<i64: 2, 2, 2>, scalar_prefetch = 0 : i64, scratch_operands = 3 : i64, tpu.core_type = #tpu.core_type<tc>, window_params = [{transform_indices = @transform_0, window_bounds = array<i64: 1, 128, 8>}, {transform_indices = @transform_1, window_bounds = array<i64: 80, 128>}, {transform_indices = @transform_2, window_bounds = array<i64: 128, 80>}, {pipeline_mode = #tpu.pipeline_mode<synchronous>, transform_indices = @transform_3, window_bounds = array<i64: 8, 4>}, {pipeline_mode = #tpu.pipeline_mode<synchronous>, transform_indices = @transform_4, window_bounds = array<i64: 4, 8, 4>}, {pipeline_mode = #tpu.pipeline_mode<synchronous>, transform_indices = @transform_5, window_bounds = array<i64: 4, 1, 4>}, {pipeline_mode = #tpu.pipeline_mode<synchronous>, transform_indices = @transform_6, window_bounds = array<i64: 1, 4>}, {pipeline_mode = #tpu.pipeline_mode<synchronous>, transform_indices = @transform_7, window_bounds = array<i64: 80, 1>}, {transform_indices = @transform_8, window_bounds = array<i64: 1, 128, 4>}]} {
    %c0_i32 = arith.constant 0 : i32
    %0 = arith.cmpi eq, %arg1, %c0_i32 : i32
    %c0_i32_0 = arith.constant 0 : i32
    %1 = arith.cmpi eq, %arg2, %c0_i32_0 : i32
    %2 = arith.andi %0, %1 : i1
    %3 = arith.extui %2 : i1 to i32
    %c0_i32_1 = arith.constant 0 : i32
    %4 = arith.cmpi ne, %3, %c0_i32_1 : i32
    scf.if %4 {
      %cst = arith.constant 0.000000e+00 : f32
      %16 = vector.broadcast %cst : f32 to vector<80x8xf32>
      %c0 = arith.constant 0 : index
      %c0_8 = arith.constant 0 : index
      %17 = vector.load %arg12[%c0, %c0_8] : memref<80x8xf32, #tpu.memory_space<vmem>>, vector<80x8xf32>
      tpu.vector_store %arg12[%c0, %c0_8], %16 {strides = array<i32>} : memref<80x8xf32, #tpu.memory_space<vmem>>, vector<80x8xf32>,
    } else {
    }
    %c0_i32_2 = arith.constant 0 : i32
    %5 = arith.cmpi eq, %arg1, %c0_i32_2 : i32
    %6 = arith.extui %5 : i1 to i32
    %c0_i32_3 = arith.constant 0 : i32
    %7 = arith.cmpi ne, %6, %c0_i32_3 : i32
    scf.if %7 {
      %c0 = arith.constant 0 : index
      %c0_8 = arith.constant 0 : index
      %c0_9 = arith.constant 0 : index
      %16 = vector.load %arg3[%c0, %c0_8, %c0_9] : memref<1x128x8xbf16, #tpu.memory_space<vmem>>, vector<1x128x8xbf16>
      %17 = vector.shape_cast %16 : vector<1x128x8xbf16> to vector<128x8xbf16>
      %c0_10 = arith.constant 0 : index
      %c0_11 = arith.constant 0 : index
      %18 = vector.load %arg12[%c0_10, %c0_11] : memref<80x8xf32, #tpu.memory_space<vmem>>, vector<80x8xf32>
      %c0_12 = arith.constant 0 : index
      %c0_13 = arith.constant 0 : index
      %19 = vector.load %arg4[%c0_12, %c0_13] : memref<80x128xbf16, #tpu.memory_space<vmem>>, vector<80x128xbf16>
      %cst = arith.constant dense<0.000000e+00> : vector<80x8xf32>
      %20 = tpu.matmul %19, %17, %cst {dimension_numbers = #tpu.dot_dimension_numbers<[1], [0], [0], [1], [0, 0, 1, 1], [], []>} : vector<80x128xbf16>, vector<128x8xbf16>, vector<80x8xf32> -> vector<80x8xf32>
      %21 = arith.addf %18, %20 : vector<80x8xf32>
      %c0_14 = arith.constant 0 : index
      %c0_15 = arith.constant 0 : index
      %22 = vector.load %arg12[%c0_14, %c0_15] : memref<80x8xf32, #tpu.memory_space<vmem>>, vector<80x8xf32>
      tpu.vector_store %arg12[%c0_14, %c0_15], %21 {strides = array<i32>} : memref<80x8xf32, #tpu.memory_space<vmem>>, vector<80x8xf32>,
      %c128_i32 = arith.constant 128 : i32
      %23 = arith.muli %arg2, %c128_i32 : i32
      %24 = tpu.assume_multiple %23, 128 : i32
      %c0_16 = arith.constant 0 : index
      %c0_17 = arith.constant 0 : index
      %25 = vector.load %arg6[%c0_16, %c0_17] : memref<8x4xbf16, #tpu.memory_space<vmem>>, vector<8x4xbf16>
      %cst_18 = arith.constant dense<0.000000e+00> : vector<128x4xf32>
      %26 = tpu.matmul %17, %25, %cst_18 {dimension_numbers = #tpu.dot_dimension_numbers<[1], [0], [0], [1], [0, 0, 1, 1], [], []>} : vector<128x8xbf16>, vector<8x4xbf16>, vector<128x4xf32> -> vector<128x4xf32>
      %27 = arith.index_cast %24 : i32 to index
      %c0_19 = arith.constant 0 : index
      %28 = vector.load %arg14[%27, %c0_19] : memref<256x4xf32, #tpu.memory_space<vmem>>, vector<128x4xf32>
      tpu.vector_store %arg14[%27, %c0_19], %26 {strides = array<i32>} : memref<256x4xf32, #tpu.memory_space<vmem>>, vector<128x4xf32>,
    } else {
    }
    %c0_i32_4 = arith.constant 0 : i32
    %8 = arith.cmpi eq, %arg1, %c0_i32_4 : i32
    %c1_i32 = arith.constant 1 : i32
    %9 = arith.cmpi eq, %arg2, %c1_i32 : i32
    %10 = arith.andi %8, %9 : i1
    %11 = arith.extui %10 : i1 to i32
    %c0_i32_5 = arith.constant 0 : i32
    %12 = arith.cmpi ne, %11, %c0_i32_5 : i32
    scf.if %12 {
      %c0 = arith.constant 0 : index
      %c0_8 = arith.constant 0 : index
      %16 = vector.load %arg12[%c0, %c0_8] : memref<80x8xf32, #tpu.memory_space<vmem>>, vector<80x8xf32>
      %c0_9 = arith.constant 0 : index
      %c0_10 = arith.constant 0 : index
      %17 = vector.load %arg10[%c0_9, %c0_10] : memref<80x1xf32, #tpu.memory_space<vmem>>, vector<80x1xf32>
      %18 = vector.broadcast %17 : vector<80x1xf32> to vector<80x8xf32>
      %19 = arith.mulf %16, %18 : vector<80x8xf32>
      %cst = arith.constant 0.000000e+00 : f32
      %20 = vector.broadcast %cst : f32 to vector<80x4xf32>
      %c0_11 = arith.constant 0 : index
      %c0_12 = arith.constant 0 : index
      %21 = vector.load %arg13[%c0_11, %c0_12] : memref<80x4xf32, #tpu.memory_space<vmem>>, vector<80x4xf32>
      tpu.vector_store %arg13[%c0_11, %c0_12], %20 {strides = array<i32>} : memref<80x4xf32, #tpu.memory_space<vmem>>, vector<80x4xf32>,
      %22 = vector.extract_strided_slice %19 {offsets = [0, 0], sizes = [8, 8], strides = [1, 1]} : vector<80x8xf32> to vector<8x8xf32>
      %c0_13 = arith.constant 0 : index
      %c0_14 = arith.constant 0 : index
      %c0_15 = arith.constant 0 : index
      %23 = vector.load %arg7[%c0_13, %c0_14, %c0_15] : memref<4x8x4xbf16, #tpu.memory_space<vmem>>, vector<1x8x4xbf16>
      %24 = vector.shape_cast %23 : vector<1x8x4xbf16> to vector<8x4xbf16>
      %25 = arith.extf %24 : vector<8x4xbf16> to vector<8x4xf32>
      %cst_16 = arith.constant dense<0.000000e+00> : vector<8x4xf32>
      %26 = tpu.matmul %22, %25, %cst_16 {dimension_numbers = #tpu.dot_dimension_numbers<[1], [0], [0], [1], [0, 0, 1, 1], [], []>} : vector<8x8xf32>, vector<8x4xf32>, vector<8x4xf32> -> vector<8x4xf32>
      %c0_17 = arith.constant 0 : index
      %c0_18 = arith.constant 0 : index
      %c0_19 = arith.constant 0 : index
      %27 = vector.load %arg8[%c0_17, %c0_18, %c0_19] : memref<4x1x4xf32, #tpu.memory_space<vmem>>, vector<1x1x4xf32>
      %28 = vector.shape_cast %27 : vector<1x1x4xf32> to vector<1x4xf32>
      %29 = vector.broadcast %28 : vector<1x4xf32> to vector<8x4xf32>
      %30 = arith.addf %26, %29 : vector<8x4xf32>
      %c0_20 = arith.constant 0 : index
      %c0_21 = arith.constant 0 : index
      %31 = vector.load %arg13[%c0_20, %c0_21] : memref<80x4xf32, #tpu.memory_space<vmem>>, vector<8x4xf32>
      tpu.vector_store %arg13[%c0_20, %c0_21], %30 {strides = array<i32>} : memref<80x4xf32, #tpu.memory_space<vmem>>, vector<8x4xf32>,
      %32 = vector.extract_strided_slice %19 {offsets = [8, 0], sizes = [8, 8], strides = [1, 1]} : vector<80x8xf32> to vector<8x8xf32>
      %c1 = arith.constant 1 : index
      %c0_22 = arith.constant 0 : index
      %c0_23 = arith.constant 0 : index
      %33 = vector.load %arg7[%c1, %c0_22, %c0_23] : memref<4x8x4xbf16, #tpu.memory_space<vmem>>, vector<1x8x4xbf16>
      %34 = vector.shape_cast %33 : vector<1x8x4xbf16> to vector<8x4xbf16>
      %35 = arith.extf %34 : vector<8x4xbf16> to vector<8x4xf32>
      %cst_24 = arith.constant dense<0.000000e+00> : vector<8x4xf32>
      %36 = tpu.matmul %32, %35, %cst_24 {dimension_numbers = #tpu.dot_dimension_numbers<[1], [0], [0], [1], [0, 0, 1, 1], [], []>} : vector<8x8xf32>, vector<8x4xf32>, vector<8x4xf32> -> vector<8x4xf32>
      %c1_25 = arith.constant 1 : index
      %c0_26 = arith.constant 0 : index
      %c0_27 = arith.constant 0 : index
      %37 = vector.load %arg8[%c1_25, %c0_26, %c0_27] : memref<4x1x4xf32, #tpu.memory_space<vmem>>, vector<1x1x4xf32>
      %38 = vector.shape_cast %37 : vector<1x1x4xf32> to vector<1x4xf32>
      %39 = vector.broadcast %38 : vector<1x4xf32> to vector<8x4xf32>
      %40 = arith.addf %36, %39 : vector<8x4xf32>
      %c8 = arith.constant 8 : index
      %c0_28 = arith.constant 0 : index
      %41 = vector.load %arg13[%c8, %c0_28] : memref<80x4xf32, #tpu.memory_space<vmem>>, vector<8x4xf32>
      tpu.vector_store %arg13[%c8, %c0_28], %40 {strides = array<i32>} : memref<80x4xf32, #tpu.memory_space<vmem>>, vector<8x4xf32>,
      %42 = vector.extract_strided_slice %19 {offsets = [16, 0], sizes = [16, 8], strides = [1, 1]} : vector<80x8xf32> to vector<16x8xf32>
      %c2 = arith.constant 2 : index
      %c0_29 = arith.constant 0 : index
      %c0_30 = arith.constant 0 : index
      %43 = vector.load %arg7[%c2, %c0_29, %c0_30] : memref<4x8x4xbf16, #tpu.memory_space<vmem>>, vector<1x8x4xbf16>
      %44 = vector.shape_cast %43 : vector<1x8x4xbf16> to vector<8x4xbf16>
      %45 = arith.extf %44 : vector<8x4xbf16> to vector<8x4xf32>
      %cst_31 = arith.constant dense<0.000000e+00> : vector<16x4xf32>
      %46 = tpu.matmul %42, %45, %cst_31 {dimension_numbers = #tpu.dot_dimension_numbers<[1], [0], [0], [1], [0, 0, 1, 1], [], []>} : vector<16x8xf32>, vector<8x4xf32>, vector<16x4xf32> -> vector<16x4xf32>
      %c2_32 = arith.constant 2 : index
      %c0_33 = arith.constant 0 : index
      %c0_34 = arith.constant 0 : index
      %47 = vector.load %arg8[%c2_32, %c0_33, %c0_34] : memref<4x1x4xf32, #tpu.memory_space<vmem>>, vector<1x1x4xf32>
      %48 = vector.shape_cast %47 : vector<1x1x4xf32> to vector<1x4xf32>
      %49 = vector.broadcast %48 : vector<1x4xf32> to vector<16x4xf32>
      %50 = arith.addf %46, %49 : vector<16x4xf32>
      %c16 = arith.constant 16 : index
      %c0_35 = arith.constant 0 : index
      %51 = vector.load %arg13[%c16, %c0_35] : memref<80x4xf32, #tpu.memory_space<vmem>>, vector<16x4xf32>
      tpu.vector_store %arg13[%c16, %c0_35], %50 {strides = array<i32>} : memref<80x4xf32, #tpu.memory_space<vmem>>, vector<16x4xf32>,
      %52 = vector.extract_strided_slice %19 {offsets = [32, 0], sizes = [40, 8], strides = [1, 1]} : vector<80x8xf32> to vector<40x8xf32>
      %c3 = arith.constant 3 : index
      %c0_36 = arith.constant 0 : index
      %c0_37 = arith.constant 0 : index
      %53 = vector.load %arg7[%c3, %c0_36, %c0_37] : memref<4x8x4xbf16, #tpu.memory_space<vmem>>, vector<1x8x4xbf16>
      %54 = vector.shape_cast %53 : vector<1x8x4xbf16> to vector<8x4xbf16>
      %55 = arith.extf %54 : vector<8x4xbf16> to vector<8x4xf32>
      %cst_38 = arith.constant dense<0.000000e+00> : vector<40x4xf32>
      %56 = tpu.matmul %52, %55, %cst_38 {dimension_numbers = #tpu.dot_dimension_numbers<[1], [0], [0], [1], [0, 0, 1, 1], [], []>} : vector<40x8xf32>, vector<8x4xf32>, vector<40x4xf32> -> vector<40x4xf32>
      %c3_39 = arith.constant 3 : index
      %c0_40 = arith.constant 0 : index
      %c0_41 = arith.constant 0 : index
      %57 = vector.load %arg8[%c3_39, %c0_40, %c0_41] : memref<4x1x4xf32, #tpu.memory_space<vmem>>, vector<1x1x4xf32>
      %58 = vector.shape_cast %57 : vector<1x1x4xf32> to vector<1x4xf32>
      %59 = vector.broadcast %58 : vector<1x4xf32> to vector<40x4xf32>
      %60 = arith.addf %56, %59 : vector<40x4xf32>
      %c32 = arith.constant 32 : index
      %c0_42 = arith.constant 0 : index
      %61 = vector.load %arg13[%c32, %c0_42] : memref<80x4xf32, #tpu.memory_space<vmem>>, vector<40x4xf32>
      tpu.vector_store %arg13[%c32, %c0_42], %60 {strides = array<i32>} : memref<80x4xf32, #tpu.memory_space<vmem>>, vector<40x4xf32>,
    } else {
    }
    %c1_i32_6 = arith.constant 1 : i32
    %13 = arith.cmpi eq, %arg1, %c1_i32_6 : i32
    %14 = arith.extui %13 : i1 to i32
    %c0_i32_7 = arith.constant 0 : i32
    %15 = arith.cmpi ne, %14, %c0_i32_7 : i32
    scf.if %15 {
      %c128_i32 = arith.constant 128 : i32
      %16 = arith.muli %arg2, %c128_i32 : i32
      %17 = tpu.assume_multiple %16, 128 : i32
      %18 = arith.index_cast %17 : i32 to index
      %c0 = arith.constant 0 : index
      %19 = vector.load %arg14[%18, %c0] : memref<256x4xf32, #tpu.memory_space<vmem>>, vector<128x4xf32>
      %c0_8 = arith.constant 0 : index
      %c0_9 = arith.constant 0 : index
      %20 = vector.load %arg5[%c0_8, %c0_9] : memref<128x80xbf16, #tpu.memory_space<vmem>>, vector<128x80xbf16>
      %21 = arith.extf %20 : vector<128x80xbf16> to vector<128x80xf32>
      %c0_10 = arith.constant 0 : index
      %c0_11 = arith.constant 0 : index
      %22 = vector.load %arg13[%c0_10, %c0_11] : memref<80x4xf32, #tpu.memory_space<vmem>>, vector<80x4xf32>
      %cst = arith.constant dense<0.000000e+00> : vector<128x4xf32>
      %23 = tpu.matmul %21, %22, %cst {dimension_numbers = #tpu.dot_dimension_numbers<[1], [0], [0], [1], [0, 0, 1, 1], [], []>} : vector<128x80xf32>, vector<80x4xf32>, vector<128x4xf32> -> vector<128x4xf32>
      %24 = arith.addf %19, %23 : vector<128x4xf32>
      %c0_12 = arith.constant 0 : index
      %c0_13 = arith.constant 0 : index
      %25 = vector.load %arg9[%c0_12, %c0_13] : memref<1x4xf32, #tpu.memory_space<vmem>>, vector<1x4xf32>
      %26 = vector.broadcast %25 : vector<1x4xf32> to vector<128x4xf32>
      %27 = arith.addf %24, %26 : vector<128x4xf32>
      %cst_14 = arith.constant 0.000000e+00 : f32
      %28 = vector.broadcast %cst_14 : f32 to vector<128x4xf32>
      %29 = arith.maximumf %27, %28 : vector<128x4xf32>
      %c0_15 = arith.constant 0 : index
      %c0_16 = arith.constant 0 : index
      %c0_17 = arith.constant 0 : index
      %30 = vector.load %arg11[%c0_15, %c0_16, %c0_17] : memref<1x128x4xf32, #tpu.memory_space<vmem>>, vector<1x128x4xf32>
      %31 = vector.shape_cast %30 : vector<1x128x4xf32> to vector<128x4xf32>
      %32 = vector.shape_cast %29 : vector<128x4xf32> to vector<1x128x4xf32>
      tpu.vector_store %arg11[%c0_15, %c0_16, %c0_17], %32 {strides = array<i32>} : memref<1x128x4xf32, #tpu.memory_space<vmem>>, vector<1x128x4xf32>,
    } else {
    }
    return
  }
  func.func @transform_0(%arg0: i32, %arg1: i32, %arg2: i32) -> (i32, i32, i32) {
    %c1_i32 = arith.constant 1 : i32
    %0 = arith.subi %c1_i32, %arg1 : i32
    %1 = arith.muli %arg2, %0 : i32
    %c1_i32_0 = arith.constant 1 : i32
    %2 = arith.muli %c1_i32_0, %arg1 : i32
    %3 = arith.addi %1, %2 : i32
    %c0_i32 = arith.constant 0 : i32
    %c0_i32_1 = arith.constant 0 : i32
    return %arg0, %3, %c0_i32 : i32, i32, i32
  }
  func.func @transform_1(%arg0: i32, %arg1: i32, %arg2: i32) -> (i32, i32) {
    %c1_i32 = arith.constant 1 : i32
    %0 = arith.subi %c1_i32, %arg1 : i32
    %1 = arith.muli %arg2, %0 : i32
    %c1_i32_0 = arith.constant 1 : i32
    %2 = arith.muli %c1_i32_0, %arg1 : i32
    %3 = arith.addi %1, %2 : i32
    %c0_i32 = arith.constant 0 : i32
    %c0_i32_1 = arith.constant 0 : i32
    return %c0_i32, %3 : i32, i32
  }
  func.func @transform_2(%arg0: i32, %arg1: i32, %arg2: i32) -> (i32, i32) {
    %0 = arith.muli %arg2, %arg1 : i32
    %c1_i32 = arith.constant 1 : i32
    %1 = arith.subi %c1_i32, %arg1 : i32
    %c1_i32_0 = arith.constant 1 : i32
    %2 = arith.muli %c1_i32_0, %1 : i32
    %3 = arith.addi %0, %2 : i32
    %c0_i32 = arith.constant 0 : i32
    %c0_i32_1 = arith.constant 0 : i32
    return %3, %c0_i32 : i32, i32
  }
  func.func @transform_3(%arg0: i32, %arg1: i32, %arg2: i32) -> (i32, i32) {
    %c0_i32 = arith.constant 0 : i32
    %c0_i32_0 = arith.constant 0 : i32
    %c0_i32_1 = arith.constant 0 : i32
    return %c0_i32, %c0_i32_0 : i32, i32
  }
  func.func @transform_4(%arg0: i32, %arg1: i32, %arg2: i32) -> (i32, i32, i32) {
    %c0_i32 = arith.constant 0 : i32
    %c0_i32_0 = arith.constant 0 : i32
    %c0_i32_1 = arith.constant 0 : i32
    %c0_i32_2 = arith.constant 0 : i32
    return %c0_i32, %c0_i32_0, %c0_i32_1 : i32, i32, i32
  }
  func.func @transform_5(%arg0: i32, %arg1: i32, %arg2: i32) -> (i32, i32, i32) {
    %c0_i32 = arith.constant 0 : i32
    %c0_i32_0 = arith.constant 0 : i32
    %c0_i32_1 = arith.constant 0 : i32
    %c0_i32_2 = arith.constant 0 : i32
    return %c0_i32, %c0_i32_0, %c0_i32_1 : i32, i32, i32
  }
  func.func @transform_6(%arg0: i32, %arg1: i32, %arg2: i32) -> (i32, i32) {
    %c0_i32 = arith.constant 0 : i32
    %c0_i32_0 = arith.constant 0 : i32
    %c0_i32_1 = arith.constant 0 : i32
    return %c0_i32, %c0_i32_0 : i32, i32
  }
  func.func @transform_7(%arg0: i32, %arg1: i32, %arg2: i32) -> (i32, i32) {
    %c0_i32 = arith.constant 0 : i32
    %c0_i32_0 = arith.constant 0 : i32
    %c0_i32_1 = arith.constant 0 : i32
    return %c0_i32, %c0_i32_0 : i32, i32
  }
  func.func @transform_8(%arg0: i32, %arg1: i32, %arg2: i32) -> (i32, i32, i32) {
    %0 = arith.muli %arg2, %arg1 : i32
    %c0_i32 = arith.constant 0 : i32
    %c0_i32_0 = arith.constant 0 : i32
    return %arg0, %0, %c0_i32 : i32, i32, i32
  }
}

</mosaic_0001>

<llo_original>
// kernel: tpu_custom_call.1
$region0: #{tpu_custom_call.1}
  #allocation0 [shape = 'u32[]', space=smem, size = 0x4, offset = 0x4, fixed_abs, tag = 'smem constant byte address 0x4 - core index']
  #allocation1 [shape = 'u32[144,128]{1,0:T(1,128)}', space=vmem, size = 0x12000, scoped, tag = 'internal scratch']
  #allocation2 [shape = 'f32[80,8]{1,0:T(8,128)}', space=vmem, size = 0xa000, scoped, tag = 'scratch operand']
  #allocation3 [shape = 'f32[80,4]{1,0:T(8,128)}', space=vmem, size = 0xa000, scoped, tag = 'scratch operand']
  #allocation4 [shape = 'f32[256,4]{1,0:T(8,128)}', space=vmem, size = 0x20000, scoped, tag = 'scratch operand']
  %s0 = inlined_call_operand.vmem [shape: bf16[2,256,8], index: 0, kind: input, shape index: {}]
  %s1 = inlined_call_operand.vmem [shape: bf16[80,256], index: 1, kind: input, shape index: {}]
  %s2 = inlined_call_operand.vmem [shape: bf16[256,80], index: 2, kind: input, shape index: {}]
  %s3 = inlined_call_operand.vmem [shape: bf16[8,4], index: 3, kind: input, shape index: {}]
  %s4 = inlined_call_operand.vmem [shape: bf16[4,8,4], index: 4, kind: input, shape index: {}]
  %s5 = inlined_call_operand.vmem [shape: f32[4,1,4], index: 5, kind: input, shape index: {}]
  %s6 = inlined_call_operand.vmem [shape: f32[1,4], index: 6, kind: input, shape index: {}]
  %s7 = inlined_call_operand.vmem [shape: f32[80,1], index: 7, kind: input, shape index: {}]
  %s8 = inlined_call_operand.vmem [shape: f32[2,256,4], index: 8, kind: output, shape index: {}]
  %s9 = sld [smem:[#allocation0]]
  $region122: #{tpu_custom_call.1} parent=0
    _
  %s11 = ssub.s32 1, %s9
  %s12 = scalar_select 0, %s11, %s9
  $region1: #{tpu_custom_call.1} parent=0
    #allocation5 [shape = 'u8[40960]{0}', space=vmem, size = 0xa000, scoped, tag = 'input window, operand 1']
    loop: start=0, step=1, limit=10
    $region2: #{tpu_custom_call.1} parent=1 // loop_pre_header
      _
    $region3: #{tpu_custom_call.1} parent=1 // loop_header
      %s14 = sphi 0, %s18
      %p15 = scmp.ge.s32.totalorder %s14, 10
      %s21 = sphi 0, %s40
      %s22 = sphi 0, %s36
      %s23 = sphi 0, %s32
      %s24 = sphi 0, %s21
      %s25 = sphi 0, %s22
      %s26 = sphi 0, %s23
      %s27 = sphi 0, %s24
      %s28 = sphi 0, %s25
      %s29 = sphi 0, %s26
      %s51 = sphi 0, %s53
      %s54 = sphi 0, %s51
      %s55 = sphi 0, %s54
      %s71 = sphi 0, %s55
      %s83 = sphi 0, %s85
      %s86 = sphi 0, %s83
      %s87 = sphi 0, %s86
      %s103 = sphi 0, %s87
      %s115 = sphi 0, %s117
      %s118 = sphi 0, %s115
      %s119 = sphi 0, %s118
      %s135 = sphi 0, %s119
      %s139 = sphi 0, %s139
      %s141 = sphi 0, %s139
      %s142 = sphi 0, %s141
      %s156 = sphi 0, %s142
      %s160 = sphi 0, %s160
      %s162 = sphi 0, %s160
      %s163 = sphi 0, %s162
      %s177 = sphi 0, %s163
      %s181 = sphi 0, %s181
      %s183 = sphi 0, %s181
      %s184 = sphi 0, %s183
      %s198 = sphi 0, %s184
      %s202 = sphi 0, %s202
      %s204 = sphi 0, %s202
      %s205 = sphi 0, %s204
      %s219 = sphi 0, %s205
      %s223 = sphi 0, %s223
      %s225 = sphi 0, %s223
      %s226 = sphi 0, %s225
      %s240 = sphi 0, %s226
      %s250 = sphi 0, %s252
      %s253 = sphi 0, %s250
      %s254 = sphi 0, %s253
      %s270 = sphi 0, %s254
    $region4: #{tpu_custom_call.1} parent=1 // loop_header_branch
      %17 = sbr.rel (%p15) target = $region8
    $region5: #{tpu_custom_call.1} parent=1 // loop_body
      %s19 = ssub.s32 %s14, 1
      %s20 = ssub.s32 %s14, 2
      %s30 = sadd.s32 1, %s23
      %p31 = scmp.ge.s32.totalorder %s30, 2
      %s32 = scalar_select %p31, 0, %s30
      %s33 = sadd.s32 1, %s22
      %s34 = scalar_select %p31, %s33, %s22
      %p35 = scmp.ge.s32.totalorder %s34, 2
      %s36 = scalar_select %p35, 0, %s34
      %s37 = sadd.s32 1, %s21
      %s38 = scalar_select %p35, %s37, %s21
      %p39 = scmp.ge.s32.totalorder %s38, 2
      %s40 = scalar_select %p39, 0, %s38
      %s41 = ssub.s32 1, %s22
      %s42 = smul.u32 %s23, %s41
      %s43 = sadd.s32 %s42, %s22
      %s44 = ssub.s32 1, %s36
      %s45 = smul.u32 %s32, %s44
      %s46 = sadd.s32 %s45, %s36
      %s47 = ssub.s32 %s21, %s40
      %s48 = ssub.s32 %s43, %s46
      %s49 = sor.u32 %s47, %s48
      %p50 = scmp.eq.s32.totalorder %s49, 0
      %s52 = sadd.s32 %s51, 1
      %s53 = scalar_select %p50, %s51, %s52
      %p56 = pneg %p50
      %p57 = scmp.eq.s32.totalorder %s14, 7
      %p58 = por %p56, %p57
      %p59 = scmp.ne.s32.totalorder %s51, %s54
      %p60 = scmp.eq.s32.totalorder %s14, 0
      %p61 = por %p59, %p60
      %p62 = scmp.ne.s32.totalorder %s51, %s54
      %p63 = scmp.eq.s32.totalorder %s19, 7
      %p64 = por %p62, %p63
      %p65 = scmp.ne.s32.totalorder %s54, %s55
      %p66 = scmp.eq.s32.totalorder %s19, 0
      %p67 = por %p65, %p66
      %p68 = scmp.ne.s32.totalorder %s54, %s55
      %p69 = scmp.eq.s32.totalorder %s20, 7
      %p70 = por %p68, %p69
      %p72 = scmp.ne.s32.totalorder %s55, %s71
      %p73 = scmp.eq.s32.totalorder %s20, 0
      %p74 = por %p72, %p73
      %s75 = ssub.s32 1, %s22
      %s76 = smul.u32 %s23, %s75
      %s77 = sadd.s32 %s76, %s22
      %s78 = ssub.s32 1, %s36
      %s79 = smul.u32 %s32, %s78
      %s80 = sadd.s32 %s79, %s36
      %s81 = ssub.s32 %s77, %s80
      %p82 = scmp.eq.s32.totalorder %s81, 0
      %s84 = sadd.s32 %s83, 1
      %s85 = scalar_select %p82, %s83, %s84
      %p88 = pneg %p82
      %p89 = scmp.eq.s32.totalorder %s14, 7
      %p90 = por %p88, %p89
      %p91 = scmp.ne.s32.totalorder %s83, %s86
      %p92 = scmp.eq.s32.totalorder %s14, 0
      %p93 = por %p91, %p92
      %p94 = scmp.ne.s32.totalorder %s83, %s86
      %p95 = scmp.eq.s32.totalorder %s19, 7
      %p96 = por %p94, %p95
      %p97 = scmp.ne.s32.totalorder %s86, %s87
      %p98 = scmp.eq.s32.totalorder %s19, 0
      %p99 = por %p97, %p98
      %p100 = scmp.ne.s32.totalorder %s86, %s87
      %p101 = scmp.eq.s32.totalorder %s20, 7
      %p102 = por %p100, %p101
      %p104 = scmp.ne.s32.totalorder %s87, %s103
      %p105 = scmp.eq.s32.totalorder %s20, 0
      %p106 = por %p104, %p105
      %s107 = smul.u32 %s23, %s22
      %s108 = ssub.s32 1, %s22
      %s109 = sadd.s32 %s107, %s108
      %s110 = smul.u32 %s32, %s36
      %s111 = ssub.s32 1, %s36
      %s112 = sadd.s32 %s110, %s111
      %s113 = ssub.s32 %s109, %s112
      %p114 = scmp.eq.s32.totalorder %s113, 0
      %s116 = sadd.s32 %s115, 1
      %s117 = scalar_select %p114, %s115, %s116
      %p120 = pneg %p114
      %p121 = scmp.eq.s32.totalorder %s14, 7
      %p122 = por %p120, %p121
      %p123 = scmp.ne.s32.totalorder %s115, %s118
      %p124 = scmp.eq.s32.totalorder %s14, 0
      %p125 = por %p123, %p124
      %p126 = scmp.ne.s32.totalorder %s115, %s118
      %p127 = scmp.eq.s32.totalorder %s19, 7
      %p128 = por %p126, %p127
      %p129 = scmp.ne.s32.totalorder %s118, %s119
      %p130 = scmp.eq.s32.totalorder %s19, 0
      %p131 = por %p129, %p130
      %p132 = scmp.ne.s32.totalorder %s118, %s119
      %p133 = scmp.eq.s32.totalorder %s20, 7
      %p134 = por %p132, %p133
      %p136 = scmp.ne.s32.totalorder %s119, %s135
      %p137 = scmp.eq.s32.totalorder %s20, 0
      %p138 = por %p136, %p137
      %s140 = sadd.s32 %s139, 1
      %p143 = scmp.eq.s32.totalorder %s14, 7
      %p144 = scmp.ne.s32.totalorder %s139, %s141
      %p145 = scmp.eq.s32.totalorder %s14, 0
      %p146 = por %p144, %p145
      %p147 = scmp.ne.s32.totalorder %s139, %s141
      %p148 = scmp.eq.s32.totalorder %s19, 7
      %p149 = por %p147, %p148
      %p150 = scmp.ne.s32.totalorder %s141, %s142
      %p151 = scmp.eq.s32.totalorder %s19, 0
      %p152 = por %p150, %p151
      %p153 = scmp.ne.s32.totalorder %s141, %s142
      %p154 = scmp.eq.s32.totalorder %s20, 7
      %p155 = por %p153, %p154
      %p157 = scmp.ne.s32.totalorder %s142, %s156
      %p158 = scmp.eq.s32.totalorder %s20, 0
      %p159 = por %p157, %p158
      %s161 = sadd.s32 %s160, 1
      %p164 = scmp.eq.s32.totalorder %s14, 7
      %p165 = scmp.ne.s32.totalorder %s160, %s162
      %p166 = scmp.eq.s32.totalorder %s14, 0
      %p167 = por %p165, %p166
      %p168 = scmp.ne.s32.totalorder %s160, %s162
      %p169 = scmp.eq.s32.totalorder %s19, 7
      %p170 = por %p168, %p169
      %p171 = scmp.ne.s32.totalorder %s162, %s163
      %p172 = scmp.eq.s32.totalorder %s19, 0
      %p173 = por %p171, %p172
      %p174 = scmp.ne.s32.totalorder %s162, %s163
      %p175 = scmp.eq.s32.totalorder %s20, 7
      %p176 = por %p174, %p175
      %p178 = scmp.ne.s32.totalorder %s163, %s177
      %p179 = scmp.eq.s32.totalorder %s20, 0
      %p180 = por %p178, %p179
      %s182 = sadd.s32 %s181, 1
      %p185 = scmp.eq.s32.totalorder %s14, 7
      %p186 = scmp.ne.s32.totalorder %s181, %s183
      %p187 = scmp.eq.s32.totalorder %s14, 0
      %p188 = por %p186, %p187
      %p189 = scmp.ne.s32.totalorder %s181, %s183
      %p190 = scmp.eq.s32.totalorder %s19, 7
      %p191 = por %p189, %p190
      %p192 = scmp.ne.s32.totalorder %s183, %s184
      %p193 = scmp.eq.s32.totalorder %s19, 0
      %p194 = por %p192, %p193
      %p195 = scmp.ne.s32.totalorder %s183, %s184
      %p196 = scmp.eq.s32.totalorder %s20, 7
      %p197 = por %p195, %p196
      %p199 = scmp.ne.s32.totalorder %s184, %s198
      %p200 = scmp.eq.s32.totalorder %s20, 0
      %p201 = por %p199, %p200
      %s203 = sadd.s32 %s202, 1
      %p206 = scmp.eq.s32.totalorder %s14, 7
      %p207 = scmp.ne.s32.totalorder %s202, %s204
      %p208 = scmp.eq.s32.totalorder %s14, 0
      %p209 = por %p207, %p208
      %p210 = scmp.ne.s32.totalorder %s202, %s204
      %p211 = scmp.eq.s32.totalorder %s19, 7
      %p212 = por %p210, %p211
      %p213 = scmp.ne.s32.totalorder %s204, %s205
      %p214 = scmp.eq.s32.totalorder %s19, 0
      %p215 = por %p213, %p214
      %p216 = scmp.ne.s32.totalorder %s204, %s205
      %p217 = scmp.eq.s32.totalorder %s20, 7
      %p218 = por %p216, %p217
      %p220 = scmp.ne.s32.totalorder %s205, %s219
      %p221 = scmp.eq.s32.totalorder %s20, 0
      %p222 = por %p220, %p221
      %s224 = sadd.s32 %s223, 1
      %p227 = scmp.eq.s32.totalorder %s14, 7
      %p228 = scmp.ne.s32.totalorder %s223, %s225
      %p229 = scmp.eq.s32.totalorder %s14, 0
      %p230 = por %p228, %p229
      %p231 = scmp.ne.s32.totalorder %s223, %s225
      %p232 = scmp.eq.s32.totalorder %s19, 7
      %p233 = por %p231, %p232
      %p234 = scmp.ne.s32.totalorder %s225, %s226
      %p235 = scmp.eq.s32.totalorder %s19, 0
      %p236 = por %p234, %p235
      %p237 = scmp.ne.s32.totalorder %s225, %s226
      %p238 = scmp.eq.s32.totalorder %s20, 7
      %p239 = por %p237, %p238
      %p241 = scmp.ne.s32.totalorder %s226, %s240
      %p242 = scmp.eq.s32.totalorder %s20, 0
      %p243 = por %p241, %p242
      %s244 = smul.u32 %s23, %s22
      %s245 = smul.u32 %s32, %s36
      %s246 = ssub.s32 %s21, %s40
      %s247 = ssub.s32 %s244, %s245
      %s248 = sor.u32 %s246, %s247
      %p249 = scmp.eq.s32.totalorder %s248, 0
      %s251 = sadd.s32 %s250, 1
      %s252 = scalar_select %p249, %s250, %s251
      %p255 = pneg %p249
      %p256 = scmp.eq.s32.totalorder %s14, 7
      %p257 = por %p255, %p256
      %p258 = scmp.ne.s32.totalorder %s250, %s253
      %p259 = scmp.eq.s32.totalorder %s14, 0
      %p260 = por %p258, %p259
      %p261 = scmp.ne.s32.totalorder %s250, %s253
      %p262 = scmp.eq.s32.totalorder %s19, 7
      %p263 = por %p261, %p262
      %p264 = scmp.ne.s32.totalorder %s253, %s254
      %p265 = scmp.eq.s32.totalorder %s19, 0
      %p266 = por %p264, %p265
      %p267 = scmp.ne.s32.totalorder %s253, %s254
      %p268 = scmp.eq.s32.totalorder %s20, 7
      %p269 = por %p267, %p268
      %p271 = scmp.ne.s32.totalorder %s254, %s270
      %p272 = scmp.eq.s32.totalorder %s20, 0
      %p273 = por %p271, %p272
      %p274 = scmp.le.s32.totalorder 1, %s14
      %p275 = scmp.lt.s32.totalorder %s14, 9
      %p276 = pnand %p274, %p275
      %p277 = pneg %p276
      // Predicated region
      $region9: #{tpu_custom_call.1} parent=5 // pred_check
        _
      $region10: #{tpu_custom_call.1} parent=5 // pred_check_branch
        %279 = sbr.rel (%p276) target = $region12
      $region11: #{tpu_custom_call.1} parent=5 // pred_region
        %s280 = ssub.s32 %s14, 1
        // Predicated region
        $region13: #{tpu_custom_call.1} parent=11 // pred_check
          %p281 = pneg %p152
        $region14: #{tpu_custom_call.1} parent=11 // pred_check_branch
          %283 = sbr.rel (%p281) target = $region16
        $region15: #{tpu_custom_call.1} parent=11 // pred_region
          _
        $region16: #{tpu_custom_call.1} parent=11 // pred_fallthru
          _
        // Predicated region
        $region17: #{tpu_custom_call.1} parent=11 // pred_check
          %p284 = pneg %p173
        $region18: #{tpu_custom_call.1} parent=11 // pred_check_branch
          %286 = sbr.rel (%p284) target = $region20
        $region19: #{tpu_custom_call.1} parent=11 // pred_region
          _
        $region20: #{tpu_custom_call.1} parent=11 // pred_fallthru
          _
        // Predicated region
        $region21: #{tpu_custom_call.1} parent=11 // pred_check
          %p287 = pneg %p194
        $region22: #{tpu_custom_call.1} parent=11 // pred_check_branch
          %289 = sbr.rel (%p287) target = $region24
        $region23: #{tpu_custom_call.1} parent=11 // pred_region
          _
        $region24: #{tpu_custom_call.1} parent=11 // pred_fallthru
          _
        // Predicated region
        $region25: #{tpu_custom_call.1} parent=11 // pred_check
          %p290 = pneg %p215
        $region26: #{tpu_custom_call.1} parent=11 // pred_check_branch
          %292 = sbr.rel (%p290) target = $region28
        $region27: #{tpu_custom_call.1} parent=11 // pred_region
          _
        $region28: #{tpu_custom_call.1} parent=11 // pred_fallthru
          _
        // Predicated region
        $region29: #{tpu_custom_call.1} parent=11 // pred_check
          %p293 = pneg %p236
        $region30: #{tpu_custom_call.1} parent=11 // pred_check_branch
          %295 = sbr.rel (%p293) target = $region32
        $region31: #{tpu_custom_call.1} parent=11 // pred_region
          _
        $region32: #{tpu_custom_call.1} parent=11 // pred_fallthru
          _
      $region12: #{tpu_custom_call.1} parent=5 // pred_fallthru
        _
      %p296 = scmp.lt.s32.totalorder %s14, 8
      // Predicated region
      $region33: #{tpu_custom_call.1} parent=5 // pred_check
        %p297 = pneg %p296
      $region34: #{tpu_custom_call.1} parent=5 // pred_check_branch
        %299 = sbr.rel (%p297) target = $region36
      $region35: #{tpu_custom_call.1} parent=5 // pred_region
        // Predicated region
        $region37: #{tpu_custom_call.1} parent=35 // pred_check
          %p300 = pneg %p61
        $region38: #{tpu_custom_call.1} parent=35 // pred_check_branch
          %302 = sbr.rel (%p300) target = $region40
        $region39: #{tpu_custom_call.1} parent=35 // pred_region
          %s303 = ssub.s32 1, %s22
          %s304 = smul.u32 %s23, %s303
          %s305 = sadd.s32 %s304, %s22
          %s306 = smul.u32 16, %s305
          %p307 = scmp.lt.s32.totalorder %s21, 1
          %s308 = scalar_select %p307, %s21, 1
          %p309 = scmp.lt.s32.totalorder %s306, 31
          %s310 = scalar_select %p309, %s306, 31
          %s311 = smul.addr %s308, 32
          %s312 = sadd.s32 %s310, %s311
          %s313 = smul.addr %s312, 4
          %s314 = scalar_lea.vmem %s0, %s313
          %s315 = ssub.s32 1, %s22
          %s316 = smul.u32 %s23, %s315
          %s317 = sadd.s32 %s316, %s22
          %s318 = smul.u32 16, %s317
        $region40: #{tpu_custom_call.1} parent=35 // pred_fallthru
          _
        // Predicated region
        $region41: #{tpu_custom_call.1} parent=35 // pred_check
          %p319 = pneg %p93
        $region42: #{tpu_custom_call.1} parent=35 // pred_check_branch
          %321 = sbr.rel (%p319) target = $region44
        $region43: #{tpu_custom_call.1} parent=35 // pred_region
          %s322 = sand.u32 %s83, 1
          %s323 = sand.u32 %s83, 1
          %s324 = smul.addr %s323, 40
          %s325 = scalar_lea.vmem [#allocation5], %s324
          %s326 = ssub.s32 1, %s22
          %s327 = smul.u32 %s23, %s326
          %s328 = sadd.s32 %s327, %s22
          %s329 = smul.addr %s328, 4
          %s330 = scalar_lea.vmem %s1, %s329
          // Predicated region
          $region45: #{tpu_custom_call.1} parent=43 // pred_check
            _
          $region46: #{tpu_custom_call.1} parent=43 // pred_check_branch
            %332 = sbr.rel (0) target = $region48
          $region47: #{tpu_custom_call.1} parent=43 // pred_region
            // Predicated region
            $region49: #{tpu_custom_call.1} parent=47 // pred_check
              _
            $region50: #{tpu_custom_call.1} parent=47 // pred_check_branch
              %334 = sbr.rel target = $region52
            $region51: #{tpu_custom_call.1} parent=47 // pred_region
              // Predicated region
              $region64: #{tpu_custom_call.1} parent=51 // pred_check
                _
              $region65: #{tpu_custom_call.1} parent=51 // pred_check_branch
                %368 = sbr.rel (0) target = $region67
              $region66: #{tpu_custom_call.1} parent=51 // pred_region
                loop: start=0, step=1, limit=1
                $region68: #{tpu_custom_call.1} parent=66 // loop_pre_header
                  _
                $region69: #{tpu_custom_call.1} parent=66 // loop_header
                  %s370 = sphi 0, %s374
                  %p371 = scmp.ge.s32.totalorder %s370, 1
                  %s375 = sphi %s330, %s330
                  %s376 = sphi %s325, %s325
                $region70: #{tpu_custom_call.1} parent=66 // loop_header_branch
                  %373 = sbr.rel (%p371) target = $region74
                $region71: #{tpu_custom_call.1} parent=66 // loop_body
                  _
                $region72: #{tpu_custom_call.1} parent=66 // loop_footer
                  %s374 = sadd.s32 1, %s370
                $region73: #{tpu_custom_call.1} parent=66 // loop_footer_branch
                  %369 = sbr.rel target = $region69
                $region74: #{tpu_custom_call.1} parent=66 // loop_exit
                  _
                %s378 = ssub.s32 16, 1
                loop: start=0, step=1, limit=1
                $region75: #{tpu_custom_call.1} parent=66 // loop_pre_header
                  _
                $region76: #{tpu_custom_call.1} parent=66 // loop_header
                  %s380 = sphi 0, %s384
                  %p381 = scmp.ge.s32.totalorder %s380, 1
                  %s385 = sphi %s330, %s330
                  %s386 = sphi %s325, %s325
                $region77: #{tpu_custom_call.1} parent=66 // loop_header_branch
                  %383 = sbr.rel (%p381) target = $region81
                $region78: #{tpu_custom_call.1} parent=66 // loop_body
                  %v387 = vld [vmem:[%s385] sm:%s378]
                  %388 = vst [vmem:[%s386] sm:%s378] %v387
                  %v389 = vld [vmem:[%s385 + $0x8] sm:%s378]
                  %390 = vst [vmem:[%s386 + $0x4] sm:%s378] %v389
                  %v391 = vld [vmem:[%s385 + $0x10] sm:%s378]
                  %392 = vst [vmem:[%s386 + $0x8] sm:%s378] %v391
                  %v393 = vld [vmem:[%s385 + $0x18] sm:%s378]
                  %394 = vst [vmem:[%s386 + $0xc] sm:%s378] %v393
                  %v395 = vld [vmem:[%s385 + $0x20] sm:%s378]
                  %396 = vst [vmem:[%s386 + $0x10] sm:%s378] %v395
                  %v397 = vld [vmem:[%s385 + $0x28] sm:%s378]
                  %398 = vst [vmem:[%s386 + $0x14] sm:%s378] %v397
                  %v399 = vld [vmem:[%s385 + $0x30] sm:%s378]
                  %400 = vst [vmem:[%s386 + $0x18] sm:%s378] %v399
                  %v401 = vld [vmem:[%s385 + $0x38] sm:%s378]
                  %402 = vst [vmem:[%s386 + $0x1c] sm:%s378] %v401
                  %v403 = vld [vmem:[%s385 + $0x40] sm:%s378]
                  %404 = vst [vmem:[%s386 + $0x20] sm:%s378] %v403
                  %v405 = vld [vmem:[%s385 + $0x48] sm:%s378]
                  %406 = vst [vmem:[%s386 + $0x24] sm:%s378] %v405
                $region79: #{tpu_custom_call.1} parent=66 // loop_footer
                  %s384 = sadd.s32 1, %s380
                $region80: #{tpu_custom_call.1} parent=66 // loop_footer_branch
                  %379 = sbr.rel target = $region76
                $region81: #{tpu_custom_call.1} parent=66 // loop_exit
                  _
              $region67: #{tpu_custom_call.1} parent=51 // pred_fallthru
                _
            $region52: #{tpu_custom_call.1} parent=47 // pred_fallthru
              _
            // Predicated region
            $region53: #{tpu_custom_call.1} parent=47 // pred_check
              _
            $region54: #{tpu_custom_call.1} parent=47 // pred_check_branch
              %336 = sbr.rel (0) target = $region56
            $region55: #{tpu_custom_call.1} parent=47 // pred_region
              %s338 = ssub.s32 16, 1
              loop: start=0, step=1, limit=1
              $region57: #{tpu_custom_call.1} parent=55 // loop_pre_header
                _
              $region58: #{tpu_custom_call.1} parent=55 // loop_header
                %s340 = sphi 0, %s344
                %p341 = scmp.ge.s32.totalorder %s340, 1
                %s345 = sphi %s330, %s330
                %s346 = sphi %s325, %s325
              $region59: #{tpu_custom_call.1} parent=55 // loop_header_branch
                %343 = sbr.rel (%p341) target = $region63
              $region60: #{tpu_custom_call.1} parent=55 // loop_body
                %v347 = vld [vmem:[%s345] sm:%s338]
                %348 = vst [vmem:[%s346] sm:%s338] %v347
                %v349 = vld [vmem:[%s345 + $0x8] sm:%s338]
                %350 = vst [vmem:[%s346 + $0x4] sm:%s338] %v349
                %v351 = vld [vmem:[%s345 + $0x10] sm:%s338]
                %352 = vst [vmem:[%s346 + $0x8] sm:%s338] %v351
                %v353 = vld [vmem:[%s345 + $0x18] sm:%s338]
                %354 = vst [vmem:[%s346 + $0xc] sm:%s338] %v353
                %v355 = vld [vmem:[%s345 + $0x20] sm:%s338]
                %356 = vst [vmem:[%s346 + $0x10] sm:%s338] %v355
                %v357 = vld [vmem:[%s345 + $0x28] sm:%s338]
                %358 = vst [vmem:[%s346 + $0x14] sm:%s338] %v357
                %v359 = vld [vmem:[%s345 + $0x30] sm:%s338]
                %360 = vst [vmem:[%s346 + $0x18] sm:%s338] %v359
                %v361 = vld [vmem:[%s345 + $0x38] sm:%s338]
                %362 = vst [vmem:[%s346 + $0x1c] sm:%s338] %v361
                %v363 = vld [vmem:[%s345 + $0x40] sm:%s338]
                %364 = vst [vmem:[%s346 + $0x20] sm:%s338] %v363
                %v365 = vld [vmem:[%s345 + $0x48] sm:%s338]
                %366 = vst [vmem:[%s346 + $0x24] sm:%s338] %v365
              $region61: #{tpu_custom_call.1} parent=55 // loop_footer
                %s344 = sadd.s32 1, %s340
              $region62: #{tpu_custom_call.1} parent=55 // loop_footer_branch
                %339 = sbr.rel target = $region58
              $region63: #{tpu_custom_call.1} parent=55 // loop_exit
                _
            $region56: #{tpu_custom_call.1} parent=47 // pred_fallthru
              _
          $region48: #{tpu_custom_call.1} parent=43 // pred_fallthru
            _
          %407 = vnop
        $region44: #{tpu_custom_call.1} parent=35 // pred_fallthru
          _
        // Predicated region
        $region82: #{tpu_custom_call.1} parent=35 // pred_check
          %p408 = pneg %p125
        $region83: #{tpu_custom_call.1} parent=35 // pred_check_branch
          %410 = sbr.rel (%p408) target = $region85
        $region84: #{tpu_custom_call.1} parent=35 // pred_region
          %s411 = smul.u32 %s23, %s22
          %s412 = ssub.s32 1, %s22
          %s413 = sadd.s32 %s411, %s412
          %s414 = smul.u32 16, %s413
          %p415 = scmp.lt.s32.totalorder %s414, 31
          %s416 = scalar_select %p415, %s414, 31
          %s417 = smul.addr %s416, 4
          %s418 = scalar_lea.vmem %s2, %s417
          %s419 = smul.u32 %s23, %s22
          %s420 = ssub.s32 1, %s22
          %s421 = sadd.s32 %s419, %s420
          %s422 = smul.u32 16, %s421
        $region85: #{tpu_custom_call.1} parent=35 // pred_fallthru
          _
      $region36: #{tpu_custom_call.1} parent=5 // pred_fallthru
        _
      %p423 = scmp.le.s32.totalorder 1, %s14
      %p424 = scmp.lt.s32.totalorder %s14, 9
      %p425 = pnand %p423, %p424
      %p426 = pneg %p425
      // Predicated region
      $region86: #{tpu_custom_call.1} parent=5 // pred_check
        _
      $region87: #{tpu_custom_call.1} parent=5 // pred_check_branch
        %428 = sbr.rel (%p425) target = $region89
      $region88: #{tpu_custom_call.1} parent=5 // pred_region
        %s429 = ssub.s32 %s14, 1
        %s430 = sand.u32 %s86, 1
        %s431 = sand.u32 %s86, 1
        %s432 = smul.addr %s431, 40
        %s433 = scalar_lea.vmem [#allocation5], %s432
        // Predicated region
        $region90: #{tpu_custom_call.1} parent=88 // pred_check
          %p434 = pneg %p99
        $region91: #{tpu_custom_call.1} parent=88 // pred_check_branch
          %436 = sbr.rel (%p434) target = $region93
        $region92: #{tpu_custom_call.1} parent=88 // pred_region
          _
        $region93: #{tpu_custom_call.1} parent=88 // pred_fallthru
          _
        %s437 = ssub.s32 1, %s25
        %s438 = smul.u32 %s26, %s437
        %s439 = sadd.s32 %s438, %s25
        %s440 = smul.u32 16, %s439
        %p441 = scmp.lt.s32.totalorder %s24, 1
        %s442 = scalar_select %p441, %s24, 1
        %p443 = scmp.lt.s32.totalorder %s440, 31
        %s444 = scalar_select %p443, %s440, 31
        %s445 = smul.addr %s442, 32
        %s446 = sadd.s32 %s444, %s445
        %s447 = smul.addr %s446, 4
        %s448 = scalar_lea.vmem %s0, %s447
        %p449 = pneg %p67
        %p450 = pneg %p64
        %s451 = sand.u32 %s86, 1
        %s452 = sand.u32 %s86, 1
        %s453 = smul.addr %s452, 40
        %s454 = scalar_lea.vmem [#allocation5], %s453
        %p455 = pneg %p99
        %p456 = pneg %p96
        %s457 = smul.u32 %s26, %s25
        %s458 = ssub.s32 1, %s25
        %s459 = sadd.s32 %s457, %s458
        %s460 = smul.u32 16, %s459
        %p461 = scmp.lt.s32.totalorder %s460, 31
        %s462 = scalar_select %p461, %s460, 31
        %s463 = smul.addr %s462, 4
        %s464 = scalar_lea.vmem %s2, %s463
        %p465 = pneg %p131
        %p466 = pneg %p128
        %p467 = pneg %p152
        %p468 = pneg %p149
        %p469 = pneg %p173
        %p470 = pneg %p170
        %p471 = pneg %p194
        %p472 = pneg %p191
        %p473 = pneg %p215
        %p474 = pneg %p212
        %p475 = pneg %p236
        %p476 = pneg %p233
        %p477 = pneg %p266
        %p478 = pneg %p263
        %s479 = smul.u32 %s26, %s25
        %s480 = smul.u32 16, %s479
        %p481 = scmp.lt.s32.totalorder %s24, 1
        %s482 = scalar_select %p481, %s24, 1
        %p483 = scmp.lt.s32.totalorder %s480, 31
        %s484 = scalar_select %p483, %s480, 31
        %s485 = smul.addr %s482, 32
        %s486 = sadd.s32 %s484, %s485
        %s487 = smul.addr %s486, 8
        %s488 = scalar_lea.vmem %s8, %s487
        %s489 = ssub.s32 1, %s25
        %s490 = smul.u32 %s26, %s489
        %s491 = sadd.s32 %s490, %s25
        %s492 = smul.u32 16, %s491
        %p493 = scmp.lt.s32.totalorder %s24, 1
        %s494 = scalar_select %p493, %s24, 1
        %p495 = scmp.lt.s32.totalorder %s492, 31
        %s496 = scalar_select %p495, %s492, 31
        %s497 = smul.addr %s494, 32
        %s498 = sadd.s32 %s496, %s497
        %s499 = smul.addr %s498, 4
        %s500 = scalar_lea.vmem %s0, %s499
        %s501 = ssub.s32 1, %s25
        %s502 = smul.u32 %s26, %s501
        %s503 = sadd.s32 %s502, %s25
        %s504 = smul.u32 16, %s503
        %s505 = ssub.s32 1, %s25
        %s506 = smul.u32 %s26, %s505
        %s507 = sadd.s32 %s506, %s25
        %s508 = smul.u32 %s26, %s25
        %s509 = ssub.s32 1, %s25
        %s510 = sadd.s32 %s508, %s509
        %s511 = smul.u32 16, %s510
        %p512 = scmp.lt.s32.totalorder %s511, 31
        %s513 = scalar_select %p512, %s511, 31
        %s514 = smul.addr %s513, 4
        %s515 = scalar_lea.vmem %s2, %s514
        %s516 = smul.u32 %s26, %s25
        %s517 = ssub.s32 1, %s25
        %s518 = sadd.s32 %s516, %s517
        %s519 = smul.u32 16, %s518
        %s520 = smul.u32 %s26, %s25
        %s521 = smul.u32 16, %s520
        %p522 = scmp.lt.s32.totalorder %s24, 1
        %s523 = scalar_select %p522, %s24, 1
        %p524 = scmp.lt.s32.totalorder %s521, 31
        %s525 = scalar_select %p524, %s521, 31
        %s526 = smul.addr %s523, 32
        %s527 = sadd.s32 %s525, %s526
        %s528 = smul.addr %s527, 8
        %s529 = scalar_lea.vmem %s8, %s528
        %s530 = smul.u32 %s26, %s25
        %s531 = smul.u32 16, %s530
        %p533 = scmp.eq.s32.totalorder %s25, 0
        %p534 = scmp.eq.s32.totalorder %s26, 0
        %p535 = pnand %p533, %p534
        %p536 = pneg %p535
        // Predicated region
        $region94: #{tpu_custom_call.1} parent=88 // pred_check
          _
        $region95: #{tpu_custom_call.1} parent=88 // pred_check_branch
          %538 = sbr.rel (%p535) target = $region97
        $region96: #{tpu_custom_call.1} parent=88 // pred_region
          %vm539 = vcmask 64512
          %540 = vst.msk [vmem:[#allocation2] sm:$0xff] %vm539, 0.0
          %541 = vst.msk [vmem:[#allocation2 + $0x8] sm:$0xff] %vm539, 0.0
          %542 = vst.msk [vmem:[#allocation2 + $0x10] sm:$0xff] %vm539, 0.0
          %543 = vst.msk [vmem:[#allocation2 + $0x18] sm:$0xff] %vm539, 0.0
          %544 = vst.msk [vmem:[#allocation2 + $0x20] sm:$0xff] %vm539, 0.0
          %545 = vst.msk [vmem:[#allocation2 + $0x28] sm:$0xff] %vm539, 0.0
          %546 = vst.msk [vmem:[#allocation2 + $0x30] sm:$0xff] %vm539, 0.0
          %547 = vst.msk [vmem:[#allocation2 + $0x38] sm:$0xff] %vm539, 0.0
          %548 = vst.msk [vmem:[#allocation2 + $0x40] sm:$0xff] %vm539, 0.0
          %549 = vst.msk [vmem:[#allocation2 + $0x48] sm:$0xff] %vm539, 0.0
        $region97: #{tpu_custom_call.1} parent=88 // pred_fallthru
          _
        // Predicated region
        $region98: #{tpu_custom_call.1} parent=88 // pred_check
          %p550 = pneg %p533
        $region99: #{tpu_custom_call.1} parent=88 // pred_check_branch
          %552 = sbr.rel (%p550) target = $region101
        $region100: #{tpu_custom_call.1} parent=88 // pred_region
          %v553 = vld [vmem:[%s500] sm:$0xf]
          %v554 = vld [vmem:[%s500 + $0x4] sm:$0xf]
          %v555 = vld [vmem:[%s500 + $0x8] sm:$0xf]
          %v556 = vld [vmem:[%s500 + $0xc] sm:$0xf]
          %v557 = vld [vmem:[%s500 + $0x10] sm:$0xf]
          %v558 = vld [vmem:[%s500 + $0x14] sm:$0xf]
          %v559 = vld [vmem:[%s500 + $0x18] sm:$0xf]
          %v560 = vld [vmem:[%s500 + $0x1c] sm:$0xf]
          %v561 = vld [vmem:[%s500 + $0x20] sm:$0xf]
          %v562 = vld [vmem:[%s500 + $0x24] sm:$0xf]
          %v563 = vld [vmem:[%s500 + $0x28] sm:$0xf]
          %v564 = vld [vmem:[%s500 + $0x2c] sm:$0xf]
          %v565 = vld [vmem:[%s500 + $0x30] sm:$0xf]
          %v566 = vld [vmem:[%s500 + $0x34] sm:$0xf]
          %v567 = vld [vmem:[%s500 + $0x38] sm:$0xf]
          %v568 = vld [vmem:[%s500 + $0x3c] sm:$0xf]
          %v569 = vld [vmem:[#allocation2] sm:$0xff]
          %v570 = vld [vmem:[#allocation2 + $0x8] sm:$0xff]
          %v571 = vld [vmem:[#allocation2 + $0x10] sm:$0xff]
          %v572 = vld [vmem:[#allocation2 + $0x18] sm:$0xff]
          %v573 = vld [vmem:[#allocation2 + $0x20] sm:$0xff]
          %v574 = vld [vmem:[#allocation2 + $0x28] sm:$0xff]
          %v575 = vld [vmem:[#allocation2 + $0x30] sm:$0xff]
          %v576 = vld [vmem:[#allocation2 + $0x38] sm:$0xff]
          %v577 = vld [vmem:[#allocation2 + $0x40] sm:$0xff]
          %v578 = vld [vmem:[#allocation2 + $0x48] sm:$0xff]
          %v579 = vld [vmem:[%s433] sm:$0xf]
          %v580 = vld [vmem:[%s433 + $0x4] sm:$0xf]
          %v581 = vld [vmem:[%s433 + $0x8] sm:$0xf]
          %v582 = vld [vmem:[%s433 + $0xc] sm:$0xf]
          %v583 = vld [vmem:[%s433 + $0x10] sm:$0xf]
          %v584 = vld [vmem:[%s433 + $0x14] sm:$0xf]
          %v585 = vld [vmem:[%s433 + $0x18] sm:$0xf]
          %v586 = vld [vmem:[%s433 + $0x1c] sm:$0xf]
          %v587 = vld [vmem:[%s433 + $0x20] sm:$0xf]
          %v588 = vld [vmem:[%s433 + $0x24] sm:$0xf]
          %v599 = vunpack.c.l.b16 %v579
          %v600 = vunpack.c.l.b16 %v580
          %v601 = vunpack.c.l.b16 %v581
          %v602 = vunpack.c.l.b16 %v582
          %v603 = vunpack.c.l.b16 %v583
          %v604 = vunpack.c.l.b16 %v584
          %v605 = vunpack.c.l.b16 %v585
          %v606 = vunpack.c.l.b16 %v586
          %v607 = vunpack.c.l.b16 %v587
          %v608 = vunpack.c.l.b16 %v588
          %v609 = vpack.c.b16 %v600, %v599
          %v610 = vpack.c.b16 %v602, %v601
          %v611 = vpack.c.b16 %v604, %v603
          %v612 = vpack.c.b16 %v606, %v605
          %v613 = vpack.c.b16 %v608, %v607
          %v635 = vunpack.c.l.b16 %v553
          %v636 = vunpack.c.l.b16 %v554
          %v637 = vunpack.c.l.b16 %v555
          %v638 = vunpack.c.l.b16 %v556
          %v639 = vunpack.c.l.b16 %v557
          %v640 = vunpack.c.l.b16 %v558
          %v641 = vunpack.c.l.b16 %v559
          %v642 = vunpack.c.l.b16 %v560
          %v643 = vunpack.c.l.b16 %v561
          %v644 = vunpack.c.l.b16 %v562
          %v645 = vunpack.c.l.b16 %v563
          %v646 = vunpack.c.l.b16 %v564
          %v647 = vunpack.c.l.b16 %v565
          %v648 = vunpack.c.l.b16 %v566
          %v649 = vunpack.c.l.b16 %v567
          %v650 = vunpack.c.l.b16 %v568
          %v651 = vpack.c.b16 %v636, %v635
          %v652 = vpack.c.b16 %v638, %v637
          %v653 = vpack.c.b16 %v640, %v639
          %v654 = vpack.c.b16 %v642, %v641
          %v655 = vpack.c.b16 %v644, %v643
          %v656 = vpack.c.b16 %v646, %v645
          %v657 = vpack.c.b16 %v648, %v647
          %v658 = vpack.c.b16 %v650, %v649
          %667 = vmatprep.subr.bf16.mxu0 0
          %668 = vmatpush1.bf16.msra.mxu0 %v658
          %669 = vmatprep.subr.bf16.mxu0 0
          %670 = vmatpush1.bf16.msra.mxu0 %v657
          %671 = vmatprep.subr.bf16.mxu0 0
          %672 = vmatpush1.bf16.msra.mxu0 %v656
          %673 = vmatprep.subr.bf16.mxu0 0
          %674 = vmatpush1.bf16.msra.mxu0 %v655
          %675 = vmatprep.subr.bf16.mxu0 0
          %676 = vmatpush1.bf16.msra.mxu0 %v654
          %677 = vmatprep.subr.bf16.mxu0 0
          %678 = vmatpush1.bf16.msra.mxu0 %v653
          %679 = vmatprep.subr.bf16.mxu0 0
          %680 = vmatpush1.bf16.msra.mxu0 %v652
          %681 = vmatprep.subr.bf16.mxu0 0
          %682 = vmatpush1.bf16.msra.mxu0 %v651
          %683 = vmatprep.subr.bf16.mxu0 0
          %684 = vmatpush2.bf16.msra.mxu0 0
          %685 = vmatprep.subr.bf16.mxu0 0
          %686 = vmatpush2.bf16.msra.mxu0 0
          %687 = vmatprep.subr.bf16.mxu0 0
          %688 = vmatpush2.bf16.msra.mxu0 0
          %689 = vmatprep.subr.bf16.mxu0 0
          %690 = vmatpush2.bf16.msra.mxu0 0
          %691 = vmatprep.subr.bf16.mxu0 0
          %692 = vmatpush2.bf16.msra.mxu0 0
          %693 = vmatprep.subr.bf16.mxu0 0
          %694 = vmatpush2.bf16.msra.mxu0 0
          %695 = vmatprep.subr.bf16.mxu0 0
          %696 = vmatpush2.bf16.msra.mxu0 0
          %697 = vmatprep.subr.bf16.mxu0 0
          %698 = vmatpush2.bf16.msra.mxu0 0
          %699 = vmatprep.mubr.bf16.mxu0 0
          %700 = vmatmul.mubr.bf16.gmra.mxu0 %v609
          %v701 = vpop.f32.mrf.mxu0
          %v702 = vadd.f32 0.0, %v701
          %v703 = vpop.f32.mrf.mxu0
          %v704 = vpop.f32.mrf.mxu0
          %v705 = vadd.f32 0.0, %v704
          %v706 = vpop.f32.mrf.mxu0
          %707 = vmatprep.mubr.bf16.mxu0 0
          %708 = vmatmul.mubr.bf16.gmra.mxu0 %v610
          %v709 = vpop.f32.mrf.mxu0
          %v710 = vadd.f32 0.0, %v709
          %v711 = vpop.f32.mrf.mxu0
          %v712 = vpop.f32.mrf.mxu0
          %v713 = vadd.f32 0.0, %v712
          %v714 = vpop.f32.mrf.mxu0
          %715 = vmatprep.mubr.bf16.mxu0 0
          %716 = vmatmul.mubr.bf16.gmra.mxu0 %v611
          %v717 = vpop.f32.mrf.mxu0
          %v718 = vadd.f32 0.0, %v717
          %v719 = vpop.f32.mrf.mxu0
          %v720 = vpop.f32.mrf.mxu0
          %v721 = vadd.f32 0.0, %v720
          %v722 = vpop.f32.mrf.mxu0
          %723 = vmatprep.mubr.bf16.mxu0 0
          %724 = vmatmul.mubr.bf16.gmra.mxu0 %v612
          %v725 = vpop.f32.mrf.mxu0
          %v726 = vadd.f32 0.0, %v725
          %v727 = vpop.f32.mrf.mxu0
          %v728 = vpop.f32.mrf.mxu0
          %v729 = vadd.f32 0.0, %v728
          %v730 = vpop.f32.mrf.mxu0
          %731 = vmatprep.mubr.bf16.mxu0 0
          %732 = vmatmul.mubr.bf16.gmra.mxu0 %v613
          %v733 = vpop.f32.mrf.mxu0
          %v734 = vadd.f32 0.0, %v733
          %v735 = vpop.f32.mrf.mxu0
          %v736 = vpop.f32.mrf.mxu0
          %v737 = vadd.f32 0.0, %v736
          %v738 = vpop.f32.mrf.mxu0
          %739 = vdwg.mxu0
          %v740 = vadd.f32 %v569, %v702
          %v741 = vadd.f32 %v570, %v705
          %v742 = vadd.f32 %v571, %v710
          %v743 = vadd.f32 %v572, %v713
          %v744 = vadd.f32 %v573, %v718
          %v745 = vadd.f32 %v574, %v721
          %v746 = vadd.f32 %v575, %v726
          %v747 = vadd.f32 %v576, %v729
          %v748 = vadd.f32 %v577, %v734
          %v749 = vadd.f32 %v578, %v737
          %vm750 = vcmask 64512
          %751 = vst.msk [vmem:[#allocation2] sm:$0xff] %vm750, %v740
          %752 = vst.msk [vmem:[#allocation2 + $0x8] sm:$0xff] %vm750, %v741
          %753 = vst.msk [vmem:[#allocation2 + $0x10] sm:$0xff] %vm750, %v742
          %754 = vst.msk [vmem:[#allocation2 + $0x18] sm:$0xff] %vm750, %v743
          %755 = vst.msk [vmem:[#allocation2 + $0x20] sm:$0xff] %vm750, %v744
          %756 = vst.msk [vmem:[#allocation2 + $0x28] sm:$0xff] %vm750, %v745
          %757 = vst.msk [vmem:[#allocation2 + $0x30] sm:$0xff] %vm750, %v746
          %758 = vst.msk [vmem:[#allocation2 + $0x38] sm:$0xff] %vm750, %v747
          %759 = vst.msk [vmem:[#allocation2 + $0x40] sm:$0xff] %vm750, %v748
          %760 = vst.msk [vmem:[#allocation2 + $0x48] sm:$0xff] %vm750, %v749
          %s761 = smul.u32 %s26, 128
          %v762 = vld [vmem:[%s3] sm:$0xf]
          %v764 = vsel %vm750, %v651, 0
          %v767 = vsel %vm750, %v652, 0
          %v770 = vsel %vm750, %v653, 0
          %v773 = vsel %vm750, %v654, 0
          %v776 = vsel %vm750, %v655, 0
          %v779 = vsel %vm750, %v656, 0
          %v782 = vsel %vm750, %v657, 0
          %v785 = vsel %vm750, %v658, 0
          %vm787 = vcmask 1043456
          %v789 = vsel %vm787, %v762, 0
          %791 = vmatprep.subr.bf16.mxu0 0
          %792 = vmatpush1.bf16.msra.mxu0 0
          %793 = vmatprep.subr.bf16.mxu0 0
          %794 = vmatpush1.bf16.msra.mxu0 0
          %795 = vmatprep.subr.bf16.mxu0 0
          %796 = vmatpush1.bf16.msra.mxu0 0
          %797 = vmatprep.subr.bf16.mxu0 0
          %798 = vmatpush1.bf16.msra.mxu0 0
          %799 = vmatprep.subr.bf16.mxu0 0
          %800 = vmatpush1.bf16.msra.mxu0 0
          %801 = vmatprep.subr.bf16.mxu0 0
          %802 = vmatpush1.bf16.msra.mxu0 0
          %803 = vmatprep.subr.bf16.mxu0 0
          %804 = vmatpush1.bf16.msra.mxu0 0
          %805 = vmatprep.subr.bf16.mxu0 0
          %806 = vmatpush1.bf16.msra.mxu0 %v789
          %807 = vmatprep.subr.bf16.mxu0 0
          %808 = vmatpush2.bf16.msra.mxu0 0
          %809 = vmatprep.subr.bf16.mxu0 0
          %810 = vmatpush2.bf16.msra.mxu0 0
          %811 = vmatprep.subr.bf16.mxu0 0
          %812 = vmatpush2.bf16.msra.mxu0 0
          %813 = vmatprep.subr.bf16.mxu0 0
          %814 = vmatpush2.bf16.msra.mxu0 0
          %815 = vmatprep.subr.bf16.mxu0 0
          %816 = vmatpush2.bf16.msra.mxu0 0
          %817 = vmatprep.subr.bf16.mxu0 0
          %818 = vmatpush2.bf16.msra.mxu0 0
          %819 = vmatprep.subr.bf16.mxu0 0
          %820 = vmatpush2.bf16.msra.mxu0 0
          %821 = vmatprep.subr.bf16.mxu0 0
          %822 = vmatpush2.bf16.msra.mxu0 0
          %823 = vmatprep.mubr.bf16.mxu0 0
          %824 = vmatmul.mubr.bf16.gmra.mxu0 %v764
          %v825 = vpop.f32.mrf.mxu0
          %v826 = vadd.f32 0.0, %v825
          %v827 = vpop.f32.mrf.mxu0
          %v828 = vpop.f32.mrf.mxu0
          %v829 = vadd.f32 0.0, %v828
          %v830 = vpop.f32.mrf.mxu0
          %831 = vmatprep.mubr.bf16.mxu0 0
          %832 = vmatmul.mubr.bf16.gmra.mxu0 %v767
          %v833 = vpop.f32.mrf.mxu0
          %v834 = vadd.f32 0.0, %v833
          %v835 = vpop.f32.mrf.mxu0
          %v836 = vpop.f32.mrf.mxu0
          %v837 = vadd.f32 0.0, %v836
          %v838 = vpop.f32.mrf.mxu0
          %839 = vmatprep.mubr.bf16.mxu0 0
          %840 = vmatmul.mubr.bf16.gmra.mxu0 %v770
          %v841 = vpop.f32.mrf.mxu0
          %v842 = vadd.f32 0.0, %v841
          %v843 = vpop.f32.mrf.mxu0
          %v844 = vpop.f32.mrf.mxu0
          %v845 = vadd.f32 0.0, %v844
          %v846 = vpop.f32.mrf.mxu0
          %847 = vmatprep.mubr.bf16.mxu0 0
          %848 = vmatmul.mubr.bf16.gmra.mxu0 %v773
          %v849 = vpop.f32.mrf.mxu0
          %v850 = vadd.f32 0.0, %v849
          %v851 = vpop.f32.mrf.mxu0
          %v852 = vpop.f32.mrf.mxu0
          %v853 = vadd.f32 0.0, %v852
          %v854 = vpop.f32.mrf.mxu0
          %855 = vmatprep.mubr.bf16.mxu0 0
          %856 = vmatmul.mubr.bf16.gmra.mxu0 %v776
          %v857 = vpop.f32.mrf.mxu0
          %v858 = vadd.f32 0.0, %v857
          %v859 = vpop.f32.mrf.mxu0
          %v860 = vpop.f32.mrf.mxu0
          %v861 = vadd.f32 0.0, %v860
          %v862 = vpop.f32.mrf.mxu0
          %863 = vmatprep.mubr.bf16.mxu0 0
          %864 = vmatmul.mubr.bf16.gmra.mxu0 %v779
          %v865 = vpop.f32.mrf.mxu0
          %v866 = vadd.f32 0.0, %v865
          %v867 = vpop.f32.mrf.mxu0
          %v868 = vpop.f32.mrf.mxu0
          %v869 = vadd.f32 0.0, %v868
          %v870 = vpop.f32.mrf.mxu0
          %871 = vmatprep.mubr.bf16.mxu0 0
          %872 = vmatmul.mubr.bf16.gmra.mxu0 %v782
          %v873 = vpop.f32.mrf.mxu0
          %v874 = vadd.f32 0.0, %v873
          %v875 = vpop.f32.mrf.mxu0
          %v876 = vpop.f32.mrf.mxu0
          %v877 = vadd.f32 0.0, %v876
          %v878 = vpop.f32.mrf.mxu0
          %879 = vmatprep.mubr.bf16.mxu0 0
          %880 = vmatmul.mubr.bf16.gmra.mxu0 %v785
          %v881 = vpop.f32.mrf.mxu0
          %v882 = vadd.f32 0.0, %v881
          %v883 = vpop.f32.mrf.mxu0
          %v884 = vpop.f32.mrf.mxu0
          %v885 = vadd.f32 0.0, %v884
          %v886 = vpop.f32.mrf.mxu0
          %887 = vdwg.mxu0
          %s888 = scalar_lea.vmem [#allocation4], %s761
          %vm889 = vcmask 31744
          %890 = vst.msk [vmem:[%s888] sm:$0xff] %vm889, %v826
          %891 = vst.msk [vmem:[%s888 + $0x8] sm:$0xff] %vm889, %v829
          %892 = vst.msk [vmem:[%s888 + $0x10] sm:$0xff] %vm889, %v834
          %893 = vst.msk [vmem:[%s888 + $0x18] sm:$0xff] %vm889, %v837
          %894 = vst.msk [vmem:[%s888 + $0x20] sm:$0xff] %vm889, %v842
          %895 = vst.msk [vmem:[%s888 + $0x28] sm:$0xff] %vm889, %v845
          %896 = vst.msk [vmem:[%s888 + $0x30] sm:$0xff] %vm889, %v850
          %897 = vst.msk [vmem:[%s888 + $0x38] sm:$0xff] %vm889, %v853
          %898 = vst.msk [vmem:[%s888 + $0x40] sm:$0xff] %vm889, %v858
          %899 = vst.msk [vmem:[%s888 + $0x48] sm:$0xff] %vm889, %v861
          %900 = vst.msk [vmem:[%s888 + $0x50] sm:$0xff] %vm889, %v866
          %901 = vst.msk [vmem:[%s888 + $0x58] sm:$0xff] %vm889, %v869
          %902 = vst.msk [vmem:[%s888 + $0x60] sm:$0xff] %vm889, %v874
          %903 = vst.msk [vmem:[%s888 + $0x68] sm:$0xff] %vm889, %v877
          %904 = vst.msk [vmem:[%s888 + $0x70] sm:$0xff] %vm889, %v882
          %905 = vst.msk [vmem:[%s888 + $0x78] sm:$0xff] %vm889, %v885
        $region101: #{tpu_custom_call.1} parent=88 // pred_fallthru
          _
        %p906 = scmp.eq.s32.totalorder %s26, 1
        %p907 = pnand %p533, %p906
        %p908 = pneg %p907
        // Predicated region
        $region102: #{tpu_custom_call.1} parent=88 // pred_check
          _
        $region103: #{tpu_custom_call.1} parent=88 // pred_check_branch
          %910 = sbr.rel (%p907) target = $region105
        $region104: #{tpu_custom_call.1} parent=88 // pred_region
          %v911 = vld [vmem:[#allocation2] sm:$0xff]
          %v912 = vld [vmem:[#allocation2 + $0x8] sm:$0xff]
          %v913 = vld [vmem:[#allocation2 + $0x10] sm:$0xff]
          %v914 = vld [vmem:[#allocation2 + $0x18] sm:$0xff]
          %v915 = vld [vmem:[#allocation2 + $0x20] sm:$0xff]
          %v916 = vld [vmem:[#allocation2 + $0x28] sm:$0xff]
          %v917 = vld [vmem:[#allocation2 + $0x30] sm:$0xff]
          %v918 = vld [vmem:[#allocation2 + $0x38] sm:$0xff]
          %v919 = vld [vmem:[#allocation2 + $0x40] sm:$0xff]
          %v920 = vld [vmem:[%s7] sm:$0xff]
          %v921 = vld [vmem:[%s7 + $0x8] sm:$0xff]
          %v922 = vld [vmem:[%s7 + $0x10] sm:$0xff]
          %v923 = vld [vmem:[%s7 + $0x18] sm:$0xff]
          %v924 = vld [vmem:[%s7 + $0x20] sm:$0xff]
          %v925 = vld [vmem:[%s7 + $0x28] sm:$0xff]
          %v926 = vld [vmem:[%s7 + $0x30] sm:$0xff]
          %v927 = vld [vmem:[%s7 + $0x38] sm:$0xff]
          %v928 = vld [vmem:[%s7 + $0x40] sm:$0xff]
          %930 = vset.pattern.permute.xlu0 0
          %931 = vperm.xlu0 %930, %v920
          %v932 = vpop.permute.xlu0 %931
          %935 = vset.pattern.permute.xlu0 0
          %936 = vperm.xlu0 %935, %v921
          %v937 = vpop.permute.xlu0 %936
          %940 = vset.pattern.permute.xlu0 0
          %941 = vperm.xlu0 %940, %v922
          %v942 = vpop.permute.xlu0 %941
          %945 = vset.pattern.permute.xlu0 0
          %946 = vperm.xlu0 %945, %v923
          %v947 = vpop.permute.xlu0 %946
          %950 = vset.pattern.permute.xlu0 0
          %951 = vperm.xlu0 %950, %v924
          %v952 = vpop.permute.xlu0 %951
          %955 = vset.pattern.permute.xlu0 0
          %956 = vperm.xlu0 %955, %v925
          %v957 = vpop.permute.xlu0 %956
          %960 = vset.pattern.permute.xlu0 0
          %961 = vperm.xlu0 %960, %v926
          %v962 = vpop.permute.xlu0 %961
          %965 = vset.pattern.permute.xlu0 0
          %966 = vperm.xlu0 %965, %v927
          %v967 = vpop.permute.xlu0 %966
          %970 = vset.pattern.permute.xlu0 0
          %971 = vperm.xlu0 %970, %v928
          %v972 = vpop.permute.xlu0 %971
          %v974 = vmul.f32 %v911, %v932
          %v975 = vmul.f32 %v912, %v937
          %v976 = vmul.f32 %v913, %v942
          %v977 = vmul.f32 %v914, %v947
          %v978 = vmul.f32 %v915, %v952
          %v979 = vmul.f32 %v916, %v957
          %v980 = vmul.f32 %v917, %v962
          %v981 = vmul.f32 %v918, %v967
          %v982 = vmul.f32 %v919, %v972
          %vm983 = vcmask 31744
          %984 = vst.msk [vmem:[#allocation3] sm:$0xff] %vm983, 0.0
          %985 = vst.msk [vmem:[#allocation3 + $0x8] sm:$0xff] %vm983, 0.0
          %986 = vst.msk [vmem:[#allocation3 + $0x10] sm:$0xff] %vm983, 0.0
          %987 = vst.msk [vmem:[#allocation3 + $0x18] sm:$0xff] %vm983, 0.0
          %988 = vst.msk [vmem:[#allocation3 + $0x20] sm:$0xff] %vm983, 0.0
          %989 = vst.msk [vmem:[#allocation3 + $0x28] sm:$0xff] %vm983, 0.0
          %990 = vst.msk [vmem:[#allocation3 + $0x30] sm:$0xff] %vm983, 0.0
          %991 = vst.msk [vmem:[#allocation3 + $0x38] sm:$0xff] %vm983, 0.0
          %992 = vst.msk [vmem:[#allocation3 + $0x40] sm:$0xff] %vm983, 0.0
          %993 = vst.msk [vmem:[#allocation3 + $0x48] sm:$0xff] %vm983, 0.0
          %v994 = vld [vmem:[%s4] sm:$0xf]
          %v995 = vunpack.c.l.bf16 %v994
          %v996 = vld [vmem:[%s5] sm:$0x1]
          %v998 = vlaneseq
          %v999 = vshrl.u32 %v998, 7
          %v1000 = vsub.s32 0, %v999
          %v1001 = vrot.slane %v996, %v1000
          %vm1003 = vcmask 64512
          %v1005 = vsel %vm1003, %v974, 0
          %1007 = vmatprep.subr.mxu0 0.0
          %1008 = vmatpush1.msra.mxu0 0.0
          %1009 = vmatprep.subr.mxu0 0.0
          %1010 = vmatpush1.msra.mxu0 0.0
          %1011 = vmatprep.subr.mxu0 0.0
          %1012 = vmatpush1.msra.mxu0 0.0
          %1013 = vmatprep.subr.mxu0 0.0
          %1014 = vmatpush1.msra.mxu0 0.0
          %1015 = vmatprep.subr.mxu0 0.0
          %1016 = vmatpush1.msra.mxu0 0.0
          %1017 = vmatprep.subr.mxu0 0.0
          %1018 = vmatpush1.msra.mxu0 0.0
          %1019 = vmatprep.subr.mxu0 0.0
          %1020 = vmatpush1.msra.mxu0 0.0
          %1021 = vmatprep.subr.mxu0 0.0
          %1022 = vmatpush1.msra.mxu0 0.0
          %1023 = vmatprep.subr.mxu0 0.0
          %1024 = vmatpush1.msra.mxu0 0.0
          %1025 = vmatprep.subr.mxu0 0.0
          %1026 = vmatpush1.msra.mxu0 0.0
          %1027 = vmatprep.subr.mxu0 0.0
          %1028 = vmatpush1.msra.mxu0 0.0
          %1029 = vmatprep.subr.mxu0 0.0
          %1030 = vmatpush1.msra.mxu0 0.0
          %1031 = vmatprep.subr.mxu0 0.0
          %1032 = vmatpush1.msra.mxu0 0.0
          %1033 = vmatprep.subr.mxu0 0.0
          %1034 = vmatpush1.msra.mxu0 0.0
          %1035 = vmatprep.subr.mxu0 0.0
          %1036 = vmatpush1.msra.mxu0 0.0
          %1037 = vmatprep.subr.mxu0 0.0
          %1038 = vmatpush1.msra.mxu0 %v995
          %1039 = vmatprep.subr.mxu0 0.0
          %1040 = vmatpush2.msra.mxu0 0.0
          %1041 = vmatprep.subr.mxu0 0.0
          %1042 = vmatpush2.msra.mxu0 0.0
          %1043 = vmatprep.subr.mxu0 0.0
          %1044 = vmatpush2.msra.mxu0 0.0
          %1045 = vmatprep.subr.mxu0 0.0
          %1046 = vmatpush2.msra.mxu0 0.0
          %1047 = vmatprep.subr.mxu0 0.0
          %1048 = vmatpush2.msra.mxu0 0.0
          %1049 = vmatprep.subr.mxu0 0.0
          %1050 = vmatpush2.msra.mxu0 0.0
          %1051 = vmatprep.subr.mxu0 0.0
          %1052 = vmatpush2.msra.mxu0 0.0
          %1053 = vmatprep.subr.mxu0 0.0
          %1054 = vmatpush2.msra.mxu0 0.0
          %1055 = vmatprep.subr.mxu0 0.0
          %1056 = vmatpush2.msra.mxu0 0.0
          %1057 = vmatprep.subr.mxu0 0.0
          %1058 = vmatpush2.msra.mxu0 0.0
          %1059 = vmatprep.subr.mxu0 0.0
          %1060 = vmatpush2.msra.mxu0 0.0
          %1061 = vmatprep.subr.mxu0 0.0
          %1062 = vmatpush2.msra.mxu0 0.0
          %1063 = vmatprep.subr.mxu0 0.0
          %1064 = vmatpush2.msra.mxu0 0.0
          %1065 = vmatprep.subr.mxu0 0.0
          %1066 = vmatpush2.msra.mxu0 0.0
          %1067 = vmatprep.subr.mxu0 0.0
          %1068 = vmatpush2.msra.mxu0 0.0
          %1069 = vmatprep.subr.mxu0 0.0
          %1070 = vmatpush2.msra.mxu0 0.0
          %1071 = vmatprep.mubr.f32.mxu0 0.0
          %1072 = vmatmul.mubr.f32.gmra.mxu0 %v1005
          %v1073 = vpop.f32.mrf.mxu0
          %v1074 = vadd.f32 %v1001, %v1073
          %v1075 = vpop.f32.mrf.mxu0
          %1076 = vdwg.mxu0
          %1077 = vst.msk [vmem:[#allocation3] sm:$0xff] %vm983, %v1074
          %s1078 = scalar_lea.vmem %s4, 4
          %v1079 = vld [vmem:[%s1078] sm:$0xf]
          %v1080 = vunpack.c.l.bf16 %v1079
          %s1081 = scalar_lea.vmem %s5, 1
          %v1082 = vld [vmem:[%s1081] sm:$0x1]
          %v1084 = vlaneseq
          %v1085 = vshrl.u32 %v1084, 7
          %v1086 = vsub.s32 0, %v1085
          %v1087 = vrot.slane %v1082, %v1086
          %v1090 = vsel %vm1003, %v975, 0
          %1092 = vmatprep.subr.mxu0 0.0
          %1093 = vmatpush1.msra.mxu0 0.0
          %1094 = vmatprep.subr.mxu0 0.0
          %1095 = vmatpush1.msra.mxu0 0.0
          %1096 = vmatprep.subr.mxu0 0.0
          %1097 = vmatpush1.msra.mxu0 0.0
          %1098 = vmatprep.subr.mxu0 0.0
          %1099 = vmatpush1.msra.mxu0 0.0
          %1100 = vmatprep.subr.mxu0 0.0
          %1101 = vmatpush1.msra.mxu0 0.0
          %1102 = vmatprep.subr.mxu0 0.0
          %1103 = vmatpush1.msra.mxu0 0.0
          %1104 = vmatprep.subr.mxu0 0.0
          %1105 = vmatpush1.msra.mxu0 0.0
          %1106 = vmatprep.subr.mxu0 0.0
          %1107 = vmatpush1.msra.mxu0 0.0
          %1108 = vmatprep.subr.mxu0 0.0
          %1109 = vmatpush1.msra.mxu0 0.0
          %1110 = vmatprep.subr.mxu0 0.0
          %1111 = vmatpush1.msra.mxu0 0.0
          %1112 = vmatprep.subr.mxu0 0.0
          %1113 = vmatpush1.msra.mxu0 0.0
          %1114 = vmatprep.subr.mxu0 0.0
          %1115 = vmatpush1.msra.mxu0 0.0
          %1116 = vmatprep.subr.mxu0 0.0
          %1117 = vmatpush1.msra.mxu0 0.0
          %1118 = vmatprep.subr.mxu0 0.0
          %1119 = vmatpush1.msra.mxu0 0.0
          %1120 = vmatprep.subr.mxu0 0.0
          %1121 = vmatpush1.msra.mxu0 0.0
          %1122 = vmatprep.subr.mxu0 0.0
          %1123 = vmatpush1.msra.mxu0 %v1080
          %1124 = vmatprep.subr.mxu0 0.0
          %1125 = vmatpush2.msra.mxu0 0.0
          %1126 = vmatprep.subr.mxu0 0.0
          %1127 = vmatpush2.msra.mxu0 0.0
          %1128 = vmatprep.subr.mxu0 0.0
          %1129 = vmatpush2.msra.mxu0 0.0
          %1130 = vmatprep.subr.mxu0 0.0
          %1131 = vmatpush2.msra.mxu0 0.0
          %1132 = vmatprep.subr.mxu0 0.0
          %1133 = vmatpush2.msra.mxu0 0.0
          %1134 = vmatprep.subr.mxu0 0.0
          %1135 = vmatpush2.msra.mxu0 0.0
          %1136 = vmatprep.subr.mxu0 0.0
          %1137 = vmatpush2.msra.mxu0 0.0
          %1138 = vmatprep.subr.mxu0 0.0
          %1139 = vmatpush2.msra.mxu0 0.0
          %1140 = vmatprep.subr.mxu0 0.0
          %1141 = vmatpush2.msra.mxu0 0.0
          %1142 = vmatprep.subr.mxu0 0.0
          %1143 = vmatpush2.msra.mxu0 0.0
          %1144 = vmatprep.subr.mxu0 0.0
          %1145 = vmatpush2.msra.mxu0 0.0
          %1146 = vmatprep.subr.mxu0 0.0
          %1147 = vmatpush2.msra.mxu0 0.0
          %1148 = vmatprep.subr.mxu0 0.0
          %1149 = vmatpush2.msra.mxu0 0.0
          %1150 = vmatprep.subr.mxu0 0.0
          %1151 = vmatpush2.msra.mxu0 0.0
          %1152 = vmatprep.subr.mxu0 0.0
          %1153 = vmatpush2.msra.mxu0 0.0
          %1154 = vmatprep.subr.mxu0 0.0
          %1155 = vmatpush2.msra.mxu0 0.0
          %1156 = vmatprep.mubr.f32.mxu0 0.0
          %1157 = vmatmul.mubr.f32.gmra.mxu0 %v1090
          %v1158 = vpop.f32.mrf.mxu0
          %v1159 = vadd.f32 %v1087, %v1158
          %v1160 = vpop.f32.mrf.mxu0
          %1161 = vdwg.mxu0
          %1162 = vst.msk [vmem:[#allocation3 + $0x8] sm:$0xff] %vm983, %v1159
          %s1163 = scalar_lea.vmem %s4, 8
          %v1164 = vld [vmem:[%s1163] sm:$0xf]
          %v1165 = vunpack.c.l.bf16 %v1164
          %s1166 = scalar_lea.vmem %s5, 2
          %v1167 = vld [vmem:[%s1166] sm:$0x1]
          %v1169 = vlaneseq
          %v1170 = vshrl.u32 %v1169, 7
          %v1171 = vsub.s32 0, %v1170
          %v1172 = vrot.slane %v1167, %v1171
          %v1175 = vsel %vm1003, %v976, 0
          %v1178 = vsel %vm1003, %v977, 0
          %1180 = vmatprep.subr.mxu0 0.0
          %1181 = vmatpush1.msra.mxu0 0.0
          %1182 = vmatprep.subr.mxu0 0.0
          %1183 = vmatpush1.msra.mxu0 0.0
          %1184 = vmatprep.subr.mxu0 0.0
          %1185 = vmatpush1.msra.mxu0 0.0
          %1186 = vmatprep.subr.mxu0 0.0
          %1187 = vmatpush1.msra.mxu0 0.0
          %1188 = vmatprep.subr.mxu0 0.0
          %1189 = vmatpush1.msra.mxu0 0.0
          %1190 = vmatprep.subr.mxu0 0.0
          %1191 = vmatpush1.msra.mxu0 0.0
          %1192 = vmatprep.subr.mxu0 0.0
          %1193 = vmatpush1.msra.mxu0 0.0
          %1194 = vmatprep.subr.mxu0 0.0
          %1195 = vmatpush1.msra.mxu0 0.0
          %1196 = vmatprep.subr.mxu0 0.0
          %1197 = vmatpush1.msra.mxu0 0.0
          %1198 = vmatprep.subr.mxu0 0.0
          %1199 = vmatpush1.msra.mxu0 0.0
          %1200 = vmatprep.subr.mxu0 0.0
          %1201 = vmatpush1.msra.mxu0 0.0
          %1202 = vmatprep.subr.mxu0 0.0
          %1203 = vmatpush1.msra.mxu0 0.0
          %1204 = vmatprep.subr.mxu0 0.0
          %1205 = vmatpush1.msra.mxu0 0.0
          %1206 = vmatprep.subr.mxu0 0.0
          %1207 = vmatpush1.msra.mxu0 0.0
          %1208 = vmatprep.subr.mxu0 0.0
          %1209 = vmatpush1.msra.mxu0 0.0
          %1210 = vmatprep.subr.mxu0 0.0
          %1211 = vmatpush1.msra.mxu0 %v1165
          %1212 = vmatprep.subr.mxu0 0.0
          %1213 = vmatpush2.msra.mxu0 0.0
          %1214 = vmatprep.subr.mxu0 0.0
          %1215 = vmatpush2.msra.mxu0 0.0
          %1216 = vmatprep.subr.mxu0 0.0
          %1217 = vmatpush2.msra.mxu0 0.0
          %1218 = vmatprep.subr.mxu0 0.0
          %1219 = vmatpush2.msra.mxu0 0.0
          %1220 = vmatprep.subr.mxu0 0.0
          %1221 = vmatpush2.msra.mxu0 0.0
          %1222 = vmatprep.subr.mxu0 0.0
          %1223 = vmatpush2.msra.mxu0 0.0
          %1224 = vmatprep.subr.mxu0 0.0
          %1225 = vmatpush2.msra.mxu0 0.0
          %1226 = vmatprep.subr.mxu0 0.0
          %1227 = vmatpush2.msra.mxu0 0.0
          %1228 = vmatprep.subr.mxu0 0.0
          %1229 = vmatpush2.msra.mxu0 0.0
          %1230 = vmatprep.subr.mxu0 0.0
          %1231 = vmatpush2.msra.mxu0 0.0
          %1232 = vmatprep.subr.mxu0 0.0
          %1233 = vmatpush2.msra.mxu0 0.0
          %1234 = vmatprep.subr.mxu0 0.0
          %1235 = vmatpush2.msra.mxu0 0.0
          %1236 = vmatprep.subr.mxu0 0.0
          %1237 = vmatpush2.msra.mxu0 0.0
          %1238 = vmatprep.subr.mxu0 0.0
          %1239 = vmatpush2.msra.mxu0 0.0
          %1240 = vmatprep.subr.mxu0 0.0
          %1241 = vmatpush2.msra.mxu0 0.0
          %1242 = vmatprep.subr.mxu0 0.0
          %1243 = vmatpush2.msra.mxu0 0.0
          %1244 = vmatprep.mubr.f32.mxu0 0.0
          %1245 = vmatmul.mubr.f32.gmra.mxu0 %v1175
          %v1246 = vpop.f32.mrf.mxu0
          %v1247 = vadd.f32 %v1172, %v1246
          %v1248 = vpop.f32.mrf.mxu0
          %1249 = vmatprep.mubr.f32.mxu0 0.0
          %1250 = vmatmul.mubr.f32.gmra.mxu0 %v1178
          %v1251 = vpop.f32.mrf.mxu0
          %v1252 = vadd.f32 %v1172, %v1251
          %v1253 = vpop.f32.mrf.mxu0
          %1254 = vdwg.mxu0
          %1255 = vst.msk [vmem:[#allocation3 + $0x10] sm:$0xff] %vm983, %v1247
          %1256 = vst.msk [vmem:[#allocation3 + $0x18] sm:$0xff] %vm983, %v1252
          %s1257 = scalar_lea.vmem %s4, 12
          %v1258 = vld [vmem:[%s1257] sm:$0xf]
          %v1259 = vunpack.c.l.bf16 %v1258
          %s1260 = scalar_lea.vmem %s5, 3
          %v1261 = vld [vmem:[%s1260] sm:$0x1]
          %v1263 = vlaneseq
          %v1264 = vshrl.u32 %v1263, 7
          %v1265 = vsub.s32 0, %v1264
          %v1266 = vrot.slane %v1261, %v1265
          %v1269 = vsel %vm1003, %v978, 0
          %v1272 = vsel %vm1003, %v979, 0
          %v1275 = vsel %vm1003, %v980, 0
          %v1278 = vsel %vm1003, %v981, 0
          %v1281 = vsel %vm1003, %v982, 0
          %1283 = vmatprep.subr.mxu0 0.0
          %1284 = vmatpush1.msra.mxu0 0.0
          %1285 = vmatprep.subr.mxu0 0.0
          %1286 = vmatpush1.msra.mxu0 0.0
          %1287 = vmatprep.subr.mxu0 0.0
          %1288 = vmatpush1.msra.mxu0 0.0
          %1289 = vmatprep.subr.mxu0 0.0
          %1290 = vmatpush1.msra.mxu0 0.0
          %1291 = vmatprep.subr.mxu0 0.0
          %1292 = vmatpush1.msra.mxu0 0.0
          %1293 = vmatprep.subr.mxu0 0.0
          %1294 = vmatpush1.msra.mxu0 0.0
          %1295 = vmatprep.subr.mxu0 0.0
          %1296 = vmatpush1.msra.mxu0 0.0
          %1297 = vmatprep.subr.mxu0 0.0
          %1298 = vmatpush1.msra.mxu0 0.0
          %1299 = vmatprep.subr.mxu0 0.0
          %1300 = vmatpush1.msra.mxu0 0.0
          %1301 = vmatprep.subr.mxu0 0.0
          %1302 = vmatpush1.msra.mxu0 0.0
          %1303 = vmatprep.subr.mxu0 0.0
          %1304 = vmatpush1.msra.mxu0 0.0
          %1305 = vmatprep.subr.mxu0 0.0
          %1306 = vmatpush1.msra.mxu0 0.0
          %1307 = vmatprep.subr.mxu0 0.0
          %1308 = vmatpush1.msra.mxu0 0.0
          %1309 = vmatprep.subr.mxu0 0.0
          %1310 = vmatpush1.msra.mxu0 0.0
          %1311 = vmatprep.subr.mxu0 0.0
          %1312 = vmatpush1.msra.mxu0 0.0
          %1313 = vmatprep.subr.mxu0 0.0
          %1314 = vmatpush1.msra.mxu0 %v1259
          %1315 = vmatprep.subr.mxu0 0.0
          %1316 = vmatpush2.msra.mxu0 0.0
          %1317 = vmatprep.subr.mxu0 0.0
          %1318 = vmatpush2.msra.mxu0 0.0
          %1319 = vmatprep.subr.mxu0 0.0
          %1320 = vmatpush2.msra.mxu0 0.0
          %1321 = vmatprep.subr.mxu0 0.0
          %1322 = vmatpush2.msra.mxu0 0.0
          %1323 = vmatprep.subr.mxu0 0.0
          %1324 = vmatpush2.msra.mxu0 0.0
          %1325 = vmatprep.subr.mxu0 0.0
          %1326 = vmatpush2.msra.mxu0 0.0
          %1327 = vmatprep.subr.mxu0 0.0
          %1328 = vmatpush2.msra.mxu0 0.0
          %1329 = vmatprep.subr.mxu0 0.0
          %1330 = vmatpush2.msra.mxu0 0.0
          %1331 = vmatprep.subr.mxu0 0.0
          %1332 = vmatpush2.msra.mxu0 0.0
          %1333 = vmatprep.subr.mxu0 0.0
          %1334 = vmatpush2.msra.mxu0 0.0
          %1335 = vmatprep.subr.mxu0 0.0
          %1336 = vmatpush2.msra.mxu0 0.0
          %1337 = vmatprep.subr.mxu0 0.0
          %1338 = vmatpush2.msra.mxu0 0.0
          %1339 = vmatprep.subr.mxu0 0.0
          %1340 = vmatpush2.msra.mxu0 0.0
          %1341 = vmatprep.subr.mxu0 0.0
          %1342 = vmatpush2.msra.mxu0 0.0
          %1343 = vmatprep.subr.mxu0 0.0
          %1344 = vmatpush2.msra.mxu0 0.0
          %1345 = vmatprep.subr.mxu0 0.0
          %1346 = vmatpush2.msra.mxu0 0.0
          %1347 = vmatprep.mubr.f32.mxu0 0.0
          %1348 = vmatmul.mubr.f32.gmra.mxu0 %v1269
          %v1349 = vpop.f32.mrf.mxu0
          %v1350 = vadd.f32 %v1266, %v1349
          %v1351 = vpop.f32.mrf.mxu0
          %1352 = vmatprep.mubr.f32.mxu0 0.0
          %1353 = vmatmul.mubr.f32.gmra.mxu0 %v1272
          %v1354 = vpop.f32.mrf.mxu0
          %v1355 = vadd.f32 %v1266, %v1354
          %v1356 = vpop.f32.mrf.mxu0
          %1357 = vmatprep.mubr.f32.mxu0 0.0
          %1358 = vmatmul.mubr.f32.gmra.mxu0 %v1275
          %v1359 = vpop.f32.mrf.mxu0
          %v1360 = vadd.f32 %v1266, %v1359
          %v1361 = vpop.f32.mrf.mxu0
          %1362 = vmatprep.mubr.f32.mxu0 0.0
          %1363 = vmatmul.mubr.f32.gmra.mxu0 %v1278
          %v1364 = vpop.f32.mrf.mxu0
          %v1365 = vadd.f32 %v1266, %v1364
          %v1366 = vpop.f32.mrf.mxu0
          %1367 = vmatprep.mubr.f32.mxu0 0.0
          %1368 = vmatmul.mubr.f32.gmra.mxu0 %v1281
          %v1369 = vpop.f32.mrf.mxu0
          %v1370 = vadd.f32 %v1266, %v1369
          %v1371 = vpop.f32.mrf.mxu0
          %1372 = vdwg.mxu0
          %1373 = vst.msk [vmem:[#allocation3 + $0x20] sm:$0xff] %vm983, %v1350
          %1374 = vst.msk [vmem:[#allocation3 + $0x28] sm:$0xff] %vm983, %v1355
          %1375 = vst.msk [vmem:[#allocation3 + $0x30] sm:$0xff] %vm983, %v1360
          %1376 = vst.msk [vmem:[#allocation3 + $0x38] sm:$0xff] %vm983, %v1365
          %1377 = vst.msk [vmem:[#allocation3 + $0x40] sm:$0xff] %vm983, %v1370
        $region105: #{tpu_custom_call.1} parent=88 // pred_fallthru
          _
        %p1378 = scmp.eq.s32.totalorder %s25, 1
        // Predicated region
        $region106: #{tpu_custom_call.1} parent=88 // pred_check
          %p1379 = pneg %p1378
        $region107: #{tpu_custom_call.1} parent=88 // pred_check_branch
          %1381 = sbr.rel (%p1379) target = $region109
        $region108: #{tpu_custom_call.1} parent=88 // pred_region
          %s1382 = smul.u32 %s26, 128
          %s1383 = scalar_lea.vmem [#allocation4], %s1382
          %v1384 = vld [vmem:[%s1383] sm:$0xff]
          %v1385 = vld [vmem:[%s1383 + $0x8] sm:$0xff]
          %v1386 = vld [vmem:[%s1383 + $0x10] sm:$0xff]
          %v1387 = vld [vmem:[%s1383 + $0x18] sm:$0xff]
          %v1388 = vld [vmem:[%s1383 + $0x20] sm:$0xff]
          %v1389 = vld [vmem:[%s1383 + $0x28] sm:$0xff]
          %v1390 = vld [vmem:[%s1383 + $0x30] sm:$0xff]
          %v1391 = vld [vmem:[%s1383 + $0x38] sm:$0xff]
          %v1392 = vld [vmem:[%s1383 + $0x40] sm:$0xff]
          %v1393 = vld [vmem:[%s1383 + $0x48] sm:$0xff]
          %v1394 = vld [vmem:[%s1383 + $0x50] sm:$0xff]
          %v1395 = vld [vmem:[%s1383 + $0x58] sm:$0xff]
          %v1396 = vld [vmem:[%s1383 + $0x60] sm:$0xff]
          %v1397 = vld [vmem:[%s1383 + $0x68] sm:$0xff]
          %v1398 = vld [vmem:[%s1383 + $0x70] sm:$0xff]
          %v1399 = vld [vmem:[%s1383 + $0x78] sm:$0xff]
          %v1400 = vld [vmem:[%s515] sm:$0xf]
          %v1401 = vld [vmem:[%s515 + $0x4] sm:$0xf]
          %v1402 = vld [vmem:[%s515 + $0x8] sm:$0xf]
          %v1403 = vld [vmem:[%s515 + $0xc] sm:$0xf]
          %v1404 = vld [vmem:[%s515 + $0x10] sm:$0xf]
          %v1405 = vld [vmem:[%s515 + $0x14] sm:$0xf]
          %v1406 = vld [vmem:[%s515 + $0x18] sm:$0xf]
          %v1407 = vld [vmem:[%s515 + $0x1c] sm:$0xf]
          %v1408 = vld [vmem:[%s515 + $0x20] sm:$0xf]
          %v1409 = vld [vmem:[%s515 + $0x24] sm:$0xf]
          %v1410 = vld [vmem:[%s515 + $0x28] sm:$0xf]
          %v1411 = vld [vmem:[%s515 + $0x2c] sm:$0xf]
          %v1412 = vld [vmem:[%s515 + $0x30] sm:$0xf]
          %v1413 = vld [vmem:[%s515 + $0x34] sm:$0xf]
          %v1414 = vld [vmem:[%s515 + $0x38] sm:$0xf]
          %v1415 = vld [vmem:[%s515 + $0x3c] sm:$0xf]
          %v1416 = vunpack.c.l.bf16 %v1400
          %v1417 = vunpack.c.l.bf16 %v1401
          %v1418 = vunpack.c.l.bf16 %v1402
          %v1419 = vunpack.c.l.bf16 %v1403
          %v1420 = vunpack.c.l.bf16 %v1404
          %v1421 = vunpack.c.l.bf16 %v1405
          %v1422 = vunpack.c.l.bf16 %v1406
          %v1423 = vunpack.c.l.bf16 %v1407
          %v1424 = vunpack.c.l.bf16 %v1408
          %v1425 = vunpack.c.l.bf16 %v1409
          %v1426 = vunpack.c.l.bf16 %v1410
          %v1427 = vunpack.c.l.bf16 %v1411
          %v1428 = vunpack.c.l.bf16 %v1412
          %v1429 = vunpack.c.l.bf16 %v1413
          %v1430 = vunpack.c.l.bf16 %v1414
          %v1431 = vunpack.c.l.bf16 %v1415
          %v1432 = vld [vmem:[#allocation3] sm:$0xff]
          %v1433 = vld [vmem:[#allocation3 + $0x8] sm:$0xff]
          %v1434 = vld [vmem:[#allocation3 + $0x10] sm:$0xff]
          %v1435 = vld [vmem:[#allocation3 + $0x18] sm:$0xff]
          %v1436 = vld [vmem:[#allocation3 + $0x20] sm:$0xff]
          %v1437 = vld [vmem:[#allocation3 + $0x28] sm:$0xff]
          %v1438 = vld [vmem:[#allocation3 + $0x30] sm:$0xff]
          %v1439 = vld [vmem:[#allocation3 + $0x38] sm:$0xff]
          %v1440 = vld [vmem:[#allocation3 + $0x40] sm:$0xff]
          %v1441 = vld [vmem:[#allocation3 + $0x48] sm:$0xff]
          %vm1442 = vcmask 654336
          %v1444 = vsel %vm1442, %v1416, 0
          %v1447 = vsel %vm1442, %v1417, 0
          %v1450 = vsel %vm1442, %v1418, 0
          %v1453 = vsel %vm1442, %v1419, 0
          %v1456 = vsel %vm1442, %v1420, 0
          %v1459 = vsel %vm1442, %v1421, 0
          %v1462 = vsel %vm1442, %v1422, 0
          %v1465 = vsel %vm1442, %v1423, 0
          %v1468 = vsel %vm1442, %v1424, 0
          %v1471 = vsel %vm1442, %v1425, 0
          %v1474 = vsel %vm1442, %v1426, 0
          %v1477 = vsel %vm1442, %v1427, 0
          %v1480 = vsel %vm1442, %v1428, 0
          %v1483 = vsel %vm1442, %v1429, 0
          %v1486 = vsel %vm1442, %v1430, 0
          %v1489 = vsel %vm1442, %v1431, 0
          %1491 = vmatprep.subr.mxu0 0.0
          %1492 = vmatpush1.msra.mxu0 0.0
          %1493 = vmatprep.subr.mxu0 0.0
          %1494 = vmatpush1.msra.mxu0 0.0
          %1495 = vmatprep.subr.mxu0 0.0
          %1496 = vmatpush1.msra.mxu0 0.0
          %1497 = vmatprep.subr.mxu0 0.0
          %1498 = vmatpush1.msra.mxu0 0.0
          %1499 = vmatprep.subr.mxu0 0.0
          %1500 = vmatpush1.msra.mxu0 0.0
          %1501 = vmatprep.subr.mxu0 0.0
          %1502 = vmatpush1.msra.mxu0 0.0
          %1503 = vmatprep.subr.mxu0 0.0
          %1504 = vmatpush1.msra.mxu0 %v1441
          %1505 = vmatprep.subr.mxu0 0.0
          %1506 = vmatpush1.msra.mxu0 %v1440
          %1507 = vmatprep.subr.mxu0 0.0
          %1508 = vmatpush1.msra.mxu0 %v1439
          %1509 = vmatprep.subr.mxu0 0.0
          %1510 = vmatpush1.msra.mxu0 %v1438
          %1511 = vmatprep.subr.mxu0 0.0
          %1512 = vmatpush1.msra.mxu0 %v1437
          %1513 = vmatprep.subr.mxu0 0.0
          %1514 = vmatpush1.msra.mxu0 %v1436
          %1515 = vmatprep.subr.mxu0 0.0
          %1516 = vmatpush1.msra.mxu0 %v1435
          %1517 = vmatprep.subr.mxu0 0.0
          %1518 = vmatpush1.msra.mxu0 %v1434
          %1519 = vmatprep.subr.mxu0 0.0
          %1520 = vmatpush1.msra.mxu0 %v1433
          %1521 = vmatprep.subr.mxu0 0.0
          %1522 = vmatpush1.msra.mxu0 %v1432
          %1523 = vmatprep.subr.mxu0 0.0
          %1524 = vmatpush2.msra.mxu0 0.0
          %1525 = vmatprep.subr.mxu0 0.0
          %1526 = vmatpush2.msra.mxu0 0.0
          %1527 = vmatprep.subr.mxu0 0.0
          %1528 = vmatpush2.msra.mxu0 0.0
          %1529 = vmatprep.subr.mxu0 0.0
          %1530 = vmatpush2.msra.mxu0 0.0
          %1531 = vmatprep.subr.mxu0 0.0
          %1532 = vmatpush2.msra.mxu0 0.0
          %1533 = vmatprep.subr.mxu0 0.0
          %1534 = vmatpush2.msra.mxu0 0.0
          %1535 = vmatprep.subr.mxu0 0.0
          %1536 = vmatpush2.msra.mxu0 0.0
          %1537 = vmatprep.subr.mxu0 0.0
          %1538 = vmatpush2.msra.mxu0 0.0
          %1539 = vmatprep.subr.mxu0 0.0
          %1540 = vmatpush2.msra.mxu0 0.0
          %1541 = vmatprep.subr.mxu0 0.0
          %1542 = vmatpush2.msra.mxu0 0.0
          %1543 = vmatprep.subr.mxu0 0.0
          %1544 = vmatpush2.msra.mxu0 0.0
          %1545 = vmatprep.subr.mxu0 0.0
          %1546 = vmatpush2.msra.mxu0 0.0
          %1547 = vmatprep.subr.mxu0 0.0
          %1548 = vmatpush2.msra.mxu0 0.0
          %1549 = vmatprep.subr.mxu0 0.0
          %1550 = vmatpush2.msra.mxu0 0.0
          %1551 = vmatprep.subr.mxu0 0.0
          %1552 = vmatpush2.msra.mxu0 0.0
          %1553 = vmatprep.subr.mxu0 0.0
          %1554 = vmatpush2.msra.mxu0 0.0
          %1555 = vmatprep.mubr.f32.mxu0 0.0
          %1556 = vmatmul.mubr.f32.gmra.mxu0 %v1444
          %v1557 = vpop.f32.mrf.mxu0
          %v1558 = vadd.f32 0.0, %v1557
          %v1559 = vpop.f32.mrf.mxu0
          %1560 = vmatprep.mubr.f32.mxu0 0.0
          %1561 = vmatmul.mubr.f32.gmra.mxu0 %v1447
          %v1562 = vpop.f32.mrf.mxu0
          %v1563 = vadd.f32 0.0, %v1562
          %v1564 = vpop.f32.mrf.mxu0
          %1565 = vmatprep.mubr.f32.mxu0 0.0
          %1566 = vmatmul.mubr.f32.gmra.mxu0 %v1450
          %v1567 = vpop.f32.mrf.mxu0
          %v1568 = vadd.f32 0.0, %v1567
          %v1569 = vpop.f32.mrf.mxu0
          %1570 = vmatprep.mubr.f32.mxu0 0.0
          %1571 = vmatmul.mubr.f32.gmra.mxu0 %v1453
          %v1572 = vpop.f32.mrf.mxu0
          %v1573 = vadd.f32 0.0, %v1572
          %v1574 = vpop.f32.mrf.mxu0
          %1575 = vmatprep.mubr.f32.mxu0 0.0
          %1576 = vmatmul.mubr.f32.gmra.mxu0 %v1456
          %v1577 = vpop.f32.mrf.mxu0
          %v1578 = vadd.f32 0.0, %v1577
          %v1579 = vpop.f32.mrf.mxu0
          %1580 = vmatprep.mubr.f32.mxu0 0.0
          %1581 = vmatmul.mubr.f32.gmra.mxu0 %v1459
          %v1582 = vpop.f32.mrf.mxu0
          %v1583 = vadd.f32 0.0, %v1582
          %v1584 = vpop.f32.mrf.mxu0
          %1585 = vmatprep.mubr.f32.mxu0 0.0
          %1586 = vmatmul.mubr.f32.gmra.mxu0 %v1462
          %v1587 = vpop.f32.mrf.mxu0
          %v1588 = vadd.f32 0.0, %v1587
          %v1589 = vpop.f32.mrf.mxu0
          %1590 = vmatprep.mubr.f32.mxu0 0.0
          %1591 = vmatmul.mubr.f32.gmra.mxu0 %v1465
          %v1592 = vpop.f32.mrf.mxu0
          %v1593 = vadd.f32 0.0, %v1592
          %v1594 = vpop.f32.mrf.mxu0
          %1595 = vmatprep.mubr.f32.mxu0 0.0
          %1596 = vmatmul.mubr.f32.gmra.mxu0 %v1468
          %v1597 = vpop.f32.mrf.mxu0
          %v1598 = vadd.f32 0.0, %v1597
          %v1599 = vpop.f32.mrf.mxu0
          %1600 = vmatprep.mubr.f32.mxu0 0.0
          %1601 = vmatmul.mubr.f32.gmra.mxu0 %v1471
          %v1602 = vpop.f32.mrf.mxu0
          %v1603 = vadd.f32 0.0, %v1602
          %v1604 = vpop.f32.mrf.mxu0
          %1605 = vmatprep.mubr.f32.mxu0 0.0
          %1606 = vmatmul.mubr.f32.gmra.mxu0 %v1474
          %v1607 = vpop.f32.mrf.mxu0
          %v1608 = vadd.f32 0.0, %v1607
          %v1609 = vpop.f32.mrf.mxu0
          %1610 = vmatprep.mubr.f32.mxu0 0.0
          %1611 = vmatmul.mubr.f32.gmra.mxu0 %v1477
          %v1612 = vpop.f32.mrf.mxu0
          %v1613 = vadd.f32 0.0, %v1612
          %v1614 = vpop.f32.mrf.mxu0
          %1615 = vmatprep.mubr.f32.mxu0 0.0
          %1616 = vmatmul.mubr.f32.gmra.mxu0 %v1480
          %v1617 = vpop.f32.mrf.mxu0
          %v1618 = vadd.f32 0.0, %v1617
          %v1619 = vpop.f32.mrf.mxu0
          %1620 = vmatprep.mubr.f32.mxu0 0.0
          %1621 = vmatmul.mubr.f32.gmra.mxu0 %v1483
          %v1622 = vpop.f32.mrf.mxu0
          %v1623 = vadd.f32 0.0, %v1622
          %v1624 = vpop.f32.mrf.mxu0
          %1625 = vmatprep.mubr.f32.mxu0 0.0
          %1626 = vmatmul.mubr.f32.gmra.mxu0 %v1486
          %v1627 = vpop.f32.mrf.mxu0
          %v1628 = vadd.f32 0.0, %v1627
          %v1629 = vpop.f32.mrf.mxu0
          %1630 = vmatprep.mubr.f32.mxu0 0.0
          %1631 = vmatmul.mubr.f32.gmra.mxu0 %v1489
          %v1632 = vpop.f32.mrf.mxu0
          %v1633 = vadd.f32 0.0, %v1632
          %v1634 = vpop.f32.mrf.mxu0
          %1635 = vdwg.mxu0
          %v1636 = vadd.f32 %v1384, %v1558
          %v1637 = vadd.f32 %v1385, %v1563
          %v1638 = vadd.f32 %v1386, %v1568
          %v1639 = vadd.f32 %v1387, %v1573
          %v1640 = vadd.f32 %v1388, %v1578
          %v1641 = vadd.f32 %v1389, %v1583
          %v1642 = vadd.f32 %v1390, %v1588
          %v1643 = vadd.f32 %v1391, %v1593
          %v1644 = vadd.f32 %v1392, %v1598
          %v1645 = vadd.f32 %v1393, %v1603
          %v1646 = vadd.f32 %v1394, %v1608
          %v1647 = vadd.f32 %v1395, %v1613
          %v1648 = vadd.f32 %v1396, %v1618
          %v1649 = vadd.f32 %v1397, %v1623
          %v1650 = vadd.f32 %v1398, %v1628
          %v1651 = vadd.f32 %v1399, %v1633
          %v1652 = vld [vmem:[%s6] sm:$0x1]
          %v1654 = vlaneseq
          %v1655 = vshrl.u32 %v1654, 7
          %v1656 = vsub.s32 0, %v1655
          %v1657 = vrot.slane %v1652, %v1656
          %v1659 = vadd.f32 %v1636, %v1657
          %v1660 = vadd.f32 %v1637, %v1657
          %v1661 = vadd.f32 %v1638, %v1657
          %v1662 = vadd.f32 %v1639, %v1657
          %v1663 = vadd.f32 %v1640, %v1657
          %v1664 = vadd.f32 %v1641, %v1657
          %v1665 = vadd.f32 %v1642, %v1657
          %v1666 = vadd.f32 %v1643, %v1657
          %v1667 = vadd.f32 %v1644, %v1657
          %v1668 = vadd.f32 %v1645, %v1657
          %v1669 = vadd.f32 %v1646, %v1657
          %v1670 = vadd.f32 %v1647, %v1657
          %v1671 = vadd.f32 %v1648, %v1657
          %v1672 = vadd.f32 %v1649, %v1657
          %v1673 = vadd.f32 %v1650, %v1657
          %v1674 = vadd.f32 %v1651, %v1657
          %v1675 = vmax.f32 %v1659, 0.0
          %v1676 = vmax.f32 %v1660, 0.0
          %v1677 = vmax.f32 %v1661, 0.0
          %v1678 = vmax.f32 %v1662, 0.0
          %v1679 = vmax.f32 %v1663, 0.0
          %v1680 = vmax.f32 %v1664, 0.0
          %v1681 = vmax.f32 %v1665, 0.0
          %v1682 = vmax.f32 %v1666, 0.0
          %v1683 = vmax.f32 %v1667, 0.0
          %v1684 = vmax.f32 %v1668, 0.0
          %v1685 = vmax.f32 %v1669, 0.0
          %v1686 = vmax.f32 %v1670, 0.0
          %v1687 = vmax.f32 %v1671, 0.0
          %v1688 = vmax.f32 %v1672, 0.0
          %v1689 = vmax.f32 %v1673, 0.0
          %v1690 = vmax.f32 %v1674, 0.0
          %vm1691 = vcmask 31744
          %1692 = vst.msk [vmem:[%s529] sm:$0xff] %vm1691, %v1675
          %1693 = vst.msk [vmem:[%s529 + $0x8] sm:$0xff] %vm1691, %v1676
          %1694 = vst.msk [vmem:[%s529 + $0x10] sm:$0xff] %vm1691, %v1677
          %1695 = vst.msk [vmem:[%s529 + $0x18] sm:$0xff] %vm1691, %v1678
          %1696 = vst.msk [vmem:[%s529 + $0x20] sm:$0xff] %vm1691, %v1679
          %1697 = vst.msk [vmem:[%s529 + $0x28] sm:$0xff] %vm1691, %v1680
          %1698 = vst.msk [vmem:[%s529 + $0x30] sm:$0xff] %vm1691, %v1681
          %1699 = vst.msk [vmem:[%s529 + $0x38] sm:$0xff] %vm1691, %v1682
          %1700 = vst.msk [vmem:[%s529 + $0x40] sm:$0xff] %vm1691, %v1683
          %1701 = vst.msk [vmem:[%s529 + $0x48] sm:$0xff] %vm1691, %v1684
          %1702 = vst.msk [vmem:[%s529 + $0x50] sm:$0xff] %vm1691, %v1685
          %1703 = vst.msk [vmem:[%s529 + $0x58] sm:$0xff] %vm1691, %v1686
          %1704 = vst.msk [vmem:[%s529 + $0x60] sm:$0xff] %vm1691, %v1687
          %1705 = vst.msk [vmem:[%s529 + $0x68] sm:$0xff] %vm1691, %v1688
          %1706 = vst.msk [vmem:[%s529 + $0x70] sm:$0xff] %vm1691, %v1689
          %1707 = vst.msk [vmem:[%s529 + $0x78] sm:$0xff] %vm1691, %v1690
        $region109: #{tpu_custom_call.1} parent=88 // pred_fallthru
          _
        %s1708 = smul.u32 %s26, %s25
        %s1709 = smul.u32 16, %s1708
        %p1710 = scmp.lt.s32.totalorder %s24, 1
        %s1711 = scalar_select %p1710, %s24, 1
        %p1712 = scmp.lt.s32.totalorder %s1709, 31
        %s1713 = scalar_select %p1712, %s1709, 31
        %s1714 = smul.addr %s1711, 32
        %s1715 = sadd.s32 %s1713, %s1714
        %s1716 = smul.addr %s1715, 8
        %s1717 = scalar_lea.vmem %s8, %s1716
        // Predicated region
        $region110: #{tpu_custom_call.1} parent=88 // pred_check
          %p1718 = pneg %p263
        $region111: #{tpu_custom_call.1} parent=88 // pred_check_branch
          %1720 = sbr.rel (%p1718) target = $region113
        $region112: #{tpu_custom_call.1} parent=88 // pred_region
          %s1721 = smul.u32 %s26, %s25
          %s1722 = smul.u32 16, %s1721
        $region113: #{tpu_custom_call.1} parent=88 // pred_fallthru
          _
      $region89: #{tpu_custom_call.1} parent=5 // pred_fallthru
        _
      %p1723 = scmp.le.s32.totalorder 2, %s14
      // Predicated region
      $region114: #{tpu_custom_call.1} parent=5 // pred_check
        %p1724 = pneg %p1723
      $region115: #{tpu_custom_call.1} parent=5 // pred_check_branch
        %1726 = sbr.rel (%p1724) target = $region117
      $region116: #{tpu_custom_call.1} parent=5 // pred_region
        %s1727 = ssub.s32 %s14, 2
        // Predicated region
        $region118: #{tpu_custom_call.1} parent=116 // pred_check
          %p1728 = pneg %p269
        $region119: #{tpu_custom_call.1} parent=116 // pred_check_branch
          %1730 = sbr.rel (%p1728) target = $region121
        $region120: #{tpu_custom_call.1} parent=116 // pred_region
          %s1731 = smul.u32 %s29, %s28
          %s1732 = smul.u32 16, %s1731
          %p1733 = scmp.lt.s32.totalorder %s27, 1
          %s1734 = scalar_select %p1733, %s27, 1
          %p1735 = scmp.lt.s32.totalorder %s1732, 31
          %s1736 = scalar_select %p1735, %s1732, 31
          %s1737 = smul.addr %s1734, 32
          %s1738 = sadd.s32 %s1736, %s1737
          %s1739 = smul.addr %s1738, 8
          %s1740 = scalar_lea.vmem %s8, %s1739
        $region121: #{tpu_custom_call.1} parent=116 // pred_fallthru
          _
      $region117: #{tpu_custom_call.1} parent=5 // pred_fallthru
        _
    $region6: #{tpu_custom_call.1} parent=1 // loop_footer
      %s18 = sadd.s32 1, %s14
    $region7: #{tpu_custom_call.1} parent=1 // loop_footer_branch
      %13 = sbr.rel target = $region3
    $region8: #{tpu_custom_call.1} parent=1 // loop_exit
      _

// kernel: tpu_custom_call.1
$region0: #{tpu_custom_call.1}
  #allocation0 [shape = 'u32[]', space=smem, size = 0x4, offset = 0x4, fixed_abs, tag = 'smem constant byte address 0x4 - core index']
  #allocation1 [shape = 'u32[144,128]{1,0:T(1,128)}', space=vmem, size = 0x12000, scoped, tag = 'internal scratch']
  #allocation2 [shape = 'f32[80,8]{1,0:T(8,128)}', space=vmem, size = 0xa000, scoped, tag = 'scratch operand']
  #allocation3 [shape = 'f32[80,4]{1,0:T(8,128)}', space=vmem, size = 0xa000, scoped, tag = 'scratch operand']
  #allocation4 [shape = 'f32[256,4]{1,0:T(8,128)}', space=vmem, size = 0x20000, scoped, tag = 'scratch operand']
  %s0 = inlined_call_operand.vmem [shape: bf16[2,256,8], index: 0, kind: input, shape index: {}]
  %s1 = inlined_call_operand.vmem [shape: bf16[80,256], index: 1, kind: input, shape index: {}]
  %s2 = inlined_call_operand.vmem [shape: bf16[256,80], index: 2, kind: input, shape index: {}]
  %s3 = inlined_call_operand.vmem [shape: bf16[8,4], index: 3, kind: input, shape index: {}]
  %s4 = inlined_call_operand.vmem [shape: bf16[4,8,4], index: 4, kind: input, shape index: {}]
  %s5 = inlined_call_operand.vmem [shape: f32[4,1,4], index: 5, kind: input, shape index: {}]
  %s6 = inlined_call_operand.vmem [shape: f32[1,4], index: 6, kind: input, shape index: {}]
  %s7 = inlined_call_operand.vmem [shape: f32[80,1], index: 7, kind: input, shape index: {}]
  %s8 = inlined_call_operand.vmem [shape: f32[2,256,4], index: 8, kind: output, shape index: {}]
  %s9 = sld [smem:[#allocation0]]
  $region122: #{tpu_custom_call.1} parent=0
    _
  %s11 = ssub.s32 1, %s9
  %s12 = scalar_select 0, %s11, %s9
  $region1: #{tpu_custom_call.1} parent=0
    #allocation5 [shape = 'u8[40960]{0}', space=vmem, size = 0xa000, scoped, tag = 'input window, operand 1']
    loop: start=0, step=1, limit=10
    $region2: #{tpu_custom_call.1} parent=1 // loop_pre_header
      _
    $region3: #{tpu_custom_call.1} parent=1 // loop_header
      %s14 = sphi 0, %s18
      %p15 = scmp.ge.s32.totalorder %s14, 10
      %s21 = sphi 0, %s40
      %s22 = sphi 0, %s36
      %s23 = sphi 0, %s32
      %s24 = sphi 0, %s21
      %s25 = sphi 0, %s22
      %s26 = sphi 0, %s23
      %s27 = sphi 0, %s24
      %s28 = sphi 0, %s25
      %s29 = sphi 0, %s26
      %s51 = sphi 0, %s53
      %s54 = sphi 0, %s51
      %s55 = sphi 0, %s54
      %s71 = sphi 0, %s55
      %s83 = sphi 0, %s85
      %s86 = sphi 0, %s83
      %s87 = sphi 0, %s86
      %s103 = sphi 0, %s87
      %s115 = sphi 0, %s117
      %s118 = sphi 0, %s115
      %s119 = sphi 0, %s118
      %s135 = sphi 0, %s119
      %s139 = sphi 0, %s139
      %s141 = sphi 0, %s139
      %s142 = sphi 0, %s141
      %s156 = sphi 0, %s142
      %s160 = sphi 0, %s160
      %s162 = sphi 0, %s160
      %s163 = sphi 0, %s162
      %s177 = sphi 0, %s163
      %s181 = sphi 0, %s181
      %s183 = sphi 0, %s181
      %s184 = sphi 0, %s183
      %s198 = sphi 0, %s184
      %s202 = sphi 0, %s202
      %s204 = sphi 0, %s202
      %s205 = sphi 0, %s204
      %s219 = sphi 0, %s205
      %s223 = sphi 0, %s223
      %s225 = sphi 0, %s223
      %s226 = sphi 0, %s225
      %s240 = sphi 0, %s226
      %s250 = sphi 0, %s252
      %s253 = sphi 0, %s250
      %s254 = sphi 0, %s253
      %s270 = sphi 0, %s254
    $region4: #{tpu_custom_call.1} parent=1 // loop_header_branch
      %17 = sbr.rel (%p15) target = $region8
    $region5: #{tpu_custom_call.1} parent=1 // loop_body
      %s19 = ssub.s32 %s14, 1
      %s20 = ssub.s32 %s14, 2
      %s30 = sadd.s32 1, %s23
      %p31 = scmp.ge.s32.totalorder %s30, 2
      %s32 = scalar_select %p31, 0, %s30
      %s33 = sadd.s32 1, %s22
      %s34 = scalar_select %p31, %s33, %s22
      %p35 = scmp.ge.s32.totalorder %s34, 2
      %s36 = scalar_select %p35, 0, %s34
      %s37 = sadd.s32 1, %s21
      %s38 = scalar_select %p35, %s37, %s21
      %p39 = scmp.ge.s32.totalorder %s38, 2
      %s40 = scalar_select %p39, 0, %s38
      %s41 = ssub.s32 1, %s22
      %s42 = smul.u32 %s23, %s41
      %s43 = sadd.s32 %s42, %s22
      %s44 = ssub.s32 1, %s36
      %s45 = smul.u32 %s32, %s44
      %s46 = sadd.s32 %s45, %s36
      %s47 = ssub.s32 %s21, %s40
      %s48 = ssub.s32 %s43, %s46
      %s49 = sor.u32 %s47, %s48
      %p50 = scmp.eq.s32.totalorder %s49, 0
      %s52 = sadd.s32 %s51, 1
      %s53 = scalar_select %p50, %s51, %s52
      %p56 = pneg %p50
      %p57 = scmp.eq.s32.totalorder %s14, 7
      %p58 = por %p56, %p57
      %p59 = scmp.ne.s32.totalorder %s51, %s54
      %p60 = scmp.eq.s32.totalorder %s14, 0
      %p61 = por %p59, %p60
      %p62 = scmp.ne.s32.totalorder %s51, %s54
      %p63 = scmp.eq.s32.totalorder %s19, 7
      %p64 = por %p62, %p63
      %p65 = scmp.ne.s32.totalorder %s54, %s55
      %p66 = scmp.eq.s32.totalorder %s19, 0
      %p67 = por %p65, %p66
      %p68 = scmp.ne.s32.totalorder %s54, %s55
      %p69 = scmp.eq.s32.totalorder %s20, 7
      %p70 = por %p68, %p69
      %p72 = scmp.ne.s32.totalorder %s55, %s71
      %p73 = scmp.eq.s32.totalorder %s20, 0
      %p74 = por %p72, %p73
      %s75 = ssub.s32 1, %s22
      %s76 = smul.u32 %s23, %s75
      %s77 = sadd.s32 %s76, %s22
      %s78 = ssub.s32 1, %s36
      %s79 = smul.u32 %s32, %s78
      %s80 = sadd.s32 %s79, %s36
      %s81 = ssub.s32 %s77, %s80
      %p82 = scmp.eq.s32.totalorder %s81, 0
      %s84 = sadd.s32 %s83, 1
      %s85 = scalar_select %p82, %s83, %s84
      %p88 = pneg %p82
      %p89 = scmp.eq.s32.totalorder %s14, 7
      %p90 = por %p88, %p89
      %p91 = scmp.ne.s32.totalorder %s83, %s86
      %p92 = scmp.eq.s32.totalorder %s14, 0
      %p93 = por %p91, %p92
      %p94 = scmp.ne.s32.totalorder %s83, %s86
      %p95 = scmp.eq.s32.totalorder %s19, 7
      %p96 = por %p94, %p95
      %p97 = scmp.ne.s32.totalorder %s86, %s87
      %p98 = scmp.eq.s32.totalorder %s19, 0
      %p99 = por %p97, %p98
      %p100 = scmp.ne.s32.totalorder %s86, %s87
      %p101 = scmp.eq.s32.totalorder %s20, 7
      %p102 = por %p100, %p101
      %p104 = scmp.ne.s32.totalorder %s87, %s103
      %p105 = scmp.eq.s32.totalorder %s20, 0
      %p106 = por %p104, %p105
      %s107 = smul.u32 %s23, %s22
      %s108 = ssub.s32 1, %s22
      %s109 = sadd.s32 %s107, %s108
      %s110 = smul.u32 %s32, %s36
      %s111 = ssub.s32 1, %s36
      %s112 = sadd.s32 %s110, %s111
      %s113 = ssub.s32 %s109, %s112
      %p114 = scmp.eq.s32.totalorder %s113, 0
      %s116 = sadd.s32 %s115, 1
      %s117 = scalar_select %p114, %s115, %s116
      %p120 = pneg %p114
      %p121 = scmp.eq.s32.totalorder %s14, 7
      %p122 = por %p120, %p121
      %p123 = scmp.ne.s32.totalorder %s115, %s118
      %p124 = scmp.eq.s32.totalorder %s14, 0
      %p125 = por %p123, %p124
      %p126 = scmp.ne.s32.totalorder %s115, %s118
      %p127 = scmp.eq.s32.totalorder %s19, 7
      %p128 = por %p126, %p127
      %p129 = scmp.ne.s32.totalorder %s118, %s119
      %p130 = scmp.eq.s32.totalorder %s19, 0
      %p131 = por %p129, %p130
      %p132 = scmp.ne.s32.totalorder %s118, %s119
      %p133 = scmp.eq.s32.totalorder %s20, 7
      %p134 = por %p132, %p133
      %p136 = scmp.ne.s32.totalorder %s119, %s135
      %p137 = scmp.eq.s32.totalorder %s20, 0
      %p138 = por %p136, %p137
      %s140 = sadd.s32 %s139, 1
      %p143 = scmp.eq.s32.totalorder %s14, 7
      %p144 = scmp.ne.s32.totalorder %s139, %s141
      %p145 = scmp.eq.s32.totalorder %s14, 0
      %p146 = por %p144, %p145
      %p147 = scmp.ne.s32.totalorder %s139, %s141
      %p148 = scmp.eq.s32.totalorder %s19, 7
      %p149 = por %p147, %p148
      %p150 = scmp.ne.s32.totalorder %s141, %s142
      %p151 = scmp.eq.s32.totalorder %s19, 0
      %p152 = por %p150, %p151
      %p153 = scmp.ne.s32.totalorder %s141, %s142
      %p154 = scmp.eq.s32.totalorder %s20, 7
      %p155 = por %p153, %p154
      %p157 = scmp.ne.s32.totalorder %s142, %s156
      %p158 = scmp.eq.s32.totalorder %s20, 0
      %p159 = por %p157, %p158
      %s161 = sadd.s32 %s160, 1
      %p164 = scmp.eq.s32.totalorder %s14, 7
      %p165 = scmp.ne.s32.totalorder %s160, %s162
      %p166 = scmp.eq.s32.totalorder %s14, 0
      %p167 = por %p165, %p166
      %p168 = scmp.ne.s32.totalorder %s160, %s162
      %p169 = scmp.eq.s32.totalorder %s19, 7
      %p170 = por %p168, %p169
      %p171 = scmp.ne.s32.totalorder %s162, %s163
      %p172 = scmp.eq.s32.totalorder %s19, 0
      %p173 = por %p171, %p172
      %p174 = scmp.ne.s32.totalorder %s162, %s163
      %p175 = scmp.eq.s32.totalorder %s20, 7
      %p176 = por %p174, %p175
      %p178 = scmp.ne.s32.totalorder %s163, %s177
      %p179 = scmp.eq.s32.totalorder %s20, 0
      %p180 = por %p178, %p179
      %s182 = sadd.s32 %s181, 1
      %p185 = scmp.eq.s32.totalorder %s14, 7
      %p186 = scmp.ne.s32.totalorder %s181, %s183
      %p187 = scmp.eq.s32.totalorder %s14, 0
      %p188 = por %p186, %p187
      %p189 = scmp.ne.s32.totalorder %s181, %s183
      %p190 = scmp.eq.s32.totalorder %s19, 7
      %p191 = por %p189, %p190
      %p192 = scmp.ne.s32.totalorder %s183, %s184
      %p193 = scmp.eq.s32.totalorder %s19, 0
      %p194 = por %p192, %p193
      %p195 = scmp.ne.s32.totalorder %s183, %s184
      %p196 = scmp.eq.s32.totalorder %s20, 7
      %p197 = por %p195, %p196
      %p199 = scmp.ne.s32.totalorder %s184, %s198
      %p200 = scmp.eq.s32.totalorder %s20, 0
      %p201 = por %p199, %p200
      %s203 = sadd.s32 %s202, 1
      %p206 = scmp.eq.s32.totalorder %s14, 7
      %p207 = scmp.ne.s32.totalorder %s202, %s204
      %p208 = scmp.eq.s32.totalorder %s14, 0
      %p209 = por %p207, %p208
      %p210 = scmp.ne.s32.totalorder %s202, %s204
      %p211 = scmp.eq.s32.totalorder %s19, 7
      %p212 = por %p210, %p211
      %p213 = scmp.ne.s32.totalorder %s204, %s205
      %p214 = scmp.eq.s32.totalorder %s19, 0
      %p215 = por %p213, %p214
      %p216 = scmp.ne.s32.totalorder %s204, %s205
      %p217 = scmp.eq.s32.totalorder %s20, 7
      %p218 = por %p216, %p217
      %p220 = scmp.ne.s32.totalorder %s205, %s219
      %p221 = scmp.eq.s32.totalorder %s20, 0
      %p222 = por %p220, %p221
      %s224 = sadd.s32 %s223, 1
      %p227 = scmp.eq.s32.totalorder %s14, 7
      %p228 = scmp.ne.s32.totalorder %s223, %s225
      %p229 = scmp.eq.s32.totalorder %s14, 0
      %p230 = por %p228, %p229
      %p231 = scmp.ne.s32.totalorder %s223, %s225
      %p232 = scmp.eq.s32.totalorder %s19, 7
      %p233 = por %p231, %p232
      %p234 = scmp.ne.s32.totalorder %s225, %s226
      %p235 = scmp.eq.s32.totalorder %s19, 0
      %p236 = por %p234, %p235
      %p237 = scmp.ne.s32.totalorder %s225, %s226
      %p238 = scmp.eq.s32.totalorder %s20, 7
      %p239 = por %p237, %p238
      %p241 = scmp.ne.s32.totalorder %s226, %s240
      %p242 = scmp.eq.s32.totalorder %s20, 0
      %p243 = por %p241, %p242
      %s244 = smul.u32 %s23, %s22
      %s245 = smul.u32 %s32, %s36
      %s246 = ssub.s32 %s21, %s40
      %s247 = ssub.s32 %s244, %s245
      %s248 = sor.u32 %s246, %s247
      %p249 = scmp.eq.s32.totalorder %s248, 0
      %s251 = sadd.s32 %s250, 1
      %s252 = scalar_select %p249, %s250, %s251
      %p255 = pneg %p249
      %p256 = scmp.eq.s32.totalorder %s14, 7
      %p257 = por %p255, %p256
      %p258 = scmp.ne.s32.totalorder %s250, %s253
      %p259 = scmp.eq.s32.totalorder %s14, 0
      %p260 = por %p258, %p259
      %p261 = scmp.ne.s32.totalorder %s250, %s253
      %p262 = scmp.eq.s32.totalorder %s19, 7
      %p263 = por %p261, %p262
      %p264 = scmp.ne.s32.totalorder %s253, %s254
      %p265 = scmp.eq.s32.totalorder %s19, 0
      %p266 = por %p264, %p265
      %p267 = scmp.ne.s32.totalorder %s253, %s254
      %p268 = scmp.eq.s32.totalorder %s20, 7
      %p269 = por %p267, %p268
      %p271 = scmp.ne.s32.totalorder %s254, %s270
      %p272 = scmp.eq.s32.totalorder %s20, 0
      %p273 = por %p271, %p272
      %p274 = scmp.le.s32.totalorder 1, %s14
      %p275 = scmp.lt.s32.totalorder %s14, 9
      %p276 = pnand %p274, %p275
      %p277 = pneg %p276
      // Predicated region
      $region9: #{tpu_custom_call.1} parent=5 // pred_check
        _
      $region10: #{tpu_custom_call.1} parent=5 // pred_check_branch
        %279 = sbr.rel (%p276) target = $region12
      $region11: #{tpu_custom_call.1} parent=5 // pred_region
        %s280 = ssub.s32 %s14, 1
        // Predicated region
        $region13: #{tpu_custom_call.1} parent=11 // pred_check
          %p281 = pneg %p152
        $region14: #{tpu_custom_call.1} parent=11 // pred_check_branch
          %283 = sbr.rel (%p281) target = $region16
        $region15: #{tpu_custom_call.1} parent=11 // pred_region
          _
        $region16: #{tpu_custom_call.1} parent=11 // pred_fallthru
          _
        // Predicated region
        $region17: #{tpu_custom_call.1} parent=11 // pred_check
          %p284 = pneg %p173
        $region18: #{tpu_custom_call.1} parent=11 // pred_check_branch
          %286 = sbr.rel (%p284) target = $region20
        $region19: #{tpu_custom_call.1} parent=11 // pred_region
          _
        $region20: #{tpu_custom_call.1} parent=11 // pred_fallthru
          _
        // Predicated region
        $region21: #{tpu_custom_call.1} parent=11 // pred_check
          %p287 = pneg %p194
        $region22: #{tpu_custom_call.1} parent=11 // pred_check_branch
          %289 = sbr.rel (%p287) target = $region24
        $region23: #{tpu_custom_call.1} parent=11 // pred_region
          _
        $region24: #{tpu_custom_call.1} parent=11 // pred_fallthru
          _
        // Predicated region
        $region25: #{tpu_custom_call.1} parent=11 // pred_check
          %p290 = pneg %p215
        $region26: #{tpu_custom_call.1} parent=11 // pred_check_branch
          %292 = sbr.rel (%p290) target = $region28
        $region27: #{tpu_custom_call.1} parent=11 // pred_region
          _
        $region28: #{tpu_custom_call.1} parent=11 // pred_fallthru
          _
        // Predicated region
        $region29: #{tpu_custom_call.1} parent=11 // pred_check
          %p293 = pneg %p236
        $region30: #{tpu_custom_call.1} parent=11 // pred_check_branch
          %295 = sbr.rel (%p293) target = $region32
        $region31: #{tpu_custom_call.1} parent=11 // pred_region
          _
        $region32: #{tpu_custom_call.1} parent=11 // pred_fallthru
          _
      $region12: #{tpu_custom_call.1} parent=5 // pred_fallthru
        _
      %p296 = scmp.lt.s32.totalorder %s14, 8
      // Predicated region
      $region33: #{tpu_custom_call.1} parent=5 // pred_check
        %p297 = pneg %p296
      $region34: #{tpu_custom_call.1} parent=5 // pred_check_branch
        %299 = sbr.rel (%p297) target = $region36
      $region35: #{tpu_custom_call.1} parent=5 // pred_region
        // Predicated region
        $region37: #{tpu_custom_call.1} parent=35 // pred_check
          %p300 = pneg %p61
        $region38: #{tpu_custom_call.1} parent=35 // pred_check_branch
          %302 = sbr.rel (%p300) target = $region40
        $region39: #{tpu_custom_call.1} parent=35 // pred_region
          %s303 = ssub.s32 1, %s22
          %s304 = smul.u32 %s23, %s303
          %s305 = sadd.s32 %s304, %s22
          %s306 = smul.u32 16, %s305
          %p307 = scmp.lt.s32.totalorder %s21, 1
          %s308 = scalar_select %p307, %s21, 1
          %p309 = scmp.lt.s32.totalorder %s306, 31
          %s310 = scalar_select %p309, %s306, 31
          %s311 = smul.addr %s308, 32
          %s312 = sadd.s32 %s310, %s311
          %s313 = smul.addr %s312, 4
          %s314 = scalar_lea.vmem %s0, %s313
          %s315 = ssub.s32 1, %s22
          %s316 = smul.u32 %s23, %s315
          %s317 = sadd.s32 %s316, %s22
          %s318 = smul.u32 16, %s317
        $region40: #{tpu_custom_call.1} parent=35 // pred_fallthru
          _
        // Predicated region
        $region41: #{tpu_custom_call.1} parent=35 // pred_check
          %p319 = pneg %p93
        $region42: #{tpu_custom_call.1} parent=35 // pred_check_branch
          %321 = sbr.rel (%p319) target = $region44
        $region43: #{tpu_custom_call.1} parent=35 // pred_region
          %s322 = sand.u32 %s83, 1
          %s323 = sand.u32 %s83, 1
          %s324 = smul.addr %s323, 40
          %s325 = scalar_lea.vmem [#allocation5], %s324
          %s326 = ssub.s32 1, %s22
          %s327 = smul.u32 %s23, %s326
          %s328 = sadd.s32 %s327, %s22
          %s329 = smul.addr %s328, 4
          %s330 = scalar_lea.vmem %s1, %s329
          // Predicated region
          $region45: #{tpu_custom_call.1} parent=43 // pred_check
            _
          $region46: #{tpu_custom_call.1} parent=43 // pred_check_branch
            %332 = sbr.rel (0) target = $region48
          $region47: #{tpu_custom_call.1} parent=43 // pred_region
            // Predicated region
            $region49: #{tpu_custom_call.1} parent=47 // pred_check
              _
            $region50: #{tpu_custom_call.1} parent=47 // pred_check_branch
              %334 = sbr.rel target = $region52
            $region51: #{tpu_custom_call.1} parent=47 // pred_region
              // Predicated region
              $region64: #{tpu_custom_call.1} parent=51 // pred_check
                _
              $region65: #{tpu_custom_call.1} parent=51 // pred_check_branch
                %368 = sbr.rel (0) target = $region67
              $region66: #{tpu_custom_call.1} parent=51 // pred_region
                loop: start=0, step=1, limit=1
                $region68: #{tpu_custom_call.1} parent=66 // loop_pre_header
                  _
                $region69: #{tpu_custom_call.1} parent=66 // loop_header
                  %s370 = sphi 0, %s374
                  %p371 = scmp.ge.s32.totalorder %s370, 1
                  %s375 = sphi %s330, %s330
                  %s376 = sphi %s325, %s325
                $region70: #{tpu_custom_call.1} parent=66 // loop_header_branch
                  %373 = sbr.rel (%p371) target = $region74
                $region71: #{tpu_custom_call.1} parent=66 // loop_body
                  _
                $region72: #{tpu_custom_call.1} parent=66 // loop_footer
                  %s374 = sadd.s32 1, %s370
                $region73: #{tpu_custom_call.1} parent=66 // loop_footer_branch
                  %369 = sbr.rel target = $region69
                $region74: #{tpu_custom_call.1} parent=66 // loop_exit
                  _
                %s378 = ssub.s32 16, 1
                loop: start=0, step=1, limit=1
                $region75: #{tpu_custom_call.1} parent=66 // loop_pre_header
                  _
                $region76: #{tpu_custom_call.1} parent=66 // loop_header
                  %s380 = sphi 0, %s384
                  %p381 = scmp.ge.s32.totalorder %s380, 1
                  %s385 = sphi %s330, %s330
                  %s386 = sphi %s325, %s325
                $region77: #{tpu_custom_call.1} parent=66 // loop_header_branch
                  %383 = sbr.rel (%p381) target = $region81
                $region78: #{tpu_custom_call.1} parent=66 // loop_body
                  %v387 = vld [vmem:[%s385] sm:%s378]
                  %388 = vst [vmem:[%s386] sm:%s378] %v387
                  %v389 = vld [vmem:[%s385 + $0x8] sm:%s378]
                  %390 = vst [vmem:[%s386 + $0x4] sm:%s378] %v389
                  %v391 = vld [vmem:[%s385 + $0x10] sm:%s378]
                  %392 = vst [vmem:[%s386 + $0x8] sm:%s378] %v391
                  %v393 = vld [vmem:[%s385 + $0x18] sm:%s378]
                  %394 = vst [vmem:[%s386 + $0xc] sm:%s378] %v393
                  %v395 = vld [vmem:[%s385 + $0x20] sm:%s378]
                  %396 = vst [vmem:[%s386 + $0x10] sm:%s378] %v395
                  %v397 = vld [vmem:[%s385 + $0x28] sm:%s378]
                  %398 = vst [vmem:[%s386 + $0x14] sm:%s378] %v397
                  %v399 = vld [vmem:[%s385 + $0x30] sm:%s378]
                  %400 = vst [vmem:[%s386 + $0x18] sm:%s378] %v399
                  %v401 = vld [vmem:[%s385 + $0x38] sm:%s378]
                  %402 = vst [vmem:[%s386 + $0x1c] sm:%s378] %v401
                  %v403 = vld [vmem:[%s385 + $0x40] sm:%s378]
                  %404 = vst [vmem:[%s386 + $0x20] sm:%s378] %v403
                  %v405 = vld [vmem:[%s385 + $0x48] sm:%s378]
                  %406 = vst [vmem:[%s386 + $0x24] sm:%s378] %v405
                $region79: #{tpu_custom_call.1} parent=66 // loop_footer
                  %s384 = sadd.s32 1, %s380
                $region80: #{tpu_custom_call.1} parent=66 // loop_footer_branch
                  %379 = sbr.rel target = $region76
                $region81: #{tpu_custom_call.1} parent=66 // loop_exit
                  _
              $region67: #{tpu_custom_call.1} parent=51 // pred_fallthru
                _
            $region52: #{tpu_custom_call.1} parent=47 // pred_fallthru
              _
            // Predicated region
            $region53: #{tpu_custom_call.1} parent=47 // pred_check
              _
            $region54: #{tpu_custom_call.1} parent=47 // pred_check_branch
              %336 = sbr.rel (0) target = $region56
            $region55: #{tpu_custom_call.1} parent=47 // pred_region
              %s338 = ssub.s32 16, 1
              loop: start=0, step=1, limit=1
              $region57: #{tpu_custom_call.1} parent=55 // loop_pre_header
                _
              $region58: #{tpu_custom_call.1} parent=55 // loop_header
                %s340 = sphi 0, %s344
                %p341 = scmp.ge.s32.totalorder %s340, 1
                %s345 = sphi %s330, %s330
                %s346 = sphi %s325, %s325
              $region59: #{tpu_custom_call.1} parent=55 // loop_header_branch
                %343 = sbr.rel (%p341) target = $region63
              $region60: #{tpu_custom_call.1} parent=55 // loop_body
                %v347 = vld [vmem:[%s345] sm:%s338]
                %348 = vst [vmem:[%s346] sm:%s338] %v347
                %v349 = vld [vmem:[%s345 + $0x8] sm:%s338]
                %350 = vst [vmem:[%s346 + $0x4] sm:%s338] %v349
                %v351 = vld [vmem:[%s345 + $0x10] sm:%s338]
                %352 = vst [vmem:[%s346 + $0x8] sm:%s338] %v351
                %v353 = vld [vmem:[%s345 + $0x18] sm:%s338]
                %354 = vst [vmem:[%s346 + $0xc] sm:%s338] %v353
                %v355 = vld [vmem:[%s345 + $0x20] sm:%s338]
                %356 = vst [vmem:[%s346 + $0x10] sm:%s338] %v355
                %v357 = vld [vmem:[%s345 + $0x28] sm:%s338]
                %358 = vst [vmem:[%s346 + $0x14] sm:%s338] %v357
                %v359 = vld [vmem:[%s345 + $0x30] sm:%s338]
                %360 = vst [vmem:[%s346 + $0x18] sm:%s338] %v359
                %v361 = vld [vmem:[%s345 + $0x38] sm:%s338]
                %362 = vst [vmem:[%s346 + $0x1c] sm:%s338] %v361
                %v363 = vld [vmem:[%s345 + $0x40] sm:%s338]
                %364 = vst [vmem:[%s346 + $0x20] sm:%s338] %v363
                %v365 = vld [vmem:[%s345 + $0x48] sm:%s338]
                %366 = vst [vmem:[%s346 + $0x24] sm:%s338] %v365
              $region61: #{tpu_custom_call.1} parent=55 // loop_footer
                %s344 = sadd.s32 1, %s340
              $region62: #{tpu_custom_call.1} parent=55 // loop_footer_branch
                %339 = sbr.rel target = $region58
              $region63: #{tpu_custom_call.1} parent=55 // loop_exit
                _
            $region56: #{tpu_custom_call.1} parent=47 // pred_fallthru
              _
          $region48: #{tpu_custom_call.1} parent=43 // pred_fallthru
            _
          %407 = vnop
        $region44: #{tpu_custom_call.1} parent=35 // pred_fallthru
          _
        // Predicated region
        $region82: #{tpu_custom_call.1} parent=35 // pred_check
          %p408 = pneg %p125
        $region83: #{tpu_custom_call.1} parent=35 // pred_check_branch
          %410 = sbr.rel (%p408) target = $region85
        $region84: #{tpu_custom_call.1} parent=35 // pred_region
          %s411 = smul.u32 %s23, %s22
          %s412 = ssub.s32 1, %s22
          %s413 = sadd.s32 %s411, %s412
          %s414 = smul.u32 16, %s413
          %p415 = scmp.lt.s32.totalorder %s414, 31
          %s416 = scalar_select %p415, %s414, 31
          %s417 = smul.addr %s416, 4
          %s418 = scalar_lea.vmem %s2, %s417
          %s419 = smul.u32 %s23, %s22
          %s420 = ssub.s32 1, %s22
          %s421 = sadd.s32 %s419, %s420
          %s422 = smul.u32 16, %s421
        $region85: #{tpu_custom_call.1} parent=35 // pred_fallthru
          _
      $region36: #{tpu_custom_call.1} parent=5 // pred_fallthru
        _
      %p423 = scmp.le.s32.totalorder 1, %s14
      %p424 = scmp.lt.s32.totalorder %s14, 9
      %p425 = pnand %p423, %p424
      %p426 = pneg %p425
      // Predicated region
      $region86: #{tpu_custom_call.1} parent=5 // pred_check
        _
      $region87: #{tpu_custom_call.1} parent=5 // pred_check_branch
        %428 = sbr.rel (%p425) target = $region89
      $region88: #{tpu_custom_call.1} parent=5 // pred_region
        %s429 = ssub.s32 %s14, 1
        %s430 = sand.u32 %s86, 1
        %s431 = sand.u32 %s86, 1
        %s432 = smul.addr %s431, 40
        %s433 = scalar_lea.vmem [#allocation5], %s432
        // Predicated region
        $region90: #{tpu_custom_call.1} parent=88 // pred_check
          %p434 = pneg %p99
        $region91: #{tpu_custom_call.1} parent=88 // pred_check_branch
          %436 = sbr.rel (%p434) target = $region93
        $region92: #{tpu_custom_call.1} parent=88 // pred_region
          _
        $region93: #{tpu_custom_call.1} parent=88 // pred_fallthru
          _
        %s437 = ssub.s32 1, %s25
        %s438 = smul.u32 %s26, %s437
        %s439 = sadd.s32 %s438, %s25
        %s440 = smul.u32 16, %s439
        %p441 = scmp.lt.s32.totalorder %s24, 1
        %s442 = scalar_select %p441, %s24, 1
        %p443 = scmp.lt.s32.totalorder %s440, 31
        %s444 = scalar_select %p443, %s440, 31
        %s445 = smul.addr %s442, 32
        %s446 = sadd.s32 %s444, %s445
        %s447 = smul.addr %s446, 4
        %s448 = scalar_lea.vmem %s0, %s447
        %p449 = pneg %p67
        %p450 = pneg %p64
        %s451 = sand.u32 %s86, 1
        %s452 = sand.u32 %s86, 1
        %s453 = smul.addr %s452, 40
        %s454 = scalar_lea.vmem [#allocation5], %s453
        %p455 = pneg %p99
        %p456 = pneg %p96
        %s457 = smul.u32 %s26, %s25
        %s458 = ssub.s32 1, %s25
        %s459 = sadd.s32 %s457, %s458
        %s460 = smul.u32 16, %s459
        %p461 = scmp.lt.s32.totalorder %s460, 31
        %s462 = scalar_select %p461, %s460, 31
        %s463 = smul.addr %s462, 4
        %s464 = scalar_lea.vmem %s2, %s463
        %p465 = pneg %p131
        %p466 = pneg %p128
        %p467 = pneg %p152
        %p468 = pneg %p149
        %p469 = pneg %p173
        %p470 = pneg %p170
        %p471 = pneg %p194
        %p472 = pneg %p191
        %p473 = pneg %p215
        %p474 = pneg %p212
        %p475 = pneg %p236
        %p476 = pneg %p233
        %p477 = pneg %p266
        %p478 = pneg %p263
        %s479 = smul.u32 %s26, %s25
        %s480 = smul.u32 16, %s479
        %p481 = scmp.lt.s32.totalorder %s24, 1
        %s482 = scalar_select %p481, %s24, 1
        %p483 = scmp.lt.s32.totalorder %s480, 31
        %s484 = scalar_select %p483, %s480, 31
        %s485 = smul.addr %s482, 32
        %s486 = sadd.s32 %s484, %s485
        %s487 = smul.addr %s486, 8
        %s488 = scalar_lea.vmem %s8, %s487
        %s489 = ssub.s32 1, %s25
        %s490 = smul.u32 %s26, %s489
        %s491 = sadd.s32 %s490, %s25
        %s492 = smul.u32 16, %s491
        %p493 = scmp.lt.s32.totalorder %s24, 1
        %s494 = scalar_select %p493, %s24, 1
        %p495 = scmp.lt.s32.totalorder %s492, 31
        %s496 = scalar_select %p495, %s492, 31
        %s497 = smul.addr %s494, 32
        %s498 = sadd.s32 %s496, %s497
        %s499 = smul.addr %s498, 4
        %s500 = scalar_lea.vmem %s0, %s499
        %s501 = ssub.s32 1, %s25
        %s502 = smul.u32 %s26, %s501
        %s503 = sadd.s32 %s502, %s25
        %s504 = smul.u32 16, %s503
        %s505 = ssub.s32 1, %s25
        %s506 = smul.u32 %s26, %s505
        %s507 = sadd.s32 %s506, %s25
        %s508 = smul.u32 %s26, %s25
        %s509 = ssub.s32 1, %s25
        %s510 = sadd.s32 %s508, %s509
        %s511 = smul.u32 16, %s510
        %p512 = scmp.lt.s32.totalorder %s511, 31
        %s513 = scalar_select %p512, %s511, 31
        %s514 = smul.addr %s513, 4
        %s515 = scalar_lea.vmem %s2, %s514
        %s516 = smul.u32 %s26, %s25
        %s517 = ssub.s32 1, %s25
        %s518 = sadd.s32 %s516, %s517
        %s519 = smul.u32 16, %s518
        %s520 = smul.u32 %s26, %s25
        %s521 = smul.u32 16, %s520
        %p522 = scmp.lt.s32.totalorder %s24, 1
        %s523 = scalar_select %p522, %s24, 1
        %p524 = scmp.lt.s32.totalorder %s521, 31
        %s525 = scalar_select %p524, %s521, 31
        %s526 = smul.addr %s523, 32
        %s527 = sadd.s32 %s525, %s526
        %s528 = smul.addr %s527, 8
        %s529 = scalar_lea.vmem %s8, %s528
        %s530 = smul.u32 %s26, %s25
        %s531 = smul.u32 16, %s530
        %p533 = scmp.eq.s32.totalorder %s25, 0
        %p534 = scmp.eq.s32.totalorder %s26, 0
        %p535 = pnand %p533, %p534
        %p536 = pneg %p535
        // Predicated region
        $region94: #{tpu_custom_call.1} parent=88 // pred_check
          _
        $region95: #{tpu_custom_call.1} parent=88 // pred_check_branch
          %538 = sbr.rel (%p535) target = $region97
        $region96: #{tpu_custom_call.1} parent=88 // pred_region
          %vm539 = vcmask 64512
          %540 = vst.msk [vmem:[#allocation2] sm:$0xff] %vm539, 0.0
          %541 = vst.msk [vmem:[#allocation2 + $0x8] sm:$0xff] %vm539, 0.0
          %542 = vst.msk [vmem:[#allocation2 + $0x10] sm:$0xff] %vm539, 0.0
          %543 = vst.msk [vmem:[#allocation2 + $0x18] sm:$0xff] %vm539, 0.0
          %544 = vst.msk [vmem:[#allocation2 + $0x20] sm:$0xff] %vm539, 0.0
          %545 = vst.msk [vmem:[#allocation2 + $0x28] sm:$0xff] %vm539, 0.0
          %546 = vst.msk [vmem:[#allocation2 + $0x30] sm:$0xff] %vm539, 0.0
          %547 = vst.msk [vmem:[#allocation2 + $0x38] sm:$0xff] %vm539, 0.0
          %548 = vst.msk [vmem:[#allocation2 + $0x40] sm:$0xff] %vm539, 0.0
          %549 = vst.msk [vmem:[#allocation2 + $0x48] sm:$0xff] %vm539, 0.0
        $region97: #{tpu_custom_call.1} parent=88 // pred_fallthru
          _
        // Predicated region
        $region98: #{tpu_custom_call.1} parent=88 // pred_check
          %p550 = pneg %p533
        $region99: #{tpu_custom_call.1} parent=88 // pred_check_branch
          %552 = sbr.rel (%p550) target = $region101
        $region100: #{tpu_custom_call.1} parent=88 // pred_region
          %v553 = vld [vmem:[%s500] sm:$0xf]
          %v554 = vld [vmem:[%s500 + $0x4] sm:$0xf]
          %v555 = vld [vmem:[%s500 + $0x8] sm:$0xf]
          %v556 = vld [vmem:[%s500 + $0xc] sm:$0xf]
          %v557 = vld [vmem:[%s500 + $0x10] sm:$0xf]
          %v558 = vld [vmem:[%s500 + $0x14] sm:$0xf]
          %v559 = vld [vmem:[%s500 + $0x18] sm:$0xf]
          %v560 = vld [vmem:[%s500 + $0x1c] sm:$0xf]
          %v561 = vld [vmem:[%s500 + $0x20] sm:$0xf]
          %v562 = vld [vmem:[%s500 + $0x24] sm:$0xf]
          %v563 = vld [vmem:[%s500 + $0x28] sm:$0xf]
          %v564 = vld [vmem:[%s500 + $0x2c] sm:$0xf]
          %v565 = vld [vmem:[%s500 + $0x30] sm:$0xf]
          %v566 = vld [vmem:[%s500 + $0x34] sm:$0xf]
          %v567 = vld [vmem:[%s500 + $0x38] sm:$0xf]
          %v568 = vld [vmem:[%s500 + $0x3c] sm:$0xf]
          %v569 = vld [vmem:[#allocation2] sm:$0xff]
          %v570 = vld [vmem:[#allocation2 + $0x8] sm:$0xff]
          %v571 = vld [vmem:[#allocation2 + $0x10] sm:$0xff]
          %v572 = vld [vmem:[#allocation2 + $0x18] sm:$0xff]
          %v573 = vld [vmem:[#allocation2 + $0x20] sm:$0xff]
          %v574 = vld [vmem:[#allocation2 + $0x28] sm:$0xff]
          %v575 = vld [vmem:[#allocation2 + $0x30] sm:$0xff]
          %v576 = vld [vmem:[#allocation2 + $0x38] sm:$0xff]
          %v577 = vld [vmem:[#allocation2 + $0x40] sm:$0xff]
          %v578 = vld [vmem:[#allocation2 + $0x48] sm:$0xff]
          %v579 = vld [vmem:[%s433] sm:$0xf]
          %v580 = vld [vmem:[%s433 + $0x4] sm:$0xf]
          %v581 = vld [vmem:[%s433 + $0x8] sm:$0xf]
          %v582 = vld [vmem:[%s433 + $0xc] sm:$0xf]
          %v583 = vld [vmem:[%s433 + $0x10] sm:$0xf]
          %v584 = vld [vmem:[%s433 + $0x14] sm:$0xf]
          %v585 = vld [vmem:[%s433 + $0x18] sm:$0xf]
          %v586 = vld [vmem:[%s433 + $0x1c] sm:$0xf]
          %v587 = vld [vmem:[%s433 + $0x20] sm:$0xf]
          %v588 = vld [vmem:[%s433 + $0x24] sm:$0xf]
          %v599 = vunpack.c.l.b16 %v579
          %v600 = vunpack.c.l.b16 %v580
          %v601 = vunpack.c.l.b16 %v581
          %v602 = vunpack.c.l.b16 %v582
          %v603 = vunpack.c.l.b16 %v583
          %v604 = vunpack.c.l.b16 %v584
          %v605 = vunpack.c.l.b16 %v585
          %v606 = vunpack.c.l.b16 %v586
          %v607 = vunpack.c.l.b16 %v587
          %v608 = vunpack.c.l.b16 %v588
          %v609 = vpack.c.b16 %v600, %v599
          %v610 = vpack.c.b16 %v602, %v601
          %v611 = vpack.c.b16 %v604, %v603
          %v612 = vpack.c.b16 %v606, %v605
          %v613 = vpack.c.b16 %v608, %v607
          %v635 = vunpack.c.l.b16 %v553
          %v636 = vunpack.c.l.b16 %v554
          %v637 = vunpack.c.l.b16 %v555
          %v638 = vunpack.c.l.b16 %v556
          %v639 = vunpack.c.l.b16 %v557
          %v640 = vunpack.c.l.b16 %v558
          %v641 = vunpack.c.l.b16 %v559
          %v642 = vunpack.c.l.b16 %v560
          %v643 = vunpack.c.l.b16 %v561
          %v644 = vunpack.c.l.b16 %v562
          %v645 = vunpack.c.l.b16 %v563
          %v646 = vunpack.c.l.b16 %v564
          %v647 = vunpack.c.l.b16 %v565
          %v648 = vunpack.c.l.b16 %v566
          %v649 = vunpack.c.l.b16 %v567
          %v650 = vunpack.c.l.b16 %v568
          %v651 = vpack.c.b16 %v636, %v635
          %v652 = vpack.c.b16 %v638, %v637
          %v653 = vpack.c.b16 %v640, %v639
          %v654 = vpack.c.b16 %v642, %v641
          %v655 = vpack.c.b16 %v644, %v643
          %v656 = vpack.c.b16 %v646, %v645
          %v657 = vpack.c.b16 %v648, %v647
          %v658 = vpack.c.b16 %v650, %v649
          %667 = vmatprep.subr.bf16.mxu0 0
          %668 = vmatpush1.bf16.msra.mxu0 %v658
          %669 = vmatprep.subr.bf16.mxu0 0
          %670 = vmatpush1.bf16.msra.mxu0 %v657
          %671 = vmatprep.subr.bf16.mxu0 0
          %672 = vmatpush1.bf16.msra.mxu0 %v656
          %673 = vmatprep.subr.bf16.mxu0 0
          %674 = vmatpush1.bf16.msra.mxu0 %v655
          %675 = vmatprep.subr.bf16.mxu0 0
          %676 = vmatpush1.bf16.msra.mxu0 %v654
          %677 = vmatprep.subr.bf16.mxu0 0
          %678 = vmatpush1.bf16.msra.mxu0 %v653
          %679 = vmatprep.subr.bf16.mxu0 0
          %680 = vmatpush1.bf16.msra.mxu0 %v652
          %681 = vmatprep.subr.bf16.mxu0 0
          %682 = vmatpush1.bf16.msra.mxu0 %v651
          %683 = vmatprep.subr.bf16.mxu0 0
          %684 = vmatpush2.bf16.msra.mxu0 0
          %685 = vmatprep.subr.bf16.mxu0 0
          %686 = vmatpush2.bf16.msra.mxu0 0
          %687 = vmatprep.subr.bf16.mxu0 0
          %688 = vmatpush2.bf16.msra.mxu0 0
          %689 = vmatprep.subr.bf16.mxu0 0
          %690 = vmatpush2.bf16.msra.mxu0 0
          %691 = vmatprep.subr.bf16.mxu0 0
          %692 = vmatpush2.bf16.msra.mxu0 0
          %693 = vmatprep.subr.bf16.mxu0 0
          %694 = vmatpush2.bf16.msra.mxu0 0
          %695 = vmatprep.subr.bf16.mxu0 0
          %696 = vmatpush2.bf16.msra.mxu0 0
          %697 = vmatprep.subr.bf16.mxu0 0
          %698 = vmatpush2.bf16.msra.mxu0 0
          %699 = vmatprep.mubr.bf16.mxu0 0
          %700 = vmatmul.mubr.bf16.gmra.mxu0 %v609
          %v701 = vpop.f32.mrf.mxu0
          %v702 = vadd.f32 0.0, %v701
          %v703 = vpop.f32.mrf.mxu0
          %v704 = vpop.f32.mrf.mxu0
          %v705 = vadd.f32 0.0, %v704
          %v706 = vpop.f32.mrf.mxu0
          %707 = vmatprep.mubr.bf16.mxu0 0
          %708 = vmatmul.mubr.bf16.gmra.mxu0 %v610
          %v709 = vpop.f32.mrf.mxu0
          %v710 = vadd.f32 0.0, %v709
          %v711 = vpop.f32.mrf.mxu0
          %v712 = vpop.f32.mrf.mxu0
          %v713 = vadd.f32 0.0, %v712
          %v714 = vpop.f32.mrf.mxu0
          %715 = vmatprep.mubr.bf16.mxu0 0
          %716 = vmatmul.mubr.bf16.gmra.mxu0 %v611
          %v717 = vpop.f32.mrf.mxu0
          %v718 = vadd.f32 0.0, %v717
          %v719 = vpop.f32.mrf.mxu0
          %v720 = vpop.f32.mrf.mxu0
          %v721 = vadd.f32 0.0, %v720
          %v722 = vpop.f32.mrf.mxu0
          %723 = vmatprep.mubr.bf16.mxu0 0
          %724 = vmatmul.mubr.bf16.gmra.mxu0 %v612
          %v725 = vpop.f32.mrf.mxu0
          %v726 = vadd.f32 0.0, %v725
          %v727 = vpop.f32.mrf.mxu0
          %v728 = vpop.f32.mrf.mxu0
          %v729 = vadd.f32 0.0, %v728
          %v730 = vpop.f32.mrf.mxu0
          %731 = vmatprep.mubr.bf16.mxu0 0
          %732 = vmatmul.mubr.bf16.gmra.mxu0 %v613
          %v733 = vpop.f32.mrf.mxu0
          %v734 = vadd.f32 0.0, %v733
          %v735 = vpop.f32.mrf.mxu0
          %v736 = vpop.f32.mrf.mxu0
          %v737 = vadd.f32 0.0, %v736
          %v738 = vpop.f32.mrf.mxu0
          %739 = vdwg.mxu0
          %v740 = vadd.f32 %v569, %v702
          %v741 = vadd.f32 %v570, %v705
          %v742 = vadd.f32 %v571, %v710
          %v743 = vadd.f32 %v572, %v713
          %v744 = vadd.f32 %v573, %v718
          %v745 = vadd.f32 %v574, %v721
          %v746 = vadd.f32 %v575, %v726
          %v747 = vadd.f32 %v576, %v729
          %v748 = vadd.f32 %v577, %v734
          %v749 = vadd.f32 %v578, %v737
          %vm750 = vcmask 64512
          %751 = vst.msk [vmem:[#allocation2] sm:$0xff] %vm750, %v740
          %752 = vst.msk [vmem:[#allocation2 + $0x8] sm:$0xff] %vm750, %v741
          %753 = vst.msk [vmem:[#allocation2 + $0x10] sm:$0xff] %vm750, %v742
          %754 = vst.msk [vmem:[#allocation2 + $0x18] sm:$0xff] %vm750, %v743
          %755 = vst.msk [vmem:[#allocation2 + $0x20] sm:$0xff] %vm750, %v744
          %756 = vst.msk [vmem:[#allocation2 + $0x28] sm:$0xff] %vm750, %v745
          %757 = vst.msk [vmem:[#allocation2 + $0x30] sm:$0xff] %vm750, %v746
          %758 = vst.msk [vmem:[#allocation2 + $0x38] sm:$0xff] %vm750, %v747
          %759 = vst.msk [vmem:[#allocation2 + $0x40] sm:$0xff] %vm750, %v748
          %760 = vst.msk [vmem:[#allocation2 + $0x48] sm:$0xff] %vm750, %v749
          %s761 = smul.u32 %s26, 128
          %v762 = vld [vmem:[%s3] sm:$0xf]
          %v764 = vsel %vm750, %v651, 0
          %v767 = vsel %vm750, %v652, 0
          %v770 = vsel %vm750, %v653, 0
          %v773 = vsel %vm750, %v654, 0
          %v776 = vsel %vm750, %v655, 0
          %v779 = vsel %vm750, %v656, 0
          %v782 = vsel %vm750, %v657, 0
          %v785 = vsel %vm750, %v658, 0
          %vm787 = vcmask 1043456
          %v789 = vsel %vm787, %v762, 0
          %791 = vmatprep.subr.bf16.mxu0 0
          %792 = vmatpush1.bf16.msra.mxu0 0
          %793 = vmatprep.subr.bf16.mxu0 0
          %794 = vmatpush1.bf16.msra.mxu0 0
          %795 = vmatprep.subr.bf16.mxu0 0
          %796 = vmatpush1.bf16.msra.mxu0 0
          %797 = vmatprep.subr.bf16.mxu0 0
          %798 = vmatpush1.bf16.msra.mxu0 0
          %799 = vmatprep.subr.bf16.mxu0 0
          %800 = vmatpush1.bf16.msra.mxu0 0
          %801 = vmatprep.subr.bf16.mxu0 0
          %802 = vmatpush1.bf16.msra.mxu0 0
          %803 = vmatprep.subr.bf16.mxu0 0
          %804 = vmatpush1.bf16.msra.mxu0 0
          %805 = vmatprep.subr.bf16.mxu0 0
          %806 = vmatpush1.bf16.msra.mxu0 %v789
          %807 = vmatprep.subr.bf16.mxu0 0
          %808 = vmatpush2.bf16.msra.mxu0 0
          %809 = vmatprep.subr.bf16.mxu0 0
          %810 = vmatpush2.bf16.msra.mxu0 0
          %811 = vmatprep.subr.bf16.mxu0 0
          %812 = vmatpush2.bf16.msra.mxu0 0
          %813 = vmatprep.subr.bf16.mxu0 0
          %814 = vmatpush2.bf16.msra.mxu0 0
          %815 = vmatprep.subr.bf16.mxu0 0
          %816 = vmatpush2.bf16.msra.mxu0 0
          %817 = vmatprep.subr.bf16.mxu0 0
          %818 = vmatpush2.bf16.msra.mxu0 0
          %819 = vmatprep.subr.bf16.mxu0 0
          %820 = vmatpush2.bf16.msra.mxu0 0
          %821 = vmatprep.subr.bf16.mxu0 0
          %822 = vmatpush2.bf16.msra.mxu0 0
          %823 = vmatprep.mubr.bf16.mxu0 0
          %824 = vmatmul.mubr.bf16.gmra.mxu0 %v764
          %v825 = vpop.f32.mrf.mxu0
          %v826 = vadd.f32 0.0, %v825
          %v827 = vpop.f32.mrf.mxu0
          %v828 = vpop.f32.mrf.mxu0
          %v829 = vadd.f32 0.0, %v828
          %v830 = vpop.f32.mrf.mxu0
          %831 = vmatprep.mubr.bf16.mxu0 0
          %832 = vmatmul.mubr.bf16.gmra.mxu0 %v767
          %v833 = vpop.f32.mrf.mxu0
          %v834 = vadd.f32 0.0, %v833
          %v835 = vpop.f32.mrf.mxu0
          %v836 = vpop.f32.mrf.mxu0
          %v837 = vadd.f32 0.0, %v836
          %v838 = vpop.f32.mrf.mxu0
          %839 = vmatprep.mubr.bf16.mxu0 0
          %840 = vmatmul.mubr.bf16.gmra.mxu0 %v770
          %v841 = vpop.f32.mrf.mxu0
          %v842 = vadd.f32 0.0, %v841
          %v843 = vpop.f32.mrf.mxu0
          %v844 = vpop.f32.mrf.mxu0
          %v845 = vadd.f32 0.0, %v844
          %v846 = vpop.f32.mrf.mxu0
          %847 = vmatprep.mubr.bf16.mxu0 0
          %848 = vmatmul.mubr.bf16.gmra.mxu0 %v773
          %v849 = vpop.f32.mrf.mxu0
          %v850 = vadd.f32 0.0, %v849
          %v851 = vpop.f32.mrf.mxu0
          %v852 = vpop.f32.mrf.mxu0
          %v853 = vadd.f32 0.0, %v852
          %v854 = vpop.f32.mrf.mxu0
          %855 = vmatprep.mubr.bf16.mxu0 0
          %856 = vmatmul.mubr.bf16.gmra.mxu0 %v776
          %v857 = vpop.f32.mrf.mxu0
          %v858 = vadd.f32 0.0, %v857
          %v859 = vpop.f32.mrf.mxu0
          %v860 = vpop.f32.mrf.mxu0
          %v861 = vadd.f32 0.0, %v860
          %v862 = vpop.f32.mrf.mxu0
          %863 = vmatprep.mubr.bf16.mxu0 0
          %864 = vmatmul.mubr.bf16.gmra.mxu0 %v779
          %v865 = vpop.f32.mrf.mxu0
          %v866 = vadd.f32 0.0, %v865
          %v867 = vpop.f32.mrf.mxu0
          %v868 = vpop.f32.mrf.mxu0
          %v869 = vadd.f32 0.0, %v868
          %v870 = vpop.f32.mrf.mxu0
          %871 = vmatprep.mubr.bf16.mxu0 0
          %872 = vmatmul.mubr.bf16.gmra.mxu0 %v782
          %v873 = vpop.f32.mrf.mxu0
          %v874 = vadd.f32 0.0, %v873
          %v875 = vpop.f32.mrf.mxu0
          %v876 = vpop.f32.mrf.mxu0
          %v877 = vadd.f32 0.0, %v876
          %v878 = vpop.f32.mrf.mxu0
          %879 = vmatprep.mubr.bf16.mxu0 0
          %880 = vmatmul.mubr.bf16.gmra.mxu0 %v785
          %v881 = vpop.f32.mrf.mxu0
          %v882 = vadd.f32 0.0, %v881
          %v883 = vpop.f32.mrf.mxu0
          %v884 = vpop.f32.mrf.mxu0
          %v885 = vadd.f32 0.0, %v884
          %v886 = vpop.f32.mrf.mxu0
          %887 = vdwg.mxu0
          %s888 = scalar_lea.vmem [#allocation4], %s761
          %vm889 = vcmask 31744
          %890 = vst.msk [vmem:[%s888] sm:$0xff] %vm889, %v826
          %891 = vst.msk [vmem:[%s888 + $0x8] sm:$0xff] %vm889, %v829
          %892 = vst.msk [vmem:[%s888 + $0x10] sm:$0xff] %vm889, %v834
          %893 = vst.msk [vmem:[%s888 + $0x18] sm:$0xff] %vm889, %v837
          %894 = vst.msk [vmem:[%s888 + $0x20] sm:$0xff] %vm889, %v842
          %895 = vst.msk [vmem:[%s888 + $0x28] sm:$0xff] %vm889, %v845
          %896 = vst.msk [vmem:[%s888 + $0x30] sm:$0xff] %vm889, %v850
          %897 = vst.msk [vmem:[%s888 + $0x38] sm:$0xff] %vm889, %v853
          %898 = vst.msk [vmem:[%s888 + $0x40] sm:$0xff] %vm889, %v858
          %899 = vst.msk [vmem:[%s888 + $0x48] sm:$0xff] %vm889, %v861
          %900 = vst.msk [vmem:[%s888 + $0x50] sm:$0xff] %vm889, %v866
          %901 = vst.msk [vmem:[%s888 + $0x58] sm:$0xff] %vm889, %v869
          %902 = vst.msk [vmem:[%s888 + $0x60] sm:$0xff] %vm889, %v874
          %903 = vst.msk [vmem:[%s888 + $0x68] sm:$0xff] %vm889, %v877
          %904 = vst.msk [vmem:[%s888 + $0x70] sm:$0xff] %vm889, %v882
          %905 = vst.msk [vmem:[%s888 + $0x78] sm:$0xff] %vm889, %v885
        $region101: #{tpu_custom_call.1} parent=88 // pred_fallthru
          _
        %p906 = scmp.eq.s32.totalorder %s26, 1
        %p907 = pnand %p533, %p906
        %p908 = pneg %p907
        // Predicated region
        $region102: #{tpu_custom_call.1} parent=88 // pred_check
          _
        $region103: #{tpu_custom_call.1} parent=88 // pred_check_branch
          %910 = sbr.rel (%p907) target = $region105
        $region104: #{tpu_custom_call.1} parent=88 // pred_region
          %v911 = vld [vmem:[#allocation2] sm:$0xff]
          %v912 = vld [vmem:[#allocation2 + $0x8] sm:$0xff]
          %v913 = vld [vmem:[#allocation2 + $0x10] sm:$0xff]
          %v914 = vld [vmem:[#allocation2 + $0x18] sm:$0xff]
          %v915 = vld [vmem:[#allocation2 + $0x20] sm:$0xff]
          %v916 = vld [vmem:[#allocation2 + $0x28] sm:$0xff]
          %v917 = vld [vmem:[#allocation2 + $0x30] sm:$0xff]
          %v918 = vld [vmem:[#allocation2 + $0x38] sm:$0xff]
          %v919 = vld [vmem:[#allocation2 + $0x40] sm:$0xff]
          %v920 = vld [vmem:[%s7] sm:$0xff]
          %v921 = vld [vmem:[%s7 + $0x8] sm:$0xff]
          %v922 = vld [vmem:[%s7 + $0x10] sm:$0xff]
          %v923 = vld [vmem:[%s7 + $0x18] sm:$0xff]
          %v924 = vld [vmem:[%s7 + $0x20] sm:$0xff]
          %v925 = vld [vmem:[%s7 + $0x28] sm:$0xff]
          %v926 = vld [vmem:[%s7 + $0x30] sm:$0xff]
          %v927 = vld [vmem:[%s7 + $0x38] sm:$0xff]
          %v928 = vld [vmem:[%s7 + $0x40] sm:$0xff]
          %930 = vset.pattern.permute.xlu0 0
          %931 = vperm.xlu0 %930, %v920
          %v932 = vpop.permute.xlu0 %931
          %935 = vset.pattern.permute.xlu0 0
          %936 = vperm.xlu0 %935, %v921
          %v937 = vpop.permute.xlu0 %936
          %940 = vset.pattern.permute.xlu0 0
          %941 = vperm.xlu0 %940, %v922
          %v942 = vpop.permute.xlu0 %941
          %945 = vset.pattern.permute.xlu0 0
          %946 = vperm.xlu0 %945, %v923
          %v947 = vpop.permute.xlu0 %946
          %950 = vset.pattern.permute.xlu0 0
          %951 = vperm.xlu0 %950, %v924
          %v952 = vpop.permute.xlu0 %951
          %955 = vset.pattern.permute.xlu0 0
          %956 = vperm.xlu0 %955, %v925
          %v957 = vpop.permute.xlu0 %956
          %960 = vset.pattern.permute.xlu0 0
          %961 = vperm.xlu0 %960, %v926
          %v962 = vpop.permute.xlu0 %961
          %965 = vset.pattern.permute.xlu0 0
          %966 = vperm.xlu0 %965, %v927
          %v967 = vpop.permute.xlu0 %966
          %970 = vset.pattern.permute.xlu0 0
          %971 = vperm.xlu0 %970, %v928
          %v972 = vpop.permute.xlu0 %971
          %v974 = vmul.f32 %v911, %v932
          %v975 = vmul.f32 %v912, %v937
          %v976 = vmul.f32 %v913, %v942
          %v977 = vmul.f32 %v914, %v947
          %v978 = vmul.f32 %v915, %v952
          %v979 = vmul.f32 %v916, %v957
          %v980 = vmul.f32 %v917, %v962
          %v981 = vmul.f32 %v918, %v967
          %v982 = vmul.f32 %v919, %v972
          %vm983 = vcmask 31744
          %984 = vst.msk [vmem:[#allocation3] sm:$0xff] %vm983, 0.0
          %985 = vst.msk [vmem:[#allocation3 + $0x8] sm:$0xff] %vm983, 0.0
          %986 = vst.msk [vmem:[#allocation3 + $0x10] sm:$0xff] %vm983, 0.0
          %987 = vst.msk [vmem:[#allocation3 + $0x18] sm:$0xff] %vm983, 0.0
          %988 = vst.msk [vmem:[#allocation3 + $0x20] sm:$0xff] %vm983, 0.0
          %989 = vst.msk [vmem:[#allocation3 + $0x28] sm:$0xff] %vm983, 0.0
          %990 = vst.msk [vmem:[#allocation3 + $0x30] sm:$0xff] %vm983, 0.0
          %991 = vst.msk [vmem:[#allocation3 + $0x38] sm:$0xff] %vm983, 0.0
          %992 = vst.msk [vmem:[#allocation3 + $0x40] sm:$0xff] %vm983, 0.0
          %993 = vst.msk [vmem:[#allocation3 + $0x48] sm:$0xff] %vm983, 0.0
          %v994 = vld [vmem:[%s4] sm:$0xf]
          %v995 = vunpack.c.l.bf16 %v994
          %v996 = vld [vmem:[%s5] sm:$0x1]
          %v998 = vlaneseq
          %v999 = vshrl.u32 %v998, 7
          %v1000 = vsub.s32 0, %v999
          %v1001 = vrot.slane %v996, %v1000
          %vm1003 = vcmask 64512
          %v1005 = vsel %vm1003, %v974, 0
          %1007 = vmatprep.subr.mxu0 0.0
          %1008 = vmatpush1.msra.mxu0 0.0
          %1009 = vmatprep.subr.mxu0 0.0
          %1010 = vmatpush1.msra.mxu0 0.0
          %1011 = vmatprep.subr.mxu0 0.0
          %1012 = vmatpush1.msra.mxu0 0.0
          %1013 = vmatprep.subr.mxu0 0.0
          %1014 = vmatpush1.msra.mxu0 0.0
          %1015 = vmatprep.subr.mxu0 0.0
          %1016 = vmatpush1.msra.mxu0 0.0
          %1017 = vmatprep.subr.mxu0 0.0
          %1018 = vmatpush1.msra.mxu0 0.0
          %1019 = vmatprep.subr.mxu0 0.0
          %1020 = vmatpush1.msra.mxu0 0.0
          %1021 = vmatprep.subr.mxu0 0.0
          %1022 = vmatpush1.msra.mxu0 0.0
          %1023 = vmatprep.subr.mxu0 0.0
          %1024 = vmatpush1.msra.mxu0 0.0
          %1025 = vmatprep.subr.mxu0 0.0
          %1026 = vmatpush1.msra.mxu0 0.0
          %1027 = vmatprep.subr.mxu0 0.0
          %1028 = vmatpush1.msra.mxu0 0.0
          %1029 = vmatprep.subr.mxu0 0.0
          %1030 = vmatpush1.msra.mxu0 0.0
          %1031 = vmatprep.subr.mxu0 0.0
          %1032 = vmatpush1.msra.mxu0 0.0
          %1033 = vmatprep.subr.mxu0 0.0
          %1034 = vmatpush1.msra.mxu0 0.0
          %1035 = vmatprep.subr.mxu0 0.0
          %1036 = vmatpush1.msra.mxu0 0.0
          %1037 = vmatprep.subr.mxu0 0.0
          %1038 = vmatpush1.msra.mxu0 %v995
          %1039 = vmatprep.subr.mxu0 0.0
          %1040 = vmatpush2.msra.mxu0 0.0
          %1041 = vmatprep.subr.mxu0 0.0
          %1042 = vmatpush2.msra.mxu0 0.0
          %1043 = vmatprep.subr.mxu0 0.0
          %1044 = vmatpush2.msra.mxu0 0.0
          %1045 = vmatprep.subr.mxu0 0.0
          %1046 = vmatpush2.msra.mxu0 0.0
          %1047 = vmatprep.subr.mxu0 0.0
          %1048 = vmatpush2.msra.mxu0 0.0
          %1049 = vmatprep.subr.mxu0 0.0
          %1050 = vmatpush2.msra.mxu0 0.0
          %1051 = vmatprep.subr.mxu0 0.0
          %1052 = vmatpush2.msra.mxu0 0.0
          %1053 = vmatprep.subr.mxu0 0.0
          %1054 = vmatpush2.msra.mxu0 0.0
          %1055 = vmatprep.subr.mxu0 0.0
          %1056 = vmatpush2.msra.mxu0 0.0
          %1057 = vmatprep.subr.mxu0 0.0
          %1058 = vmatpush2.msra.mxu0 0.0
          %1059 = vmatprep.subr.mxu0 0.0
          %1060 = vmatpush2.msra.mxu0 0.0
          %1061 = vmatprep.subr.mxu0 0.0
          %1062 = vmatpush2.msra.mxu0 0.0
          %1063 = vmatprep.subr.mxu0 0.0
          %1064 = vmatpush2.msra.mxu0 0.0
          %1065 = vmatprep.subr.mxu0 0.0
          %1066 = vmatpush2.msra.mxu0 0.0
          %1067 = vmatprep.subr.mxu0 0.0
          %1068 = vmatpush2.msra.mxu0 0.0
          %1069 = vmatprep.subr.mxu0 0.0
          %1070 = vmatpush2.msra.mxu0 0.0
          %1071 = vmatprep.mubr.f32.mxu0 0.0
          %1072 = vmatmul.mubr.f32.gmra.mxu0 %v1005
          %v1073 = vpop.f32.mrf.mxu0
          %v1074 = vadd.f32 %v1001, %v1073
          %v1075 = vpop.f32.mrf.mxu0
          %1076 = vdwg.mxu0
          %1077 = vst.msk [vmem:[#allocation3] sm:$0xff] %vm983, %v1074
          %s1078 = scalar_lea.vmem %s4, 4
          %v1079 = vld [vmem:[%s1078] sm:$0xf]
          %v1080 = vunpack.c.l.bf16 %v1079
          %s1081 = scalar_lea.vmem %s5, 1
          %v1082 = vld [vmem:[%s1081] sm:$0x1]
          %v1084 = vlaneseq
          %v1085 = vshrl.u32 %v1084, 7
          %v1086 = vsub.s32 0, %v1085
          %v1087 = vrot.slane %v1082, %v1086
          %v1090 = vsel %vm1003, %v975, 0
          %1092 = vmatprep.subr.mxu0 0.0
          %1093 = vmatpush1.msra.mxu0 0.0
          %1094 = vmatprep.subr.mxu0 0.0
          %1095 = vmatpush1.msra.mxu0 0.0
          %1096 = vmatprep.subr.mxu0 0.0
          %1097 = vmatpush1.msra.mxu0 0.0
          %1098 = vmatprep.subr.mxu0 0.0
          %1099 = vmatpush1.msra.mxu0 0.0
          %1100 = vmatprep.subr.mxu0 0.0
          %1101 = vmatpush1.msra.mxu0 0.0
          %1102 = vmatprep.subr.mxu0 0.0
          %1103 = vmatpush1.msra.mxu0 0.0
          %1104 = vmatprep.subr.mxu0 0.0
          %1105 = vmatpush1.msra.mxu0 0.0
          %1106 = vmatprep.subr.mxu0 0.0
          %1107 = vmatpush1.msra.mxu0 0.0
          %1108 = vmatprep.subr.mxu0 0.0
          %1109 = vmatpush1.msra.mxu0 0.0
          %1110 = vmatprep.subr.mxu0 0.0
          %1111 = vmatpush1.msra.mxu0 0.0
          %1112 = vmatprep.subr.mxu0 0.0
          %1113 = vmatpush1.msra.mxu0 0.0
          %1114 = vmatprep.subr.mxu0 0.0
          %1115 = vmatpush1.msra.mxu0 0.0
          %1116 = vmatprep.subr.mxu0 0.0
          %1117 = vmatpush1.msra.mxu0 0.0
          %1118 = vmatprep.subr.mxu0 0.0
          %1119 = vmatpush1.msra.mxu0 0.0
          %1120 = vmatprep.subr.mxu0 0.0
          %1121 = vmatpush1.msra.mxu0 0.0
          %1122 = vmatprep.subr.mxu0 0.0
          %1123 = vmatpush1.msra.mxu0 %v1080
          %1124 = vmatprep.subr.mxu0 0.0
          %1125 = vmatpush2.msra.mxu0 0.0
          %1126 = vmatprep.subr.mxu0 0.0
          %1127 = vmatpush2.msra.mxu0 0.0
          %1128 = vmatprep.subr.mxu0 0.0
          %1129 = vmatpush2.msra.mxu0 0.0
          %1130 = vmatprep.subr.mxu0 0.0
          %1131 = vmatpush2.msra.mxu0 0.0
          %1132 = vmatprep.subr.mxu0 0.0
          %1133 = vmatpush2.msra.mxu0 0.0
          %1134 = vmatprep.subr.mxu0 0.0
          %1135 = vmatpush2.msra.mxu0 0.0
          %1136 = vmatprep.subr.mxu0 0.0
          %1137 = vmatpush2.msra.mxu0 0.0
          %1138 = vmatprep.subr.mxu0 0.0
          %1139 = vmatpush2.msra.mxu0 0.0
          %1140 = vmatprep.subr.mxu0 0.0
          %1141 = vmatpush2.msra.mxu0 0.0
          %1142 = vmatprep.subr.mxu0 0.0
          %1143 = vmatpush2.msra.mxu0 0.0
          %1144 = vmatprep.subr.mxu0 0.0
          %1145 = vmatpush2.msra.mxu0 0.0
          %1146 = vmatprep.subr.mxu0 0.0
          %1147 = vmatpush2.msra.mxu0 0.0
          %1148 = vmatprep.subr.mxu0 0.0
          %1149 = vmatpush2.msra.mxu0 0.0
          %1150 = vmatprep.subr.mxu0 0.0
          %1151 = vmatpush2.msra.mxu0 0.0
          %1152 = vmatprep.subr.mxu0 0.0
          %1153 = vmatpush2.msra.mxu0 0.0
          %1154 = vmatprep.subr.mxu0 0.0
          %1155 = vmatpush2.msra.mxu0 0.0
          %1156 = vmatprep.mubr.f32.mxu0 0.0
          %1157 = vmatmul.mubr.f32.gmra.mxu0 %v1090
          %v1158 = vpop.f32.mrf.mxu0
          %v1159 = vadd.f32 %v1087, %v1158
          %v1160 = vpop.f32.mrf.mxu0
          %1161 = vdwg.mxu0
          %1162 = vst.msk [vmem:[#allocation3 + $0x8] sm:$0xff] %vm983, %v1159
          %s1163 = scalar_lea.vmem %s4, 8
          %v1164 = vld [vmem:[%s1163] sm:$0xf]
          %v1165 = vunpack.c.l.bf16 %v1164
          %s1166 = scalar_lea.vmem %s5, 2
          %v1167 = vld [vmem:[%s1166] sm:$0x1]
          %v1169 = vlaneseq
          %v1170 = vshrl.u32 %v1169, 7
          %v1171 = vsub.s32 0, %v1170
          %v1172 = vrot.slane %v1167, %v1171
          %v1175 = vsel %vm1003, %v976, 0
          %v1178 = vsel %vm1003, %v977, 0
          %1180 = vmatprep.subr.mxu0 0.0
          %1181 = vmatpush1.msra.mxu0 0.0
          %1182 = vmatprep.subr.mxu0 0.0
          %1183 = vmatpush1.msra.mxu0 0.0
          %1184 = vmatprep.subr.mxu0 0.0
          %1185 = vmatpush1.msra.mxu0 0.0
          %1186 = vmatprep.subr.mxu0 0.0
          %1187 = vmatpush1.msra.mxu0 0.0
          %1188 = vmatprep.subr.mxu0 0.0
          %1189 = vmatpush1.msra.mxu0 0.0
          %1190 = vmatprep.subr.mxu0 0.0
          %1191 = vmatpush1.msra.mxu0 0.0
          %1192 = vmatprep.subr.mxu0 0.0
          %1193 = vmatpush1.msra.mxu0 0.0
          %1194 = vmatprep.subr.mxu0 0.0
          %1195 = vmatpush1.msra.mxu0 0.0
          %1196 = vmatprep.subr.mxu0 0.0
          %1197 = vmatpush1.msra.mxu0 0.0
          %1198 = vmatprep.subr.mxu0 0.0
          %1199 = vmatpush1.msra.mxu0 0.0
          %1200 = vmatprep.subr.mxu0 0.0
          %1201 = vmatpush1.msra.mxu0 0.0
          %1202 = vmatprep.subr.mxu0 0.0
          %1203 = vmatpush1.msra.mxu0 0.0
          %1204 = vmatprep.subr.mxu0 0.0
          %1205 = vmatpush1.msra.mxu0 0.0
          %1206 = vmatprep.subr.mxu0 0.0
          %1207 = vmatpush1.msra.mxu0 0.0
          %1208 = vmatprep.subr.mxu0 0.0
          %1209 = vmatpush1.msra.mxu0 0.0
          %1210 = vmatprep.subr.mxu0 0.0
          %1211 = vmatpush1.msra.mxu0 %v1165
          %1212 = vmatprep.subr.mxu0 0.0
          %1213 = vmatpush2.msra.mxu0 0.0
          %1214 = vmatprep.subr.mxu0 0.0
          %1215 = vmatpush2.msra.mxu0 0.0
          %1216 = vmatprep.subr.mxu0 0.0
          %1217 = vmatpush2.msra.mxu0 0.0
          %1218 = vmatprep.subr.mxu0 0.0
          %1219 = vmatpush2.msra.mxu0 0.0
          %1220 = vmatprep.subr.mxu0 0.0
          %1221 = vmatpush2.msra.mxu0 0.0
          %1222 = vmatprep.subr.mxu0 0.0
          %1223 = vmatpush2.msra.mxu0 0.0
          %1224 = vmatprep.subr.mxu0 0.0
          %1225 = vmatpush2.msra.mxu0 0.0
          %1226 = vmatprep.subr.mxu0 0.0
          %1227 = vmatpush2.msra.mxu0 0.0
          %1228 = vmatprep.subr.mxu0 0.0
          %1229 = vmatpush2.msra.mxu0 0.0
          %1230 = vmatprep.subr.mxu0 0.0
          %1231 = vmatpush2.msra.mxu0 0.0
          %1232 = vmatprep.subr.mxu0 0.0
          %1233 = vmatpush2.msra.mxu0 0.0
          %1234 = vmatprep.subr.mxu0 0.0
          %1235 = vmatpush2.msra.mxu0 0.0
          %1236 = vmatprep.subr.mxu0 0.0
          %1237 = vmatpush2.msra.mxu0 0.0
          %1238 = vmatprep.subr.mxu0 0.0
          %1239 = vmatpush2.msra.mxu0 0.0
          %1240 = vmatprep.subr.mxu0 0.0
          %1241 = vmatpush2.msra.mxu0 0.0
          %1242 = vmatprep.subr.mxu0 0.0
          %1243 = vmatpush2.msra.mxu0 0.0
          %1244 = vmatprep.mubr.f32.mxu0 0.0
          %1245 = vmatmul.mubr.f32.gmra.mxu0 %v1175
          %v1246 = vpop.f32.mrf.mxu0
          %v1247 = vadd.f32 %v1172, %v1246
          %v1248 = vpop.f32.mrf.mxu0
          %1249 = vmatprep.mubr.f32.mxu0 0.0
          %1250 = vmatmul.mubr.f32.gmra.mxu0 %v1178
          %v1251 = vpop.f32.mrf.mxu0
          %v1252 = vadd.f32 %v1172, %v1251
          %v1253 = vpop.f32.mrf.mxu0
          %1254 = vdwg.mxu0
          %1255 = vst.msk [vmem:[#allocation3 + $0x10] sm:$0xff] %vm983, %v1247
          %1256 = vst.msk [vmem:[#allocation3 + $0x18] sm:$0xff] %vm983, %v1252
          %s1257 = scalar_lea.vmem %s4, 12
          %v1258 = vld [vmem:[%s1257] sm:$0xf]
          %v1259 = vunpack.c.l.bf16 %v1258
          %s1260 = scalar_lea.vmem %s5, 3
          %v1261 = vld [vmem:[%s1260] sm:$0x1]
          %v1263 = vlaneseq
          %v1264 = vshrl.u32 %v1263, 7
          %v1265 = vsub.s32 0, %v1264
          %v1266 = vrot.slane %v1261, %v1265
          %v1269 = vsel %vm1003, %v978, 0
          %v1272 = vsel %vm1003, %v979, 0
          %v1275 = vsel %vm1003, %v980, 0
          %v1278 = vsel %vm1003, %v981, 0
          %v1281 = vsel %vm1003, %v982, 0
          %1283 = vmatprep.subr.mxu0 0.0
          %1284 = vmatpush1.msra.mxu0 0.0
          %1285 = vmatprep.subr.mxu0 0.0
          %1286 = vmatpush1.msra.mxu0 0.0
          %1287 = vmatprep.subr.mxu0 0.0
          %1288 = vmatpush1.msra.mxu0 0.0
          %1289 = vmatprep.subr.mxu0 0.0
          %1290 = vmatpush1.msra.mxu0 0.0
          %1291 = vmatprep.subr.mxu0 0.0
          %1292 = vmatpush1.msra.mxu0 0.0
          %1293 = vmatprep.subr.mxu0 0.0
          %1294 = vmatpush1.msra.mxu0 0.0
          %1295 = vmatprep.subr.mxu0 0.0
          %1296 = vmatpush1.msra.mxu0 0.0
          %1297 = vmatprep.subr.mxu0 0.0
          %1298 = vmatpush1.msra.mxu0 0.0
          %1299 = vmatprep.subr.mxu0 0.0
          %1300 = vmatpush1.msra.mxu0 0.0
          %1301 = vmatprep.subr.mxu0 0.0
          %1302 = vmatpush1.msra.mxu0 0.0
          %1303 = vmatprep.subr.mxu0 0.0
          %1304 = vmatpush1.msra.mxu0 0.0
          %1305 = vmatprep.subr.mxu0 0.0
          %1306 = vmatpush1.msra.mxu0 0.0
          %1307 = vmatprep.subr.mxu0 0.0
          %1308 = vmatpush1.msra.mxu0 0.0
          %1309 = vmatprep.subr.mxu0 0.0
          %1310 = vmatpush1.msra.mxu0 0.0
          %1311 = vmatprep.subr.mxu0 0.0
          %1312 = vmatpush1.msra.mxu0 0.0
          %1313 = vmatprep.subr.mxu0 0.0
          %1314 = vmatpush1.msra.mxu0 %v1259
          %1315 = vmatprep.subr.mxu0 0.0
          %1316 = vmatpush2.msra.mxu0 0.0
          %1317 = vmatprep.subr.mxu0 0.0
          %1318 = vmatpush2.msra.mxu0 0.0
          %1319 = vmatprep.subr.mxu0 0.0
          %1320 = vmatpush2.msra.mxu0 0.0
          %1321 = vmatprep.subr.mxu0 0.0
          %1322 = vmatpush2.msra.mxu0 0.0
          %1323 = vmatprep.subr.mxu0 0.0
          %1324 = vmatpush2.msra.mxu0 0.0
          %1325 = vmatprep.subr.mxu0 0.0
          %1326 = vmatpush2.msra.mxu0 0.0
          %1327 = vmatprep.subr.mxu0 0.0
          %1328 = vmatpush2.msra.mxu0 0.0
          %1329 = vmatprep.subr.mxu0 0.0
          %1330 = vmatpush2.msra.mxu0 0.0
          %1331 = vmatprep.subr.mxu0 0.0
          %1332 = vmatpush2.msra.mxu0 0.0
          %1333 = vmatprep.subr.mxu0 0.0
          %1334 = vmatpush2.msra.mxu0 0.0
          %1335 = vmatprep.subr.mxu0 0.0
          %1336 = vmatpush2.msra.mxu0 0.0
          %1337 = vmatprep.subr.mxu0 0.0
          %1338 = vmatpush2.msra.mxu0 0.0
          %1339 = vmatprep.subr.mxu0 0.0
          %1340 = vmatpush2.msra.mxu0 0.0
          %1341 = vmatprep.subr.mxu0 0.0
          %1342 = vmatpush2.msra.mxu0 0.0
          %1343 = vmatprep.subr.mxu0 0.0
          %1344 = vmatpush2.msra.mxu0 0.0
          %1345 = vmatprep.subr.mxu0 0.0
          %1346 = vmatpush2.msra.mxu0 0.0
          %1347 = vmatprep.mubr.f32.mxu0 0.0
          %1348 = vmatmul.mubr.f32.gmra.mxu0 %v1269
          %v1349 = vpop.f32.mrf.mxu0
          %v1350 = vadd.f32 %v1266, %v1349
          %v1351 = vpop.f32.mrf.mxu0
          %1352 = vmatprep.mubr.f32.mxu0 0.0
          %1353 = vmatmul.mubr.f32.gmra.mxu0 %v1272
          %v1354 = vpop.f32.mrf.mxu0
          %v1355 = vadd.f32 %v1266, %v1354
          %v1356 = vpop.f32.mrf.mxu0
          %1357 = vmatprep.mubr.f32.mxu0 0.0
          %1358 = vmatmul.mubr.f32.gmra.mxu0 %v1275
          %v1359 = vpop.f32.mrf.mxu0
          %v1360 = vadd.f32 %v1266, %v1359
          %v1361 = vpop.f32.mrf.mxu0
          %1362 = vmatprep.mubr.f32.mxu0 0.0
          %1363 = vmatmul.mubr.f32.gmra.mxu0 %v1278
          %v1364 = vpop.f32.mrf.mxu0
          %v1365 = vadd.f32 %v1266, %v1364
          %v1366 = vpop.f32.mrf.mxu0
          %1367 = vmatprep.mubr.f32.mxu0 0.0
          %1368 = vmatmul.mubr.f32.gmra.mxu0 %v1281
          %v1369 = vpop.f32.mrf.mxu0
          %v1370 = vadd.f32 %v1266, %v1369
          %v1371 = vpop.f32.mrf.mxu0
          %1372 = vdwg.mxu0
          %1373 = vst.msk [vmem:[#allocation3 + $0x20] sm:$0xff] %vm983, %v1350
          %1374 = vst.msk [vmem:[#allocation3 + $0x28] sm:$0xff] %vm983, %v1355
          %1375 = vst.msk [vmem:[#allocation3 + $0x30] sm:$0xff] %vm983, %v1360
          %1376 = vst.msk [vmem:[#allocation3 + $0x38] sm:$0xff] %vm983, %v1365
          %1377 = vst.msk [vmem:[#allocation3 + $0x40] sm:$0xff] %vm983, %v1370
        $region105: #{tpu_custom_call.1} parent=88 // pred_fallthru
          _
        %p1378 = scmp.eq.s32.totalorder %s25, 1
        // Predicated region
        $region106: #{tpu_custom_call.1} parent=88 // pred_check
          %p1379 = pneg %p1378
        $region107: #{tpu_custom_call.1} parent=88 // pred_check_branch
          %1381 = sbr.rel (%p1379) target = $region109
        $region108: #{tpu_custom_call.1} parent=88 // pred_region
          %s1382 = smul.u32 %s26, 128
          %s1383 = scalar_lea.vmem [#allocation4], %s1382
          %v1384 = vld [vmem:[%s1383] sm:$0xff]
          %v1385 = vld [vmem:[%s1383 + $0x8] sm:$0xff]
          %v1386 = vld [vmem:[%s1383 + $0x10] sm:$0xff]
          %v1387 = vld [vmem:[%s1383 + $0x18] sm:$0xff]
          %v1388 = vld [vmem:[%s1383 + $0x20] sm:$0xff]
          %v1389 = vld [vmem:[%s1383 + $0x28] sm:$0xff]
          %v1390 = vld [vmem:[%s1383 + $0x30] sm:$0xff]
          %v1391 = vld [vmem:[%s1383 + $0x38] sm:$0xff]
          %v1392 = vld [vmem:[%s1383 + $0x40] sm:$0xff]
          %v1393 = vld [vmem:[%s1383 + $0x48] sm:$0xff]
          %v1394 = vld [vmem:[%s1383 + $0x50] sm:$0xff]
          %v1395 = vld [vmem:[%s1383 + $0x58] sm:$0xff]
          %v1396 = vld [vmem:[%s1383 + $0x60] sm:$0xff]
          %v1397 = vld [vmem:[%s1383 + $0x68] sm:$0xff]
          %v1398 = vld [vmem:[%s1383 + $0x70] sm:$0xff]
          %v1399 = vld [vmem:[%s1383 + $0x78] sm:$0xff]
          %v1400 = vld [vmem:[%s515] sm:$0xf]
          %v1401 = vld [vmem:[%s515 + $0x4] sm:$0xf]
          %v1402 = vld [vmem:[%s515 + $0x8] sm:$0xf]
          %v1403 = vld [vmem:[%s515 + $0xc] sm:$0xf]
          %v1404 = vld [vmem:[%s515 + $0x10] sm:$0xf]
          %v1405 = vld [vmem:[%s515 + $0x14] sm:$0xf]
          %v1406 = vld [vmem:[%s515 + $0x18] sm:$0xf]
          %v1407 = vld [vmem:[%s515 + $0x1c] sm:$0xf]
          %v1408 = vld [vmem:[%s515 + $0x20] sm:$0xf]
          %v1409 = vld [vmem:[%s515 + $0x24] sm:$0xf]
          %v1410 = vld [vmem:[%s515 + $0x28] sm:$0xf]
          %v1411 = vld [vmem:[%s515 + $0x2c] sm:$0xf]
          %v1412 = vld [vmem:[%s515 + $0x30] sm:$0xf]
          %v1413 = vld [vmem:[%s515 + $0x34] sm:$0xf]
          %v1414 = vld [vmem:[%s515 + $0x38] sm:$0xf]
          %v1415 = vld [vmem:[%s515 + $0x3c] sm:$0xf]
          %v1416 = vunpack.c.l.bf16 %v1400
          %v1417 = vunpack.c.l.bf16 %v1401
          %v1418 = vunpack.c.l.bf16 %v1402
          %v1419 = vunpack.c.l.bf16 %v1403
          %v1420 = vunpack.c.l.bf16 %v1404
          %v1421 = vunpack.c.l.bf16 %v1405
          %v1422 = vunpack.c.l.bf16 %v1406
          %v1423 = vunpack.c.l.bf16 %v1407
          %v1424 = vunpack.c.l.bf16 %v1408
          %v1425 = vunpack.c.l.bf16 %v1409
          %v1426 = vunpack.c.l.bf16 %v1410
          %v1427 = vunpack.c.l.bf16 %v1411
          %v1428 = vunpack.c.l.bf16 %v1412
          %v1429 = vunpack.c.l.bf16 %v1413
          %v1430 = vunpack.c.l.bf16 %v1414
          %v1431 = vunpack.c.l.bf16 %v1415
          %v1432 = vld [vmem:[#allocation3] sm:$0xff]
          %v1433 = vld [vmem:[#allocation3 + $0x8] sm:$0xff]
          %v1434 = vld [vmem:[#allocation3 + $0x10] sm:$0xff]
          %v1435 = vld [vmem:[#allocation3 + $0x18] sm:$0xff]
          %v1436 = vld [vmem:[#allocation3 + $0x20] sm:$0xff]
          %v1437 = vld [vmem:[#allocation3 + $0x28] sm:$0xff]
          %v1438 = vld [vmem:[#allocation3 + $0x30] sm:$0xff]
          %v1439 = vld [vmem:[#allocation3 + $0x38] sm:$0xff]
          %v1440 = vld [vmem:[#allocation3 + $0x40] sm:$0xff]
          %v1441 = vld [vmem:[#allocation3 + $0x48] sm:$0xff]
          %vm1442 = vcmask 654336
          %v1444 = vsel %vm1442, %v1416, 0
          %v1447 = vsel %vm1442, %v1417, 0
          %v1450 = vsel %vm1442, %v1418, 0
          %v1453 = vsel %vm1442, %v1419, 0
          %v1456 = vsel %vm1442, %v1420, 0
          %v1459 = vsel %vm1442, %v1421, 0
          %v1462 = vsel %vm1442, %v1422, 0
          %v1465 = vsel %vm1442, %v1423, 0
          %v1468 = vsel %vm1442, %v1424, 0
          %v1471 = vsel %vm1442, %v1425, 0
          %v1474 = vsel %vm1442, %v1426, 0
          %v1477 = vsel %vm1442, %v1427, 0
          %v1480 = vsel %vm1442, %v1428, 0
          %v1483 = vsel %vm1442, %v1429, 0
          %v1486 = vsel %vm1442, %v1430, 0
          %v1489 = vsel %vm1442, %v1431, 0
          %1491 = vmatprep.subr.mxu0 0.0
          %1492 = vmatpush1.msra.mxu0 0.0
          %1493 = vmatprep.subr.mxu0 0.0
          %1494 = vmatpush1.msra.mxu0 0.0
          %1495 = vmatprep.subr.mxu0 0.0
          %1496 = vmatpush1.msra.mxu0 0.0
          %1497 = vmatprep.subr.mxu0 0.0
          %1498 = vmatpush1.msra.mxu0 0.0
          %1499 = vmatprep.subr.mxu0 0.0
          %1500 = vmatpush1.msra.mxu0 0.0
          %1501 = vmatprep.subr.mxu0 0.0
          %1502 = vmatpush1.msra.mxu0 0.0
          %1503 = vmatprep.subr.mxu0 0.0
          %1504 = vmatpush1.msra.mxu0 %v1441
          %1505 = vmatprep.subr.mxu0 0.0
          %1506 = vmatpush1.msra.mxu0 %v1440
          %1507 = vmatprep.subr.mxu0 0.0
          %1508 = vmatpush1.msra.mxu0 %v1439
          %1509 = vmatprep.subr.mxu0 0.0
          %1510 = vmatpush1.msra.mxu0 %v1438
          %1511 = vmatprep.subr.mxu0 0.0
          %1512 = vmatpush1.msra.mxu0 %v1437
          %1513 = vmatprep.subr.mxu0 0.0
          %1514 = vmatpush1.msra.mxu0 %v1436
          %1515 = vmatprep.subr.mxu0 0.0
          %1516 = vmatpush1.msra.mxu0 %v1435
          %1517 = vmatprep.subr.mxu0 0.0
          %1518 = vmatpush1.msra.mxu0 %v1434
          %1519 = vmatprep.subr.mxu0 0.0
          %1520 = vmatpush1.msra.mxu0 %v1433
          %1521 = vmatprep.subr.mxu0 0.0
          %1522 = vmatpush1.msra.mxu0 %v1432
          %1523 = vmatprep.subr.mxu0 0.0
          %1524 = vmatpush2.msra.mxu0 0.0
          %1525 = vmatprep.subr.mxu0 0.0
          %1526 = vmatpush2.msra.mxu0 0.0
          %1527 = vmatprep.subr.mxu0 0.0
          %1528 = vmatpush2.msra.mxu0 0.0
          %1529 = vmatprep.subr.mxu0 0.0
          %1530 = vmatpush2.msra.mxu0 0.0
          %1531 = vmatprep.subr.mxu0 0.0
          %1532 = vmatpush2.msra.mxu0 0.0
          %1533 = vmatprep.subr.mxu0 0.0
          %1534 = vmatpush2.msra.mxu0 0.0
          %1535 = vmatprep.subr.mxu0 0.0
          %1536 = vmatpush2.msra.mxu0 0.0
          %1537 = vmatprep.subr.mxu0 0.0
          %1538 = vmatpush2.msra.mxu0 0.0
          %1539 = vmatprep.subr.mxu0 0.0
          %1540 = vmatpush2.msra.mxu0 0.0
          %1541 = vmatprep.subr.mxu0 0.0
          %1542 = vmatpush2.msra.mxu0 0.0
          %1543 = vmatprep.subr.mxu0 0.0
          %1544 = vmatpush2.msra.mxu0 0.0
          %1545 = vmatprep.subr.mxu0 0.0
          %1546 = vmatpush2.msra.mxu0 0.0
          %1547 = vmatprep.subr.mxu0 0.0
          %1548 = vmatpush2.msra.mxu0 0.0
          %1549 = vmatprep.subr.mxu0 0.0
          %1550 = vmatpush2.msra.mxu0 0.0
          %1551 = vmatprep.subr.mxu0 0.0
          %1552 = vmatpush2.msra.mxu0 0.0
          %1553 = vmatprep.subr.mxu0 0.0
          %1554 = vmatpush2.msra.mxu0 0.0
          %1555 = vmatprep.mubr.f32.mxu0 0.0
          %1556 = vmatmul.mubr.f32.gmra.mxu0 %v1444
          %v1557 = vpop.f32.mrf.mxu0
          %v1558 = vadd.f32 0.0, %v1557
          %v1559 = vpop.f32.mrf.mxu0
          %1560 = vmatprep.mubr.f32.mxu0 0.0
          %1561 = vmatmul.mubr.f32.gmra.mxu0 %v1447
          %v1562 = vpop.f32.mrf.mxu0
          %v1563 = vadd.f32 0.0, %v1562
          %v1564 = vpop.f32.mrf.mxu0
          %1565 = vmatprep.mubr.f32.mxu0 0.0
          %1566 = vmatmul.mubr.f32.gmra.mxu0 %v1450
          %v1567 = vpop.f32.mrf.mxu0
          %v1568 = vadd.f32 0.0, %v1567
          %v1569 = vpop.f32.mrf.mxu0
          %1570 = vmatprep.mubr.f32.mxu0 0.0
          %1571 = vmatmul.mubr.f32.gmra.mxu0 %v1453
          %v1572 = vpop.f32.mrf.mxu0
          %v1573 = vadd.f32 0.0, %v1572
          %v1574 = vpop.f32.mrf.mxu0
          %1575 = vmatprep.mubr.f32.mxu0 0.0
          %1576 = vmatmul.mubr.f32.gmra.mxu0 %v1456
          %v1577 = vpop.f32.mrf.mxu0
          %v1578 = vadd.f32 0.0, %v1577
          %v1579 = vpop.f32.mrf.mxu0
          %1580 = vmatprep.mubr.f32.mxu0 0.0
          %1581 = vmatmul.mubr.f32.gmra.mxu0 %v1459
          %v1582 = vpop.f32.mrf.mxu0
          %v1583 = vadd.f32 0.0, %v1582
          %v1584 = vpop.f32.mrf.mxu0
          %1585 = vmatprep.mubr.f32.mxu0 0.0
          %1586 = vmatmul.mubr.f32.gmra.mxu0 %v1462
          %v1587 = vpop.f32.mrf.mxu0
          %v1588 = vadd.f32 0.0, %v1587
          %v1589 = vpop.f32.mrf.mxu0
          %1590 = vmatprep.mubr.f32.mxu0 0.0
          %1591 = vmatmul.mubr.f32.gmra.mxu0 %v1465
          %v1592 = vpop.f32.mrf.mxu0
          %v1593 = vadd.f32 0.0, %v1592
          %v1594 = vpop.f32.mrf.mxu0
          %1595 = vmatprep.mubr.f32.mxu0 0.0
          %1596 = vmatmul.mubr.f32.gmra.mxu0 %v1468
          %v1597 = vpop.f32.mrf.mxu0
          %v1598 = vadd.f32 0.0, %v1597
          %v1599 = vpop.f32.mrf.mxu0
          %1600 = vmatprep.mubr.f32.mxu0 0.0
          %1601 = vmatmul.mubr.f32.gmra.mxu0 %v1471
          %v1602 = vpop.f32.mrf.mxu0
          %v1603 = vadd.f32 0.0, %v1602
          %v1604 = vpop.f32.mrf.mxu0
          %1605 = vmatprep.mubr.f32.mxu0 0.0
          %1606 = vmatmul.mubr.f32.gmra.mxu0 %v1474
          %v1607 = vpop.f32.mrf.mxu0
          %v1608 = vadd.f32 0.0, %v1607
          %v1609 = vpop.f32.mrf.mxu0
          %1610 = vmatprep.mubr.f32.mxu0 0.0
          %1611 = vmatmul.mubr.f32.gmra.mxu0 %v1477
          %v1612 = vpop.f32.mrf.mxu0
          %v1613 = vadd.f32 0.0, %v1612
          %v1614 = vpop.f32.mrf.mxu0
          %1615 = vmatprep.mubr.f32.mxu0 0.0
          %1616 = vmatmul.mubr.f32.gmra.mxu0 %v1480
          %v1617 = vpop.f32.mrf.mxu0
          %v1618 = vadd.f32 0.0, %v1617
          %v1619 = vpop.f32.mrf.mxu0
          %1620 = vmatprep.mubr.f32.mxu0 0.0
          %1621 = vmatmul.mubr.f32.gmra.mxu0 %v1483
          %v1622 = vpop.f32.mrf.mxu0
          %v1623 = vadd.f32 0.0, %v1622
          %v1624 = vpop.f32.mrf.mxu0
          %1625 = vmatprep.mubr.f32.mxu0 0.0
          %1626 = vmatmul.mubr.f32.gmra.mxu0 %v1486
          %v1627 = vpop.f32.mrf.mxu0
          %v1628 = vadd.f32 0.0, %v1627
          %v1629 = vpop.f32.mrf.mxu0
          %1630 = vmatprep.mubr.f32.mxu0 0.0
          %1631 = vmatmul.mubr.f32.gmra.mxu0 %v1489
          %v1632 = vpop.f32.mrf.mxu0
          %v1633 = vadd.f32 0.0, %v1632
          %v1634 = vpop.f32.mrf.mxu0
          %1635 = vdwg.mxu0
          %v1636 = vadd.f32 %v1384, %v1558
          %v1637 = vadd.f32 %v1385, %v1563
          %v1638 = vadd.f32 %v1386, %v1568
          %v1639 = vadd.f32 %v1387, %v1573
          %v1640 = vadd.f32 %v1388, %v1578
          %v1641 = vadd.f32 %v1389, %v1583
          %v1642 = vadd.f32 %v1390, %v1588
          %v1643 = vadd.f32 %v1391, %v1593
          %v1644 = vadd.f32 %v1392, %v1598
          %v1645 = vadd.f32 %v1393, %v1603
          %v1646 = vadd.f32 %v1394, %v1608
          %v1647 = vadd.f32 %v1395, %v1613
          %v1648 = vadd.f32 %v1396, %v1618
          %v1649 = vadd.f32 %v1397, %v1623
          %v1650 = vadd.f32 %v1398, %v1628
          %v1651 = vadd.f32 %v1399, %v1633
          %v1652 = vld [vmem:[%s6] sm:$0x1]
          %v1654 = vlaneseq
          %v1655 = vshrl.u32 %v1654, 7
          %v1656 = vsub.s32 0, %v1655
          %v1657 = vrot.slane %v1652, %v1656
          %v1659 = vadd.f32 %v1636, %v1657
          %v1660 = vadd.f32 %v1637, %v1657
          %v1661 = vadd.f32 %v1638, %v1657
          %v1662 = vadd.f32 %v1639, %v1657
          %v1663 = vadd.f32 %v1640, %v1657
          %v1664 = vadd.f32 %v1641, %v1657
          %v1665 = vadd.f32 %v1642, %v1657
          %v1666 = vadd.f32 %v1643, %v1657
          %v1667 = vadd.f32 %v1644, %v1657
          %v1668 = vadd.f32 %v1645, %v1657
          %v1669 = vadd.f32 %v1646, %v1657
          %v1670 = vadd.f32 %v1647, %v1657
          %v1671 = vadd.f32 %v1648, %v1657
          %v1672 = vadd.f32 %v1649, %v1657
          %v1673 = vadd.f32 %v1650, %v1657
          %v1674 = vadd.f32 %v1651, %v1657
          %v1675 = vmax.f32 %v1659, 0.0
          %v1676 = vmax.f32 %v1660, 0.0
          %v1677 = vmax.f32 %v1661, 0.0
          %v1678 = vmax.f32 %v1662, 0.0
          %v1679 = vmax.f32 %v1663, 0.0
          %v1680 = vmax.f32 %v1664, 0.0
          %v1681 = vmax.f32 %v1665, 0.0
          %v1682 = vmax.f32 %v1666, 0.0
          %v1683 = vmax.f32 %v1667, 0.0
          %v1684 = vmax.f32 %v1668, 0.0
          %v1685 = vmax.f32 %v1669, 0.0
          %v1686 = vmax.f32 %v1670, 0.0
          %v1687 = vmax.f32 %v1671, 0.0
          %v1688 = vmax.f32 %v1672, 0.0
          %v1689 = vmax.f32 %v1673, 0.0
          %v1690 = vmax.f32 %v1674, 0.0
          %vm1691 = vcmask 31744
          %1692 = vst.msk [vmem:[%s529] sm:$0xff] %vm1691, %v1675
          %1693 = vst.msk [vmem:[%s529 + $0x8] sm:$0xff] %vm1691, %v1676
          %1694 = vst.msk [vmem:[%s529 + $0x10] sm:$0xff] %vm1691, %v1677
          %1695 = vst.msk [vmem:[%s529 + $0x18] sm:$0xff] %vm1691, %v1678
          %1696 = vst.msk [vmem:[%s529 + $0x20] sm:$0xff] %vm1691, %v1679
          %1697 = vst.msk [vmem:[%s529 + $0x28] sm:$0xff] %vm1691, %v1680
          %1698 = vst.msk [vmem:[%s529 + $0x30] sm:$0xff] %vm1691, %v1681
          %1699 = vst.msk [vmem:[%s529 + $0x38] sm:$0xff] %vm1691, %v1682
          %1700 = vst.msk [vmem:[%s529 + $0x40] sm:$0xff] %vm1691, %v1683
          %1701 = vst.msk [vmem:[%s529 + $0x48] sm:$0xff] %vm1691, %v1684
          %1702 = vst.msk [vmem:[%s529 + $0x50] sm:$0xff] %vm1691, %v1685
          %1703 = vst.msk [vmem:[%s529 + $0x58] sm:$0xff] %vm1691, %v1686
          %1704 = vst.msk [vmem:[%s529 + $0x60] sm:$0xff] %vm1691, %v1687
          %1705 = vst.msk [vmem:[%s529 + $0x68] sm:$0xff] %vm1691, %v1688
          %1706 = vst.msk [vmem:[%s529 + $0x70] sm:$0xff] %vm1691, %v1689
          %1707 = vst.msk [vmem:[%s529 + $0x78] sm:$0xff] %vm1691, %v1690
        $region109: #{tpu_custom_call.1} parent=88 // pred_fallthru
          _
        %s1708 = smul.u32 %s26, %s25
        %s1709 = smul.u32 16, %s1708
        %p1710 = scmp.lt.s32.totalorder %s24, 1
        %s1711 = scalar_select %p1710, %s24, 1
        %p1712 = scmp.lt.s32.totalorder %s1709, 31
        %s1713 = scalar_select %p1712, %s1709, 31
        %s1714 = smul.addr %s1711, 32
        %s1715 = sadd.s32 %s1713, %s1714
        %s1716 = smul.addr %s1715, 8
        %s1717 = scalar_lea.vmem %s8, %s1716
        // Predicated region
        $region110: #{tpu_custom_call.1} parent=88 // pred_check
          %p1718 = pneg %p263
        $region111: #{tpu_custom_call.1} parent=88 // pred_check_branch
          %1720 = sbr.rel (%p1718) target = $region113
        $region112: #{tpu_custom_call.1} parent=88 // pred_region
          %s1721 = smul.u32 %s26, %s25
          %s1722 = smul.u32 16, %s1721
        $region113: #{tpu_custom_call.1} parent=88 // pred_fallthru
          _
      $region89: #{tpu_custom_call.1} parent=5 // pred_fallthru
        _
      %p1723 = scmp.le.s32.totalorder 2, %s14
      // Predicated region
      $region114: #{tpu_custom_call.1} parent=5 // pred_check
        %p1724 = pneg %p1723
      $region115: #{tpu_custom_call.1} parent=5 // pred_check_branch
        %1726 = sbr.rel (%p1724) target = $region117
      $region116: #{tpu_custom_call.1} parent=5 // pred_region
        %s1727 = ssub.s32 %s14, 2
        // Predicated region
        $region118: #{tpu_custom_call.1} parent=116 // pred_check
          %p1728 = pneg %p269
        $region119: #{tpu_custom_call.1} parent=116 // pred_check_branch
          %1730 = sbr.rel (%p1728) target = $region121
        $region120: #{tpu_custom_call.1} parent=116 // pred_region
          %s1731 = smul.u32 %s29, %s28
          %s1732 = smul.u32 16, %s1731
          %p1733 = scmp.lt.s32.totalorder %s27, 1
          %s1734 = scalar_select %p1733, %s27, 1
          %p1735 = scmp.lt.s32.totalorder %s1732, 31
          %s1736 = scalar_select %p1735, %s1732, 31
          %s1737 = smul.addr %s1734, 32
          %s1738 = sadd.s32 %s1736, %s1737
          %s1739 = smul.addr %s1738, 8
          %s1740 = scalar_lea.vmem %s8, %s1739
        $region121: #{tpu_custom_call.1} parent=116 // pred_fallthru
          _
      $region117: #{tpu_custom_call.1} parent=5 // pred_fallthru
        _
    $region6: #{tpu_custom_call.1} parent=1 // loop_footer
      %s18 = sadd.s32 1, %s14
    $region7: #{tpu_custom_call.1} parent=1 // loop_footer_branch
      %13 = sbr.rel target = $region3
    $region8: #{tpu_custom_call.1} parent=1 // loop_exit
      _

</llo_original>
